<compile_context>
chip_gen: v7x
topology: tpu7x:2x2x1
jax: 0.10.0
libtpu: 0.0.40
codegen_flags: <defaults>
</compile_context>

<pallas_src>
import functools

import jax
import jax.numpy as jnp
import numpy as np
from jax import lax
from jax.experimental import pallas as pl
from jax.experimental.pallas import tpu as pltpu


def _cbam_kernel(a_ref, b_ref, w0_ref, b0_ref, w1_ref, w2_ref, wsp_ref,
                 o_ref, xpad_ref, smap_ref, *, C, W, HW, K_SP, PAD_IN, PAD_SP):
    """One batch element, channel-major (C, H*W) layout."""
    f32 = jnp.float32
    C2 = 2 * C
    P = K_SP // 2

    # Column (x) coordinate of every flattened spatial position (W is a power
    # of two, asserted in the wrapper).  Boundary masks are built once and
    # shared between conv0 (|dx| <= 1) and the KxK spatial conv (|dx| <= P).
    col = lax.broadcasted_iota(jnp.int32, (1, HW), 1) & (W - 1)
    max_dx = max(1, P)
    col_ok = {}
    for d in range(1, max_dx + 1):
        col_ok[d] = col < (W - d)      # neighbour x+d stays inside the row
        col_ok[-d] = col >= d          # neighbour x-d stays inside the row

    # ---------------- in-kernel pad: concat([A, B], channel) -> flat-padded
    # scratch.  Only the halo is zeroed (interior fully overwritten every grid
    # step); correct under any grid sharding across cores.
    xpad_ref[:, 0:PAD_IN] = jnp.zeros((C2, PAD_IN), f32)
    xpad_ref[:, PAD_IN + HW:] = jnp.zeros((C2, PAD_IN), f32)
    xpad_ref[0:C, PAD_IN:PAD_IN + HW] = a_ref[0]
    xpad_ref[C:C2, PAD_IN:PAD_IN + HW] = b_ref[0]

    # ---------------- conv0: Conv2d(2C -> C, k=3, pad=1) as one im2col matmul
    # A tap (ky, kx) is a shifted load at flat offset (ky-1)*W + (kx-1); the
    # flat zero halo handles top/bottom, the column mask kills row-wrap lanes.
    pieces = []
    for ky in range(3):
        for kx in range(3):
            dx = kx - 1
            start = PAD_IN + (ky - 1) * W + dx
            sl = xpad_ref[:, start:start + HW]           # (2C, HW) f32
            if dx != 0:
                sl = jnp.where(col_ok[dx], sl, 0.0)
            pieces.append(sl.astype(jnp.bfloat16))
    patches = jnp.concatenate(pieces, axis=0)            # (9*2C, HW) bf16
    b3 = jnp.dot(w0_ref[...], patches,
                 preferred_element_type=f32)             # (C, HW) f32, MXU
    b3 = b3 + b0_ref[...]                                # + bias (C, 1)

    # ---------------- channel attention -------------------------------------
    mx = jnp.max(b3, axis=1, keepdims=True)              # (C, 1) lane reduce
    av = jnp.sum(b3, axis=1, keepdims=True) * (1.0 / HW)  # (C, 1)
    pooled = jnp.concatenate([mx, av], axis=1)            # (C, 2)
    hid = jnp.maximum(
        jnp.dot(w1_ref[...], pooled, preferred_element_type=f32), 0.0)  # (Cmid, 2)
    # Second MLP layer is linear & bias-free -> sum hidden branches first.
    hsum = hid[:, 0:1] + hid[:, 1:2]                      # (Cmid, 1)
    ch = jax.nn.sigmoid(
        jnp.dot(w2_ref[...], hsum, preferred_element_type=f32))         # (C, 1)

    # ---------------- spatial attention (KxK over packed (2, HW) maps) ------
    maxc = jnp.max(b3, axis=0, keepdims=True)             # (1, HW)
    avgc = jnp.sum(b3, axis=0, keepdims=True) * (1.0 / C)  # (1, HW)

    smap_ref[:, 0:PAD_SP] = jnp.zeros((2, PAD_SP), f32)
    smap_ref[:, PAD_SP + HW:] = jnp.zeros((2, PAD_SP), f32)
    smap_ref[0:1, PAD_SP:PAD_SP + HW] = maxc
    smap_ref[1:2, PAD_SP:PAD_SP + HW] = avgc

    wsp = wsp_ref[...]                                    # (2, K*K) f32
    parts = []                                            # one chain per kx
    for kx in range(K_SP):
        dx = kx - P
        part = None
        for ky in range(K_SP):
            t = ky * K_SP + kx
            start = PAD_SP + (ky - P) * W + dx
            contrib = wsp[:, t:t + 1] * smap_ref[:, start:start + HW]
            part = contrib if part is None else part + contrib
        if dx != 0:                                       # mask shared over ky
            part = jnp.where(col_ok[dx], part, 0.0)
        parts.append(part)
    while len(parts) > 1:                                 # log-tree reduction
        nxt = [parts[i] + parts[i + 1] for i in range(0, len(parts) - 1, 2)]
        if len(parts) % 2:
            nxt.append(parts[-1])
        parts = nxt
    acc_sp = parts[0]                                     # (2, HW)
    spat = jax.nn.sigmoid(acc_sp[0:1, :] + acc_sp[1:2, :])  # (1, HW)

    # ---------------- apply both attentions to A (lane-dense store) ---------
    o_ref[0] = (a_ref[0] * ch * spat).astype(o_ref.dtype)


def cbam_forward(A, B, params, *, spatial_kernel=7):
    """A, B: (N, C, H, W) float32 (NCHW). Returns (N, C, H, W)."""
    N, C, H, W = A.shape
    HW = H * W
    K = spatial_kernel
    assert (W & (W - 1)) == 0, "kernel uses a power-of-two W for the column mask"

    PAD_IN = W + 1                       # covers the +/-(W+1) flat shift of 3x3
    PAD_SP = (K // 2) * (W + 1)          # covers the +/-P*(W+1) shift of KxK

    # Channel-major, flattened-spatial views (free reshapes of NCHW).
    A_cm = A.reshape(N, C, HW)
    B_cm = B.reshape(N, C, HW)

    # conv0 weight (C, 2C, 3, 3) -> (C, ky, kx, 2C) -> (C, 9*2C), matching the
    # tap-major / channel-minor ordering of the im2col patches. bf16 for MXU.
    w0 = jnp.transpose(params["conv0_w"], (0, 2, 3, 1)).reshape(
        C, 9 * 2 * C).astype(jnp.bfloat16)
    b0 = params["conv0_b"].reshape(C, 1).astype(jnp.float32)
    w1 = params["mlp0_w"][:, :, 0, 0].astype(jnp.float32)      # (Cmid, C)
    w2 = params["mlp1_w"][:, :, 0, 0].astype(jnp.float32)      # (C, Cmid)
    wsp = params["conv_w"][0].reshape(2, K * K).astype(jnp.float32)
    Cmid = w1.shape[0]

    kernel = functools.partial(_cbam_kernel, C=C, W=W, HW=HW, K_SP=K,
                               PAD_IN=PAD_IN, PAD_SP=PAD_SP)

    out_cm = pl.pallas_call(
        kernel,
        out_shape=jax.ShapeDtypeStruct((N, C, HW), A.dtype),
        grid=(N,),
        in_specs=[
            pl.BlockSpec((1, C, HW), lambda n: (n, 0, 0)),               # A
            pl.BlockSpec((1, C, HW), lambda n: (n, 0, 0)),               # B
            pl.BlockSpec((C, 9 * 2 * C), lambda n: (0, 0)),              # conv0 w (im2col)
            pl.BlockSpec((C, 1), lambda n: (0, 0)),                      # conv0 bias
            pl.BlockSpec((Cmid, C), lambda n: (0, 0)),                   # mlp layer 1
            pl.BlockSpec((C, Cmid), lambda n: (0, 0)),                   # mlp layer 2
            pl.BlockSpec((2, K * K), lambda n: (0, 0)),                  # KxK spatial w
        ],
        out_specs=pl.BlockSpec((1, C, HW), lambda n: (n, 0, 0)),
        scratch_shapes=[
            pltpu.VMEM((2 * C, HW + 2 * PAD_IN), jnp.float32),           # padded concat(A,B)
            pltpu.VMEM((2, HW + 2 * PAD_SP), jnp.float32),               # padded max/avg maps
        ],
        compiler_params=pltpu.CompilerParams(
            dimension_semantics=("parallel",),        # batch is independent (megacore)
            vmem_limit_bytes=32 * 1024 * 1024),
    )(A_cm, B_cm, w0, b0, w1, w2, wsp)

    return out_cm.reshape(N, C, H, W)


def cbam_reference(A, B, params):
    """Pure-JAX reference matching the PyTorch module (NCHW, f32)."""
    x = jnp.concatenate([A, B], axis=1)
    Bc = lax.conv_general_dilated(
        x, params["conv0_w"], (1, 1), "SAME",
        dimension_numbers=("NCHW", "OIHW", "NCHW"))
    Bc = Bc + params["conv0_b"][None, :, None, None]

    mx = jnp.max(Bc, axis=(2, 3))
    av = jnp.mean(Bc, axis=(2, 3))
    w1 = params["mlp0_w"][:, :, 0, 0]
    w2 = params["mlp1_w"][:, :, 0, 0]

    def mlp(v):
        return jnp.maximum(v @ w1.T, 0.0) @ w2.T

    ch = jax.nn.sigmoid(mlp(mx) + mlp(av))
    A1 = ch[:, :, None, None] * A

    maxc = jnp.max(Bc, axis=1, keepdims=True)
    avgc = jnp.mean(Bc, axis=1, keepdims=True)
    sp_in = jnp.concatenate([maxc, avgc], axis=1)
    sp = lax.conv_general_dilated(
        sp_in, params["conv_w"], (1, 1), "SAME",
        dimension_numbers=("NCHW", "OIHW", "NCHW"))
    return jax.nn.sigmoid(sp) * A1


if __name__ == "__main__":
    N, C, H, W = 2, 32, 16, 16
    reduction, spatial_kernel = 16, 7
    Cmid = C // reduction

    key = jax.random.PRNGKey(0)
    keys = jax.random.split(key, 7)
    A = jax.random.normal(keys[0], (N, C, H, W), jnp.float32)
    Bx = jax.random.normal(keys[1], (N, C, H, W), jnp.float32)

    params = {
        "conv0_w": 0.05 * jax.random.normal(keys[2], (C, 2 * C, 3, 3), jnp.float32),
        "conv0_b": 0.05 * jax.random.normal(keys[3], (C,), jnp.float32),
        "mlp0_w": 0.10 * jax.random.normal(keys[4], (Cmid, C, 1, 1), jnp.float32),
        "mlp1_w": 0.10 * jax.random.normal(keys[5], (C, Cmid, 1, 1), jnp.float32),
        "conv_w": 0.05 * jax.random.normal(
            keys[6], (1, 2, spatial_kernel, spatial_kernel), jnp.float32),
    }

    out = jax.block_until_ready(cbam_forward(A, Bx, params,
                                             spatial_kernel=spatial_kernel))
    ref = jax.block_until_ready(cbam_reference(A, Bx, params))

    out_np, ref_np = np.asarray(out), np.asarray(ref)
    max_err = np.max(np.abs(out_np - ref_np))
    # conv0 operands are bf16 on the MXU (f32 accumulate) -> relaxed tolerance.
    if not np.allclose(out_np, ref_np, atol=1e-2, rtol=1e-2):
        raise AssertionError(
            f"Pallas kernel mismatch vs reference; max abs diff = {max_err}")
    print("KERNEL_OK")
</pallas_src>

<mosaic_0001>
module attributes {stable_mosaic.version = 11 : i64} {
  func.func @_cbam_kernel(%arg0: i32, %arg1: memref<1x32x256xf32, #tpu.memory_space<vmem>>, %arg2: memref<1x32x256xf32, #tpu.memory_space<vmem>>, %arg3: memref<32x576xbf16, #tpu.memory_space<vmem>>, %arg4: memref<32x1xf32, #tpu.memory_space<vmem>>, %arg5: memref<2x32xf32, #tpu.memory_space<vmem>>, %arg6: memref<32x2xf32, #tpu.memory_space<vmem>>, %arg7: memref<2x49xf32, #tpu.memory_space<vmem>>, %arg8: memref<1x32x256xf32, #tpu.memory_space<vmem>>, %arg9: memref<64x290xf32, #tpu.memory_space<vmem>>, %arg10: memref<2x358xf32, #tpu.memory_space<vmem>>) attributes {dimension_semantics = [#tpu.dimension_semantics<parallel>], iteration_bounds = array<i64: 2>, scalar_prefetch = 0 : i64, scratch_operands = 2 : i64, tpu.core_type = #tpu.core_type<tc>, window_params = [{transform_indices = @transform_0, window_bounds = array<i64: 1, 32, 256>}, {transform_indices = @transform_1, window_bounds = array<i64: 1, 32, 256>}, {pipeline_mode = #tpu.pipeline_mode<synchronous>, transform_indices = @transform_2, window_bounds = array<i64: 32, 576>}, {pipeline_mode = #tpu.pipeline_mode<synchronous>, transform_indices = @transform_3, window_bounds = array<i64: 32, 1>}, {pipeline_mode = #tpu.pipeline_mode<synchronous>, transform_indices = @transform_4, window_bounds = array<i64: 2, 32>}, {pipeline_mode = #tpu.pipeline_mode<synchronous>, transform_indices = @transform_5, window_bounds = array<i64: 32, 2>}, {pipeline_mode = #tpu.pipeline_mode<synchronous>, transform_indices = @transform_6, window_bounds = array<i64: 2, 49>}, {transform_indices = @transform_7, window_bounds = array<i64: 1, 32, 256>}]} {
    %0 = tpu.iota {dimensions = array<i32: 1>} : vector<1x256xi32>
    %c15_i32 = arith.constant 15 : i32
    %1 = vector.broadcast %c15_i32 : i32 to vector<1x256xi32>
    %2 = arith.andi %0, %1 : vector<1x256xi32>
    %c15_i32_0 = arith.constant 15 : i32
    %3 = vector.broadcast %c15_i32_0 : i32 to vector<1x256xi32>
    %4 = arith.cmpi slt, %2, %3 : vector<1x256xi32>
    %c1_i32 = arith.constant 1 : i32
    %5 = vector.broadcast %c1_i32 : i32 to vector<1x256xi32>
    %6 = arith.cmpi sge, %2, %5 : vector<1x256xi32>
    %c14_i32 = arith.constant 14 : i32
    %7 = vector.broadcast %c14_i32 : i32 to vector<1x256xi32>
    %8 = arith.cmpi slt, %2, %7 : vector<1x256xi32>
    %c2_i32 = arith.constant 2 : i32
    %9 = vector.broadcast %c2_i32 : i32 to vector<1x256xi32>
    %10 = arith.cmpi sge, %2, %9 : vector<1x256xi32>
    %c13_i32 = arith.constant 13 : i32
    %11 = vector.broadcast %c13_i32 : i32 to vector<1x256xi32>
    %12 = arith.cmpi slt, %2, %11 : vector<1x256xi32>
    %c3_i32 = arith.constant 3 : i32
    %13 = vector.broadcast %c3_i32 : i32 to vector<1x256xi32>
    %14 = arith.cmpi sge, %2, %13 : vector<1x256xi32>
    %cst = arith.constant 0.000000e+00 : f32
    %15 = vector.broadcast %cst : f32 to vector<64x17xf32>
    %c0 = arith.constant 0 : index
    %c0_1 = arith.constant 0 : index
    %16 = vector.load %arg9[%c0, %c0_1] : memref<64x290xf32, #tpu.memory_space<vmem>>, vector<64x17xf32>
    tpu.vector_store %arg9[%c0, %c0_1], %15 {strides = array<i32>} : memref<64x290xf32, #tpu.memory_space<vmem>>, vector<64x17xf32>,
    %cst_2 = arith.constant 0.000000e+00 : f32
    %17 = vector.broadcast %cst_2 : f32 to vector<64x17xf32>
    %c0_3 = arith.constant 0 : index
    %c273 = arith.constant 273 : index
    %18 = vector.load %arg9[%c0_3, %c273] : memref<64x290xf32, #tpu.memory_space<vmem>>, vector<64x17xf32>
    tpu.vector_store %arg9[%c0_3, %c273], %17 {strides = array<i32>} : memref<64x290xf32, #tpu.memory_space<vmem>>, vector<64x17xf32>,
    %c0_4 = arith.constant 0 : index
    %c0_5 = arith.constant 0 : index
    %c0_6 = arith.constant 0 : index
    %19 = vector.load %arg1[%c0_4, %c0_5, %c0_6] : memref<1x32x256xf32, #tpu.memory_space<vmem>>, vector<1x32x256xf32>
    %20 = vector.shape_cast %19 : vector<1x32x256xf32> to vector<32x256xf32>
    %c0_7 = arith.constant 0 : index
    %c17 = arith.constant 17 : index
    %21 = vector.load %arg9[%c0_7, %c17] : memref<64x290xf32, #tpu.memory_space<vmem>>, vector<32x256xf32>
    tpu.vector_store %arg9[%c0_7, %c17], %20 {strides = array<i32>} : memref<64x290xf32, #tpu.memory_space<vmem>>, vector<32x256xf32>,
    %c0_8 = arith.constant 0 : index
    %c0_9 = arith.constant 0 : index
    %c0_10 = arith.constant 0 : index
    %22 = vector.load %arg2[%c0_8, %c0_9, %c0_10] : memref<1x32x256xf32, #tpu.memory_space<vmem>>, vector<1x32x256xf32>
    %23 = vector.shape_cast %22 : vector<1x32x256xf32> to vector<32x256xf32>
    %c32 = arith.constant 32 : index
    %c17_11 = arith.constant 17 : index
    %24 = vector.load %arg9[%c32, %c17_11] : memref<64x290xf32, #tpu.memory_space<vmem>>, vector<32x256xf32>
    tpu.vector_store %arg9[%c32, %c17_11], %23 {strides = array<i32>} : memref<64x290xf32, #tpu.memory_space<vmem>>, vector<32x256xf32>,
    %c0_12 = arith.constant 0 : index
    %c0_13 = arith.constant 0 : index
    %25 = vector.load %arg9[%c0_12, %c0_13] : memref<64x290xf32, #tpu.memory_space<vmem>>, vector<64x256xf32>
    %cst_14 = arith.constant 0.000000e+00 : f32
    %26 = vector.shape_cast %6 : vector<1x256xi1> to vector<1x256xi1>
    %27 = vector.broadcast %26 : vector<1x256xi1> to vector<64x256xi1>
    %28 = vector.broadcast %cst_14 : f32 to vector<64x256xf32>
    %29 = arith.select %27, %25, %28 : vector<64x256xi1>, vector<64x256xf32>
    %30 = arith.truncf %29 : vector<64x256xf32> to vector<64x256xbf16>
    %c0_15 = arith.constant 0 : index
    %c1 = arith.constant 1 : index
    %31 = vector.load %arg9[%c0_15, %c1] : memref<64x290xf32, #tpu.memory_space<vmem>>, vector<64x256xf32>
    %32 = arith.truncf %31 : vector<64x256xf32> to vector<64x256xbf16>
    %c0_16 = arith.constant 0 : index
    %c2 = arith.constant 2 : index
    %33 = vector.load %arg9[%c0_16, %c2] : memref<64x290xf32, #tpu.memory_space<vmem>>, vector<64x256xf32>
    %cst_17 = arith.constant 0.000000e+00 : f32
    %34 = vector.shape_cast %4 : vector<1x256xi1> to vector<1x256xi1>
    %35 = vector.broadcast %34 : vector<1x256xi1> to vector<64x256xi1>
    %36 = vector.broadcast %cst_17 : f32 to vector<64x256xf32>
    %37 = arith.select %35, %33, %36 : vector<64x256xi1>, vector<64x256xf32>
    %38 = arith.truncf %37 : vector<64x256xf32> to vector<64x256xbf16>
    %c0_18 = arith.constant 0 : index
    %c16 = arith.constant 16 : index
    %39 = vector.load %arg9[%c0_18, %c16] : memref<64x290xf32, #tpu.memory_space<vmem>>, vector<64x256xf32>
    %cst_19 = arith.constant 0.000000e+00 : f32
    %40 = vector.shape_cast %6 : vector<1x256xi1> to vector<1x256xi1>
    %41 = vector.broadcast %40 : vector<1x256xi1> to vector<64x256xi1>
    %42 = vector.broadcast %cst_19 : f32 to vector<64x256xf32>
    %43 = arith.select %41, %39, %42 : vector<64x256xi1>, vector<64x256xf32>
    %44 = arith.truncf %43 : vector<64x256xf32> to vector<64x256xbf16>
    %c0_20 = arith.constant 0 : index
    %c17_21 = arith.constant 17 : index
    %45 = vector.load %arg9[%c0_20, %c17_21] : memref<64x290xf32, #tpu.memory_space<vmem>>, vector<64x256xf32>
    %46 = arith.truncf %45 : vector<64x256xf32> to vector<64x256xbf16>
    %c0_22 = arith.constant 0 : index
    %c18 = arith.constant 18 : index
    %47 = vector.load %arg9[%c0_22, %c18] : memref<64x290xf32, #tpu.memory_space<vmem>>, vector<64x256xf32>
    %cst_23 = arith.constant 0.000000e+00 : f32
    %48 = vector.shape_cast %4 : vector<1x256xi1> to vector<1x256xi1>
    %49 = vector.broadcast %48 : vector<1x256xi1> to vector<64x256xi1>
    %50 = vector.broadcast %cst_23 : f32 to vector<64x256xf32>
    %51 = arith.select %49, %47, %50 : vector<64x256xi1>, vector<64x256xf32>
    %52 = arith.truncf %51 : vector<64x256xf32> to vector<64x256xbf16>
    %c0_24 = arith.constant 0 : index
    %c32_25 = arith.constant 32 : index
    %53 = vector.load %arg9[%c0_24, %c32_25] : memref<64x290xf32, #tpu.memory_space<vmem>>, vector<64x256xf32>
    %cst_26 = arith.constant 0.000000e+00 : f32
    %54 = vector.shape_cast %6 : vector<1x256xi1> to vector<1x256xi1>
    %55 = vector.broadcast %54 : vector<1x256xi1> to vector<64x256xi1>
    %56 = vector.broadcast %cst_26 : f32 to vector<64x256xf32>
    %57 = arith.select %55, %53, %56 : vector<64x256xi1>, vector<64x256xf32>
    %58 = arith.truncf %57 : vector<64x256xf32> to vector<64x256xbf16>
    %c0_27 = arith.constant 0 : index
    %c33 = arith.constant 33 : index
    %59 = vector.load %arg9[%c0_27, %c33] : memref<64x290xf32, #tpu.memory_space<vmem>>, vector<64x256xf32>
    %60 = arith.truncf %59 : vector<64x256xf32> to vector<64x256xbf16>
    %c0_28 = arith.constant 0 : index
    %c34 = arith.constant 34 : index
    %61 = vector.load %arg9[%c0_28, %c34] : memref<64x290xf32, #tpu.memory_space<vmem>>, vector<64x256xf32>
    %cst_29 = arith.constant 0.000000e+00 : f32
    %62 = vector.shape_cast %4 : vector<1x256xi1> to vector<1x256xi1>
    %63 = vector.broadcast %62 : vector<1x256xi1> to vector<64x256xi1>
    %64 = vector.broadcast %cst_29 : f32 to vector<64x256xf32>
    %65 = arith.select %63, %61, %64 : vector<64x256xi1>, vector<64x256xf32>
    %66 = arith.truncf %65 : vector<64x256xf32> to vector<64x256xbf16>
    %67 = tpu.concatenate %30, %32, %38, %44, %46, %52, %58, %60, %66 in 0 : vector<64x256xbf16>, vector<64x256xbf16>, vector<64x256xbf16>, vector<64x256xbf16>, vector<64x256xbf16>, vector<64x256xbf16>, vector<64x256xbf16>, vector<64x256xbf16>, vector<64x256xbf16> -> vector<576x256xbf16>
    %c0_30 = arith.constant 0 : index
    %c0_31 = arith.constant 0 : index
    %68 = vector.load %arg3[%c0_30, %c0_31] : memref<32x576xbf16, #tpu.memory_space<vmem>>, vector<32x576xbf16>
    %cst_32 = arith.constant dense<0.000000e+00> : vector<32x256xf32>
    %69 = tpu.matmul %68, %67, %cst_32 {dimension_numbers = #tpu.dot_dimension_numbers<[1], [0], [0], [1], [0, 0, 1, 1], [], []>} : vector<32x576xbf16>, vector<576x256xbf16>, vector<32x256xf32> -> vector<32x256xf32>
    %c0_33 = arith.constant 0 : index
    %c0_34 = arith.constant 0 : index
    %70 = vector.load %arg4[%c0_33, %c0_34] : memref<32x1xf32, #tpu.memory_space<vmem>>, vector<32x1xf32>
    %71 = vector.broadcast %70 : vector<32x1xf32> to vector<32x256xf32>
    %72 = arith.addf %69, %71 : vector<32x256xf32>
    %cst_35 = arith.constant dense<0xFF800000> : vector<32xf32>
    %73 = vector.multi_reduction <maximumf>, %72, %cst_35 [1] : vector<32x256xf32> to vector<32xf32>
    %74 = vector.shape_cast %73 : vector<32xf32> to vector<32x1xf32>
    %cst_36 = arith.constant dense<0.000000e+00> : vector<32xf32>
    %75 = vector.multi_reduction <add>, %72, %cst_36 [1] : vector<32x256xf32> to vector<32xf32>
    %76 = vector.shape_cast %75 : vector<32xf32> to vector<32x1xf32>
    %cst_37 = arith.constant 3.906250e-03 : f32
    %77 = vector.broadcast %cst_37 : f32 to vector<32x1xf32>
    %78 = arith.mulf %76, %77 : vector<32x1xf32>
    %79 = tpu.concatenate %74, %78 in 1 : vector<32x1xf32>, vector<32x1xf32> -> vector<32x2xf32>
    %c0_38 = arith.constant 0 : index
    %c0_39 = arith.constant 0 : index
    %80 = vector.load %arg5[%c0_38, %c0_39] : memref<2x32xf32, #tpu.memory_space<vmem>>, vector<2x32xf32>
    %cst_40 = arith.constant dense<0.000000e+00> : vector<2x2xf32>
    %81 = tpu.matmul %80, %79, %cst_40 {dimension_numbers = #tpu.dot_dimension_numbers<[1], [0], [0], [1], [0, 0, 1, 1], [], []>} : vector<2x32xf32>, vector<32x2xf32>, vector<2x2xf32> -> vector<2x2xf32>
    %cst_41 = arith.constant 0.000000e+00 : f32
    %82 = vector.broadcast %cst_41 : f32 to vector<2x2xf32>
    %83 = arith.maximumf %81, %82 : vector<2x2xf32>
    %84 = vector.extract_strided_slice %83 {offsets = [0, 0], sizes = [2, 1], strides = [1, 1]} : vector<2x2xf32> to vector<2x1xf32>
    %85 = vector.extract_strided_slice %83 {offsets = [0, 1], sizes = [2, 1], strides = [1, 1]} : vector<2x2xf32> to vector<2x1xf32>
    %86 = arith.addf %84, %85 : vector<2x1xf32>
    %c0_42 = arith.constant 0 : index
    %c0_43 = arith.constant 0 : index
    %87 = vector.load %arg6[%c0_42, %c0_43] : memref<32x2xf32, #tpu.memory_space<vmem>>, vector<32x2xf32>
    %cst_44 = arith.constant dense<0.000000e+00> : vector<32x1xf32>
    %88 = tpu.matmul %87, %86, %cst_44 {dimension_numbers = #tpu.dot_dimension_numbers<[1], [0], [0], [1], [0, 0, 1, 1], [], []>} : vector<32x2xf32>, vector<2x1xf32>, vector<32x1xf32> -> vector<32x1xf32>
    %89 = arith.negf %88 : vector<32x1xf32>
    %90 = math.exp %89 : vector<32x1xf32>
    %cst_45 = arith.constant 1.000000e+00 : f32
    %91 = vector.broadcast %cst_45 : f32 to vector<32x1xf32>
    %92 = arith.addf %91, %90 : vector<32x1xf32>
    %93 = arith.divf %91, %92 : vector<32x1xf32>
    %cst_46 = arith.constant dense<0xFF800000> : vector<256xf32>
    %94 = vector.multi_reduction <maximumf>, %72, %cst_46 [0] : vector<32x256xf32> to vector<256xf32>
    %95 = vector.shape_cast %94 : vector<256xf32> to vector<1x256xf32>
    %cst_47 = arith.constant dense<0.000000e+00> : vector<256xf32>
    %96 = vector.multi_reduction <add>, %72, %cst_47 [0] : vector<32x256xf32> to vector<256xf32>
    %97 = vector.shape_cast %96 : vector<256xf32> to vector<1x256xf32>
    %cst_48 = arith.constant 3.125000e-02 : f32
    %98 = vector.broadcast %cst_48 : f32 to vector<1x256xf32>
    %99 = arith.mulf %97, %98 : vector<1x256xf32>
    %cst_49 = arith.constant 0.000000e+00 : f32
    %100 = vector.broadcast %cst_49 : f32 to vector<2x51xf32>
    %c0_50 = arith.constant 0 : index
    %c0_51 = arith.constant 0 : index
    %101 = vector.load %arg10[%c0_50, %c0_51] : memref<2x358xf32, #tpu.memory_space<vmem>>, vector<2x51xf32>
    tpu.vector_store %arg10[%c0_50, %c0_51], %100 {strides = array<i32>} : memref<2x358xf32, #tpu.memory_space<vmem>>, vector<2x51xf32>,
    %cst_52 = arith.constant 0.000000e+00 : f32
    %102 = vector.broadcast %cst_52 : f32 to vector<2x51xf32>
    %c0_53 = arith.constant 0 : index
    %c307 = arith.constant 307 : index
    %103 = vector.load %arg10[%c0_53, %c307] : memref<2x358xf32, #tpu.memory_space<vmem>>, vector<2x51xf32>
    tpu.vector_store %arg10[%c0_53, %c307], %102 {strides = array<i32>} : memref<2x358xf32, #tpu.memory_space<vmem>>, vector<2x51xf32>,
    %c0_54 = arith.constant 0 : index
    %c51 = arith.constant 51 : index
    %104 = vector.load %arg10[%c0_54, %c51] : memref<2x358xf32, #tpu.memory_space<vmem>>, vector<1x256xf32>
    tpu.vector_store %arg10[%c0_54, %c51], %95 {strides = array<i32>} : memref<2x358xf32, #tpu.memory_space<vmem>>, vector<1x256xf32>,
    %c1_55 = arith.constant 1 : index
    %c51_56 = arith.constant 51 : index
    %105 = vector.load %arg10[%c1_55, %c51_56] : memref<2x358xf32, #tpu.memory_space<vmem>>, vector<1x256xf32>
    tpu.vector_store %arg10[%c1_55, %c51_56], %99 {strides = array<i32>} : memref<2x358xf32, #tpu.memory_space<vmem>>, vector<1x256xf32>,
    %c0_57 = arith.constant 0 : index
    %c0_58 = arith.constant 0 : index
    %106 = vector.load %arg7[%c0_57, %c0_58] : memref<2x49xf32, #tpu.memory_space<vmem>>, vector<2x49xf32>
    %107 = vector.extract_strided_slice %106 {offsets = [0, 0], sizes = [2, 1], strides = [1, 1]} : vector<2x49xf32> to vector<2x1xf32>
    %c0_59 = arith.constant 0 : index
    %c0_60 = arith.constant 0 : index
    %108 = vector.load %arg10[%c0_59, %c0_60] : memref<2x358xf32, #tpu.memory_space<vmem>>, vector<2x256xf32>
    %109 = vector.broadcast %107 : vector<2x1xf32> to vector<2x256xf32>
    %110 = arith.mulf %109, %108 : vector<2x256xf32>
    %111 = vector.extract_strided_slice %106 {offsets = [0, 7], sizes = [2, 1], strides = [1, 1]} : vector<2x49xf32> to vector<2x1xf32>
    %c0_61 = arith.constant 0 : index
    %c16_62 = arith.constant 16 : index
    %112 = vector.load %arg10[%c0_61, %c16_62] : memref<2x358xf32, #tpu.memory_space<vmem>>, vector<2x256xf32>
    %113 = vector.broadcast %111 : vector<2x1xf32> to vector<2x256xf32>
    %114 = arith.mulf %113, %112 : vector<2x256xf32>
    %115 = arith.addf %110, %114 : vector<2x256xf32>
    %116 = vector.extract_strided_slice %106 {offsets = [0, 14], sizes = [2, 1], strides = [1, 1]} : vector<2x49xf32> to vector<2x1xf32>
    %c0_63 = arith.constant 0 : index
    %c32_64 = arith.constant 32 : index
    %117 = vector.load %arg10[%c0_63, %c32_64] : memref<2x358xf32, #tpu.memory_space<vmem>>, vector<2x256xf32>
    %118 = vector.broadcast %116 : vector<2x1xf32> to vector<2x256xf32>
    %119 = arith.mulf %118, %117 : vector<2x256xf32>
    %120 = arith.addf %115, %119 : vector<2x256xf32>
    %121 = vector.extract_strided_slice %106 {offsets = [0, 21], sizes = [2, 1], strides = [1, 1]} : vector<2x49xf32> to vector<2x1xf32>
    %c0_65 = arith.constant 0 : index
    %c48 = arith.constant 48 : index
    %122 = vector.load %arg10[%c0_65, %c48] : memref<2x358xf32, #tpu.memory_space<vmem>>, vector<2x256xf32>
    %123 = vector.broadcast %121 : vector<2x1xf32> to vector<2x256xf32>
    %124 = arith.mulf %123, %122 : vector<2x256xf32>
    %125 = arith.addf %120, %124 : vector<2x256xf32>
    %126 = vector.extract_strided_slice %106 {offsets = [0, 28], sizes = [2, 1], strides = [1, 1]} : vector<2x49xf32> to vector<2x1xf32>
    %c0_66 = arith.constant 0 : index
    %c64 = arith.constant 64 : index
    %127 = vector.load %arg10[%c0_66, %c64] : memref<2x358xf32, #tpu.memory_space<vmem>>, vector<2x256xf32>
    %128 = vector.broadcast %126 : vector<2x1xf32> to vector<2x256xf32>
    %129 = arith.mulf %128, %127 : vector<2x256xf32>
    %130 = arith.addf %125, %129 : vector<2x256xf32>
    %131 = vector.extract_strided_slice %106 {offsets = [0, 35], sizes = [2, 1], strides = [1, 1]} : vector<2x49xf32> to vector<2x1xf32>
    %c0_67 = arith.constant 0 : index
    %c80 = arith.constant 80 : index
    %132 = vector.load %arg10[%c0_67, %c80] : memref<2x358xf32, #tpu.memory_space<vmem>>, vector<2x256xf32>
    %133 = vector.broadcast %131 : vector<2x1xf32> to vector<2x256xf32>
    %134 = arith.mulf %133, %132 : vector<2x256xf32>
    %135 = arith.addf %130, %134 : vector<2x256xf32>
    %136 = vector.extract_strided_slice %106 {offsets = [0, 42], sizes = [2, 1], strides = [1, 1]} : vector<2x49xf32> to vector<2x1xf32>
    %c0_68 = arith.constant 0 : index
    %c96 = arith.constant 96 : index
    %137 = vector.load %arg10[%c0_68, %c96] : memref<2x358xf32, #tpu.memory_space<vmem>>, vector<2x256xf32>
    %138 = vector.broadcast %136 : vector<2x1xf32> to vector<2x256xf32>
    %139 = arith.mulf %138, %137 : vector<2x256xf32>
    %140 = arith.addf %135, %139 : vector<2x256xf32>
    %cst_69 = arith.constant 0.000000e+00 : f32
    %141 = vector.shape_cast %14 : vector<1x256xi1> to vector<1x256xi1>
    %142 = vector.broadcast %141 : vector<1x256xi1> to vector<2x256xi1>
    %143 = vector.broadcast %cst_69 : f32 to vector<2x256xf32>
    %144 = arith.select %142, %140, %143 : vector<2x256xi1>, vector<2x256xf32>
    %145 = vector.extract_strided_slice %106 {offsets = [0, 1], sizes = [2, 1], strides = [1, 1]} : vector<2x49xf32> to vector<2x1xf32>
    %c0_70 = arith.constant 0 : index
    %c1_71 = arith.constant 1 : index
    %146 = vector.load %arg10[%c0_70, %c1_71] : memref<2x358xf32, #tpu.memory_space<vmem>>, vector<2x256xf32>
    %147 = vector.broadcast %145 : vector<2x1xf32> to vector<2x256xf32>
    %148 = arith.mulf %147, %146 : vector<2x256xf32>
    %149 = vector.extract_strided_slice %106 {offsets = [0, 8], sizes = [2, 1], strides = [1, 1]} : vector<2x49xf32> to vector<2x1xf32>
    %c0_72 = arith.constant 0 : index
    %c17_73 = arith.constant 17 : index
    %150 = vector.load %arg10[%c0_72, %c17_73] : memref<2x358xf32, #tpu.memory_space<vmem>>, vector<2x256xf32>
    %151 = vector.broadcast %149 : vector<2x1xf32> to vector<2x256xf32>
    %152 = arith.mulf %151, %150 : vector<2x256xf32>
    %153 = arith.addf %148, %152 : vector<2x256xf32>
    %154 = vector.extract_strided_slice %106 {offsets = [0, 15], sizes = [2, 1], strides = [1, 1]} : vector<2x49xf32> to vector<2x1xf32>
    %c0_74 = arith.constant 0 : index
    %c33_75 = arith.constant 33 : index
    %155 = vector.load %arg10[%c0_74, %c33_75] : memref<2x358xf32, #tpu.memory_space<vmem>>, vector<2x256xf32>
    %156 = vector.broadcast %154 : vector<2x1xf32> to vector<2x256xf32>
    %157 = arith.mulf %156, %155 : vector<2x256xf32>
    %158 = arith.addf %153, %157 : vector<2x256xf32>
    %159 = vector.extract_strided_slice %106 {offsets = [0, 22], sizes = [2, 1], strides = [1, 1]} : vector<2x49xf32> to vector<2x1xf32>
    %c0_76 = arith.constant 0 : index
    %c49 = arith.constant 49 : index
    %160 = vector.load %arg10[%c0_76, %c49] : memref<2x358xf32, #tpu.memory_space<vmem>>, vector<2x256xf32>
    %161 = vector.broadcast %159 : vector<2x1xf32> to vector<2x256xf32>
    %162 = arith.mulf %161, %160 : vector<2x256xf32>
    %163 = arith.addf %158, %162 : vector<2x256xf32>
    %164 = vector.extract_strided_slice %106 {offsets = [0, 29], sizes = [2, 1], strides = [1, 1]} : vector<2x49xf32> to vector<2x1xf32>
    %c0_77 = arith.constant 0 : index
    %c65 = arith.constant 65 : index
    %165 = vector.load %arg10[%c0_77, %c65] : memref<2x358xf32, #tpu.memory_space<vmem>>, vector<2x256xf32>
    %166 = vector.broadcast %164 : vector<2x1xf32> to vector<2x256xf32>
    %167 = arith.mulf %166, %165 : vector<2x256xf32>
    %168 = arith.addf %163, %167 : vector<2x256xf32>
    %169 = vector.extract_strided_slice %106 {offsets = [0, 36], sizes = [2, 1], strides = [1, 1]} : vector<2x49xf32> to vector<2x1xf32>
    %c0_78 = arith.constant 0 : index
    %c81 = arith.constant 81 : index
    %170 = vector.load %arg10[%c0_78, %c81] : memref<2x358xf32, #tpu.memory_space<vmem>>, vector<2x256xf32>
    %171 = vector.broadcast %169 : vector<2x1xf32> to vector<2x256xf32>
    %172 = arith.mulf %171, %170 : vector<2x256xf32>
    %173 = arith.addf %168, %172 : vector<2x256xf32>
    %174 = vector.extract_strided_slice %106 {offsets = [0, 43], sizes = [2, 1], strides = [1, 1]} : vector<2x49xf32> to vector<2x1xf32>
    %c0_79 = arith.constant 0 : index
    %c97 = arith.constant 97 : index
    %175 = vector.load %arg10[%c0_79, %c97] : memref<2x358xf32, #tpu.memory_space<vmem>>, vector<2x256xf32>
    %176 = vector.broadcast %174 : vector<2x1xf32> to vector<2x256xf32>
    %177 = arith.mulf %176, %175 : vector<2x256xf32>
    %178 = arith.addf %173, %177 : vector<2x256xf32>
    %cst_80 = arith.constant 0.000000e+00 : f32
    %179 = vector.shape_cast %10 : vector<1x256xi1> to vector<1x256xi1>
    %180 = vector.broadcast %179 : vector<1x256xi1> to vector<2x256xi1>
    %181 = vector.broadcast %cst_80 : f32 to vector<2x256xf32>
    %182 = arith.select %180, %178, %181 : vector<2x256xi1>, vector<2x256xf32>
    %183 = vector.extract_strided_slice %106 {offsets = [0, 2], sizes = [2, 1], strides = [1, 1]} : vector<2x49xf32> to vector<2x1xf32>
    %c0_81 = arith.constant 0 : index
    %c2_82 = arith.constant 2 : index
    %184 = vector.load %arg10[%c0_81, %c2_82] : memref<2x358xf32, #tpu.memory_space<vmem>>, vector<2x256xf32>
    %185 = vector.broadcast %183 : vector<2x1xf32> to vector<2x256xf32>
    %186 = arith.mulf %185, %184 : vector<2x256xf32>
    %187 = vector.extract_strided_slice %106 {offsets = [0, 9], sizes = [2, 1], strides = [1, 1]} : vector<2x49xf32> to vector<2x1xf32>
    %c0_83 = arith.constant 0 : index
    %c18_84 = arith.constant 18 : index
    %188 = vector.load %arg10[%c0_83, %c18_84] : memref<2x358xf32, #tpu.memory_space<vmem>>, vector<2x256xf32>
    %189 = vector.broadcast %187 : vector<2x1xf32> to vector<2x256xf32>
    %190 = arith.mulf %189, %188 : vector<2x256xf32>
    %191 = arith.addf %186, %190 : vector<2x256xf32>
    %192 = vector.extract_strided_slice %106 {offsets = [0, 16], sizes = [2, 1], strides = [1, 1]} : vector<2x49xf32> to vector<2x1xf32>
    %c0_85 = arith.constant 0 : index
    %c34_86 = arith.constant 34 : index
    %193 = vector.load %arg10[%c0_85, %c34_86] : memref<2x358xf32, #tpu.memory_space<vmem>>, vector<2x256xf32>
    %194 = vector.broadcast %192 : vector<2x1xf32> to vector<2x256xf32>
    %195 = arith.mulf %194, %193 : vector<2x256xf32>
    %196 = arith.addf %191, %195 : vector<2x256xf32>
    %197 = vector.extract_strided_slice %106 {offsets = [0, 23], sizes = [2, 1], strides = [1, 1]} : vector<2x49xf32> to vector<2x1xf32>
    %c0_87 = arith.constant 0 : index
    %c50 = arith.constant 50 : index
    %198 = vector.load %arg10[%c0_87, %c50] : memref<2x358xf32, #tpu.memory_space<vmem>>, vector<2x256xf32>
    %199 = vector.broadcast %197 : vector<2x1xf32> to vector<2x256xf32>
    %200 = arith.mulf %199, %198 : vector<2x256xf32>
    %201 = arith.addf %196, %200 : vector<2x256xf32>
    %202 = vector.extract_strided_slice %106 {offsets = [0, 30], sizes = [2, 1], strides = [1, 1]} : vector<2x49xf32> to vector<2x1xf32>
    %c0_88 = arith.constant 0 : index
    %c66 = arith.constant 66 : index
    %203 = vector.load %arg10[%c0_88, %c66] : memref<2x358xf32, #tpu.memory_space<vmem>>, vector<2x256xf32>
    %204 = vector.broadcast %202 : vector<2x1xf32> to vector<2x256xf32>
    %205 = arith.mulf %204, %203 : vector<2x256xf32>
    %206 = arith.addf %201, %205 : vector<2x256xf32>
    %207 = vector.extract_strided_slice %106 {offsets = [0, 37], sizes = [2, 1], strides = [1, 1]} : vector<2x49xf32> to vector<2x1xf32>
    %c0_89 = arith.constant 0 : index
    %c82 = arith.constant 82 : index
    %208 = vector.load %arg10[%c0_89, %c82] : memref<2x358xf32, #tpu.memory_space<vmem>>, vector<2x256xf32>
    %209 = vector.broadcast %207 : vector<2x1xf32> to vector<2x256xf32>
    %210 = arith.mulf %209, %208 : vector<2x256xf32>
    %211 = arith.addf %206, %210 : vector<2x256xf32>
    %212 = vector.extract_strided_slice %106 {offsets = [0, 44], sizes = [2, 1], strides = [1, 1]} : vector<2x49xf32> to vector<2x1xf32>
    %c0_90 = arith.constant 0 : index
    %c98 = arith.constant 98 : index
    %213 = vector.load %arg10[%c0_90, %c98] : memref<2x358xf32, #tpu.memory_space<vmem>>, vector<2x256xf32>
    %214 = vector.broadcast %212 : vector<2x1xf32> to vector<2x256xf32>
    %215 = arith.mulf %214, %213 : vector<2x256xf32>
    %216 = arith.addf %211, %215 : vector<2x256xf32>
    %cst_91 = arith.constant 0.000000e+00 : f32
    %217 = vector.shape_cast %6 : vector<1x256xi1> to vector<1x256xi1>
    %218 = vector.broadcast %217 : vector<1x256xi1> to vector<2x256xi1>
    %219 = vector.broadcast %cst_91 : f32 to vector<2x256xf32>
    %220 = arith.select %218, %216, %219 : vector<2x256xi1>, vector<2x256xf32>
    %221 = vector.extract_strided_slice %106 {offsets = [0, 3], sizes = [2, 1], strides = [1, 1]} : vector<2x49xf32> to vector<2x1xf32>
    %c0_92 = arith.constant 0 : index
    %c3 = arith.constant 3 : index
    %222 = vector.load %arg10[%c0_92, %c3] : memref<2x358xf32, #tpu.memory_space<vmem>>, vector<2x256xf32>
    %223 = vector.broadcast %221 : vector<2x1xf32> to vector<2x256xf32>
    %224 = arith.mulf %223, %222 : vector<2x256xf32>
    %225 = vector.extract_strided_slice %106 {offsets = [0, 10], sizes = [2, 1], strides = [1, 1]} : vector<2x49xf32> to vector<2x1xf32>
    %c0_93 = arith.constant 0 : index
    %c19 = arith.constant 19 : index
    %226 = vector.load %arg10[%c0_93, %c19] : memref<2x358xf32, #tpu.memory_space<vmem>>, vector<2x256xf32>
    %227 = vector.broadcast %225 : vector<2x1xf32> to vector<2x256xf32>
    %228 = arith.mulf %227, %226 : vector<2x256xf32>
    %229 = arith.addf %224, %228 : vector<2x256xf32>
    %230 = vector.extract_strided_slice %106 {offsets = [0, 17], sizes = [2, 1], strides = [1, 1]} : vector<2x49xf32> to vector<2x1xf32>
    %c0_94 = arith.constant 0 : index
    %c35 = arith.constant 35 : index
    %231 = vector.load %arg10[%c0_94, %c35] : memref<2x358xf32, #tpu.memory_space<vmem>>, vector<2x256xf32>
    %232 = vector.broadcast %230 : vector<2x1xf32> to vector<2x256xf32>
    %233 = arith.mulf %232, %231 : vector<2x256xf32>
    %234 = arith.addf %229, %233 : vector<2x256xf32>
    %235 = vector.extract_strided_slice %106 {offsets = [0, 24], sizes = [2, 1], strides = [1, 1]} : vector<2x49xf32> to vector<2x1xf32>
    %c0_95 = arith.constant 0 : index
    %c51_96 = arith.constant 51 : index
    %236 = vector.load %arg10[%c0_95, %c51_96] : memref<2x358xf32, #tpu.memory_space<vmem>>, vector<2x256xf32>
    %237 = vector.broadcast %235 : vector<2x1xf32> to vector<2x256xf32>
    %238 = arith.mulf %237, %236 : vector<2x256xf32>
    %239 = arith.addf %234, %238 : vector<2x256xf32>
    %240 = vector.extract_strided_slice %106 {offsets = [0, 31], sizes = [2, 1], strides = [1, 1]} : vector<2x49xf32> to vector<2x1xf32>
    %c0_97 = arith.constant 0 : index
    %c67 = arith.constant 67 : index
    %241 = vector.load %arg10[%c0_97, %c67] : memref<2x358xf32, #tpu.memory_space<vmem>>, vector<2x256xf32>
    %242 = vector.broadcast %240 : vector<2x1xf32> to vector<2x256xf32>
    %243 = arith.mulf %242, %241 : vector<2x256xf32>
    %244 = arith.addf %239, %243 : vector<2x256xf32>
    %245 = vector.extract_strided_slice %106 {offsets = [0, 38], sizes = [2, 1], strides = [1, 1]} : vector<2x49xf32> to vector<2x1xf32>
    %c0_98 = arith.constant 0 : index
    %c83 = arith.constant 83 : index
    %246 = vector.load %arg10[%c0_98, %c83] : memref<2x358xf32, #tpu.memory_space<vmem>>, vector<2x256xf32>
    %247 = vector.broadcast %245 : vector<2x1xf32> to vector<2x256xf32>
    %248 = arith.mulf %247, %246 : vector<2x256xf32>
    %249 = arith.addf %244, %248 : vector<2x256xf32>
    %250 = vector.extract_strided_slice %106 {offsets = [0, 45], sizes = [2, 1], strides = [1, 1]} : vector<2x49xf32> to vector<2x1xf32>
    %c0_99 = arith.constant 0 : index
    %c99 = arith.constant 99 : index
    %251 = vector.load %arg10[%c0_99, %c99] : memref<2x358xf32, #tpu.memory_space<vmem>>, vector<2x256xf32>
    %252 = vector.broadcast %250 : vector<2x1xf32> to vector<2x256xf32>
    %253 = arith.mulf %252, %251 : vector<2x256xf32>
    %254 = arith.addf %249, %253 : vector<2x256xf32>
    %255 = vector.extract_strided_slice %106 {offsets = [0, 4], sizes = [2, 1], strides = [1, 1]} : vector<2x49xf32> to vector<2x1xf32>
    %c0_100 = arith.constant 0 : index
    %c4 = arith.constant 4 : index
    %256 = vector.load %arg10[%c0_100, %c4] : memref<2x358xf32, #tpu.memory_space<vmem>>, vector<2x256xf32>
    %257 = vector.broadcast %255 : vector<2x1xf32> to vector<2x256xf32>
    %258 = arith.mulf %257, %256 : vector<2x256xf32>
    %259 = vector.extract_strided_slice %106 {offsets = [0, 11], sizes = [2, 1], strides = [1, 1]} : vector<2x49xf32> to vector<2x1xf32>
    %c0_101 = arith.constant 0 : index
    %c20 = arith.constant 20 : index
    %260 = vector.load %arg10[%c0_101, %c20] : memref<2x358xf32, #tpu.memory_space<vmem>>, vector<2x256xf32>
    %261 = vector.broadcast %259 : vector<2x1xf32> to vector<2x256xf32>
    %262 = arith.mulf %261, %260 : vector<2x256xf32>
    %263 = arith.addf %258, %262 : vector<2x256xf32>
    %264 = vector.extract_strided_slice %106 {offsets = [0, 18], sizes = [2, 1], strides = [1, 1]} : vector<2x49xf32> to vector<2x1xf32>
    %c0_102 = arith.constant 0 : index
    %c36 = arith.constant 36 : index
    %265 = vector.load %arg10[%c0_102, %c36] : memref<2x358xf32, #tpu.memory_space<vmem>>, vector<2x256xf32>
    %266 = vector.broadcast %264 : vector<2x1xf32> to vector<2x256xf32>
    %267 = arith.mulf %266, %265 : vector<2x256xf32>
    %268 = arith.addf %263, %267 : vector<2x256xf32>
    %269 = vector.extract_strided_slice %106 {offsets = [0, 25], sizes = [2, 1], strides = [1, 1]} : vector<2x49xf32> to vector<2x1xf32>
    %c0_103 = arith.constant 0 : index
    %c52 = arith.constant 52 : index
    %270 = vector.load %arg10[%c0_103, %c52] : memref<2x358xf32, #tpu.memory_space<vmem>>, vector<2x256xf32>
    %271 = vector.broadcast %269 : vector<2x1xf32> to vector<2x256xf32>
    %272 = arith.mulf %271, %270 : vector<2x256xf32>
    %273 = arith.addf %268, %272 : vector<2x256xf32>
    %274 = vector.extract_strided_slice %106 {offsets = [0, 32], sizes = [2, 1], strides = [1, 1]} : vector<2x49xf32> to vector<2x1xf32>
    %c0_104 = arith.constant 0 : index
    %c68 = arith.constant 68 : index
    %275 = vector.load %arg10[%c0_104, %c68] : memref<2x358xf32, #tpu.memory_space<vmem>>, vector<2x256xf32>
    %276 = vector.broadcast %274 : vector<2x1xf32> to vector<2x256xf32>
    %277 = arith.mulf %276, %275 : vector<2x256xf32>
    %278 = arith.addf %273, %277 : vector<2x256xf32>
    %279 = vector.extract_strided_slice %106 {offsets = [0, 39], sizes = [2, 1], strides = [1, 1]} : vector<2x49xf32> to vector<2x1xf32>
    %c0_105 = arith.constant 0 : index
    %c84 = arith.constant 84 : index
    %280 = vector.load %arg10[%c0_105, %c84] : memref<2x358xf32, #tpu.memory_space<vmem>>, vector<2x256xf32>
    %281 = vector.broadcast %279 : vector<2x1xf32> to vector<2x256xf32>
    %282 = arith.mulf %281, %280 : vector<2x256xf32>
    %283 = arith.addf %278, %282 : vector<2x256xf32>
    %284 = vector.extract_strided_slice %106 {offsets = [0, 46], sizes = [2, 1], strides = [1, 1]} : vector<2x49xf32> to vector<2x1xf32>
    %c0_106 = arith.constant 0 : index
    %c100 = arith.constant 100 : index
    %285 = vector.load %arg10[%c0_106, %c100] : memref<2x358xf32, #tpu.memory_space<vmem>>, vector<2x256xf32>
    %286 = vector.broadcast %284 : vector<2x1xf32> to vector<2x256xf32>
    %287 = arith.mulf %286, %285 : vector<2x256xf32>
    %288 = arith.addf %283, %287 : vector<2x256xf32>
    %cst_107 = arith.constant 0.000000e+00 : f32
    %289 = vector.shape_cast %4 : vector<1x256xi1> to vector<1x256xi1>
    %290 = vector.broadcast %289 : vector<1x256xi1> to vector<2x256xi1>
    %291 = vector.broadcast %cst_107 : f32 to vector<2x256xf32>
    %292 = arith.select %290, %288, %291 : vector<2x256xi1>, vector<2x256xf32>
    %293 = vector.extract_strided_slice %106 {offsets = [0, 5], sizes = [2, 1], strides = [1, 1]} : vector<2x49xf32> to vector<2x1xf32>
    %c0_108 = arith.constant 0 : index
    %c5 = arith.constant 5 : index
    %294 = vector.load %arg10[%c0_108, %c5] : memref<2x358xf32, #tpu.memory_space<vmem>>, vector<2x256xf32>
    %295 = vector.broadcast %293 : vector<2x1xf32> to vector<2x256xf32>
    %296 = arith.mulf %295, %294 : vector<2x256xf32>
    %297 = vector.extract_strided_slice %106 {offsets = [0, 12], sizes = [2, 1], strides = [1, 1]} : vector<2x49xf32> to vector<2x1xf32>
    %c0_109 = arith.constant 0 : index
    %c21 = arith.constant 21 : index
    %298 = vector.load %arg10[%c0_109, %c21] : memref<2x358xf32, #tpu.memory_space<vmem>>, vector<2x256xf32>
    %299 = vector.broadcast %297 : vector<2x1xf32> to vector<2x256xf32>
    %300 = arith.mulf %299, %298 : vector<2x256xf32>
    %301 = arith.addf %296, %300 : vector<2x256xf32>
    %302 = vector.extract_strided_slice %106 {offsets = [0, 19], sizes = [2, 1], strides = [1, 1]} : vector<2x49xf32> to vector<2x1xf32>
    %c0_110 = arith.constant 0 : index
    %c37 = arith.constant 37 : index
    %303 = vector.load %arg10[%c0_110, %c37] : memref<2x358xf32, #tpu.memory_space<vmem>>, vector<2x256xf32>
    %304 = vector.broadcast %302 : vector<2x1xf32> to vector<2x256xf32>
    %305 = arith.mulf %304, %303 : vector<2x256xf32>
    %306 = arith.addf %301, %305 : vector<2x256xf32>
    %307 = vector.extract_strided_slice %106 {offsets = [0, 26], sizes = [2, 1], strides = [1, 1]} : vector<2x49xf32> to vector<2x1xf32>
    %c0_111 = arith.constant 0 : index
    %c53 = arith.constant 53 : index
    %308 = vector.load %arg10[%c0_111, %c53] : memref<2x358xf32, #tpu.memory_space<vmem>>, vector<2x256xf32>
    %309 = vector.broadcast %307 : vector<2x1xf32> to vector<2x256xf32>
    %310 = arith.mulf %309, %308 : vector<2x256xf32>
    %311 = arith.addf %306, %310 : vector<2x256xf32>
    %312 = vector.extract_strided_slice %106 {offsets = [0, 33], sizes = [2, 1], strides = [1, 1]} : vector<2x49xf32> to vector<2x1xf32>
    %c0_112 = arith.constant 0 : index
    %c69 = arith.constant 69 : index
    %313 = vector.load %arg10[%c0_112, %c69] : memref<2x358xf32, #tpu.memory_space<vmem>>, vector<2x256xf32>
    %314 = vector.broadcast %312 : vector<2x1xf32> to vector<2x256xf32>
    %315 = arith.mulf %314, %313 : vector<2x256xf32>
    %316 = arith.addf %311, %315 : vector<2x256xf32>
    %317 = vector.extract_strided_slice %106 {offsets = [0, 40], sizes = [2, 1], strides = [1, 1]} : vector<2x49xf32> to vector<2x1xf32>
    %c0_113 = arith.constant 0 : index
    %c85 = arith.constant 85 : index
    %318 = vector.load %arg10[%c0_113, %c85] : memref<2x358xf32, #tpu.memory_space<vmem>>, vector<2x256xf32>
    %319 = vector.broadcast %317 : vector<2x1xf32> to vector<2x256xf32>
    %320 = arith.mulf %319, %318 : vector<2x256xf32>
    %321 = arith.addf %316, %320 : vector<2x256xf32>
    %322 = vector.extract_strided_slice %106 {offsets = [0, 47], sizes = [2, 1], strides = [1, 1]} : vector<2x49xf32> to vector<2x1xf32>
    %c0_114 = arith.constant 0 : index
    %c101 = arith.constant 101 : index
    %323 = vector.load %arg10[%c0_114, %c101] : memref<2x358xf32, #tpu.memory_space<vmem>>, vector<2x256xf32>
    %324 = vector.broadcast %322 : vector<2x1xf32> to vector<2x256xf32>
    %325 = arith.mulf %324, %323 : vector<2x256xf32>
    %326 = arith.addf %321, %325 : vector<2x256xf32>
    %cst_115 = arith.constant 0.000000e+00 : f32
    %327 = vector.shape_cast %8 : vector<1x256xi1> to vector<1x256xi1>
    %328 = vector.broadcast %327 : vector<1x256xi1> to vector<2x256xi1>
    %329 = vector.broadcast %cst_115 : f32 to vector<2x256xf32>
    %330 = arith.select %328, %326, %329 : vector<2x256xi1>, vector<2x256xf32>
    %331 = vector.extract_strided_slice %106 {offsets = [0, 6], sizes = [2, 1], strides = [1, 1]} : vector<2x49xf32> to vector<2x1xf32>
    %c0_116 = arith.constant 0 : index
    %c6 = arith.constant 6 : index
    %332 = vector.load %arg10[%c0_116, %c6] : memref<2x358xf32, #tpu.memory_space<vmem>>, vector<2x256xf32>
    %333 = vector.broadcast %331 : vector<2x1xf32> to vector<2x256xf32>
    %334 = arith.mulf %333, %332 : vector<2x256xf32>
    %335 = vector.extract_strided_slice %106 {offsets = [0, 13], sizes = [2, 1], strides = [1, 1]} : vector<2x49xf32> to vector<2x1xf32>
    %c0_117 = arith.constant 0 : index
    %c22 = arith.constant 22 : index
    %336 = vector.load %arg10[%c0_117, %c22] : memref<2x358xf32, #tpu.memory_space<vmem>>, vector<2x256xf32>
    %337 = vector.broadcast %335 : vector<2x1xf32> to vector<2x256xf32>
    %338 = arith.mulf %337, %336 : vector<2x256xf32>
    %339 = arith.addf %334, %338 : vector<2x256xf32>
    %340 = vector.extract_strided_slice %106 {offsets = [0, 20], sizes = [2, 1], strides = [1, 1]} : vector<2x49xf32> to vector<2x1xf32>
    %c0_118 = arith.constant 0 : index
    %c38 = arith.constant 38 : index
    %341 = vector.load %arg10[%c0_118, %c38] : memref<2x358xf32, #tpu.memory_space<vmem>>, vector<2x256xf32>
    %342 = vector.broadcast %340 : vector<2x1xf32> to vector<2x256xf32>
    %343 = arith.mulf %342, %341 : vector<2x256xf32>
    %344 = arith.addf %339, %343 : vector<2x256xf32>
    %345 = vector.extract_strided_slice %106 {offsets = [0, 27], sizes = [2, 1], strides = [1, 1]} : vector<2x49xf32> to vector<2x1xf32>
    %c0_119 = arith.constant 0 : index
    %c54 = arith.constant 54 : index
    %346 = vector.load %arg10[%c0_119, %c54] : memref<2x358xf32, #tpu.memory_space<vmem>>, vector<2x256xf32>
    %347 = vector.broadcast %345 : vector<2x1xf32> to vector<2x256xf32>
    %348 = arith.mulf %347, %346 : vector<2x256xf32>
    %349 = arith.addf %344, %348 : vector<2x256xf32>
    %350 = vector.extract_strided_slice %106 {offsets = [0, 34], sizes = [2, 1], strides = [1, 1]} : vector<2x49xf32> to vector<2x1xf32>
    %c0_120 = arith.constant 0 : index
    %c70 = arith.constant 70 : index
    %351 = vector.load %arg10[%c0_120, %c70] : memref<2x358xf32, #tpu.memory_space<vmem>>, vector<2x256xf32>
    %352 = vector.broadcast %350 : vector<2x1xf32> to vector<2x256xf32>
    %353 = arith.mulf %352, %351 : vector<2x256xf32>
    %354 = arith.addf %349, %353 : vector<2x256xf32>
    %355 = vector.extract_strided_slice %106 {offsets = [0, 41], sizes = [2, 1], strides = [1, 1]} : vector<2x49xf32> to vector<2x1xf32>
    %c0_121 = arith.constant 0 : index
    %c86 = arith.constant 86 : index
    %356 = vector.load %arg10[%c0_121, %c86] : memref<2x358xf32, #tpu.memory_space<vmem>>, vector<2x256xf32>
    %357 = vector.broadcast %355 : vector<2x1xf32> to vector<2x256xf32>
    %358 = arith.mulf %357, %356 : vector<2x256xf32>
    %359 = arith.addf %354, %358 : vector<2x256xf32>
    %360 = vector.extract_strided_slice %106 {offsets = [0, 48], sizes = [2, 1], strides = [1, 1]} : vector<2x49xf32> to vector<2x1xf32>
    %c0_122 = arith.constant 0 : index
    %c102 = arith.constant 102 : index
    %361 = vector.load %arg10[%c0_122, %c102] : memref<2x358xf32, #tpu.memory_space<vmem>>, vector<2x256xf32>
    %362 = vector.broadcast %360 : vector<2x1xf32> to vector<2x256xf32>
    %363 = arith.mulf %362, %361 : vector<2x256xf32>
    %364 = arith.addf %359, %363 : vector<2x256xf32>
    %cst_123 = arith.constant 0.000000e+00 : f32
    %365 = vector.shape_cast %12 : vector<1x256xi1> to vector<1x256xi1>
    %366 = vector.broadcast %365 : vector<1x256xi1> to vector<2x256xi1>
    %367 = vector.broadcast %cst_123 : f32 to vector<2x256xf32>
    %368 = arith.select %366, %364, %367 : vector<2x256xi1>, vector<2x256xf32>
    %369 = arith.addf %144, %182 : vector<2x256xf32>
    %370 = arith.addf %220, %254 : vector<2x256xf32>
    %371 = arith.addf %292, %330 : vector<2x256xf32>
    %372 = arith.addf %369, %370 : vector<2x256xf32>
    %373 = arith.addf %371, %368 : vector<2x256xf32>
    %374 = arith.addf %372, %373 : vector<2x256xf32>
    %375 = vector.extract_strided_slice %374 {offsets = [0, 0], sizes = [1, 256], strides = [1, 1]} : vector<2x256xf32> to vector<1x256xf32>
    %376 = vector.extract_strided_slice %374 {offsets = [1, 0], sizes = [1, 256], strides = [1, 1]} : vector<2x256xf32> to vector<1x256xf32>
    %377 = arith.addf %375, %376 : vector<1x256xf32>
    %378 = arith.negf %377 : vector<1x256xf32>
    %379 = math.exp %378 : vector<1x256xf32>
    %cst_124 = arith.constant 1.000000e+00 : f32
    %380 = vector.broadcast %cst_124 : f32 to vector<1x256xf32>
    %381 = arith.addf %380, %379 : vector<1x256xf32>
    %382 = arith.divf %380, %381 : vector<1x256xf32>
    %c0_125 = arith.constant 0 : index
    %c0_126 = arith.constant 0 : index
    %c0_127 = arith.constant 0 : index
    %383 = vector.load %arg1[%c0_125, %c0_126, %c0_127] : memref<1x32x256xf32, #tpu.memory_space<vmem>>, vector<1x32x256xf32>
    %384 = vector.shape_cast %383 : vector<1x32x256xf32> to vector<32x256xf32>
    %385 = vector.broadcast %93 : vector<32x1xf32> to vector<32x256xf32>
    %386 = arith.mulf %384, %385 : vector<32x256xf32>
    %387 = vector.broadcast %382 : vector<1x256xf32> to vector<32x256xf32>
    %388 = arith.mulf %386, %387 : vector<32x256xf32>
    %c0_128 = arith.constant 0 : index
    %c0_129 = arith.constant 0 : index
    %c0_130 = arith.constant 0 : index
    %389 = vector.load %arg8[%c0_128, %c0_129, %c0_130] : memref<1x32x256xf32, #tpu.memory_space<vmem>>, vector<1x32x256xf32>
    %390 = vector.shape_cast %389 : vector<1x32x256xf32> to vector<32x256xf32>
    %391 = vector.shape_cast %388 : vector<32x256xf32> to vector<1x32x256xf32>
    tpu.vector_store %arg8[%c0_128, %c0_129, %c0_130], %391 {strides = array<i32>} : memref<1x32x256xf32, #tpu.memory_space<vmem>>, vector<1x32x256xf32>,
    return
  }
  func.func @transform_0(%arg0: i32) -> (i32, i32, i32) {
    %c0_i32 = arith.constant 0 : i32
    %c0_i32_0 = arith.constant 0 : i32
    %c0_i32_1 = arith.constant 0 : i32
    return %arg0, %c0_i32, %c0_i32_0 : i32, i32, i32
  }
  func.func @transform_1(%arg0: i32) -> (i32, i32, i32) {
    %c0_i32 = arith.constant 0 : i32
    %c0_i32_0 = arith.constant 0 : i32
    %c0_i32_1 = arith.constant 0 : i32
    return %arg0, %c0_i32, %c0_i32_0 : i32, i32, i32
  }
  func.func @transform_2(%arg0: i32) -> (i32, i32) {
    %c0_i32 = arith.constant 0 : i32
    %c0_i32_0 = arith.constant 0 : i32
    %c0_i32_1 = arith.constant 0 : i32
    return %c0_i32, %c0_i32_0 : i32, i32
  }
  func.func @transform_3(%arg0: i32) -> (i32, i32) {
    %c0_i32 = arith.constant 0 : i32
    %c0_i32_0 = arith.constant 0 : i32
    %c0_i32_1 = arith.constant 0 : i32
    return %c0_i32, %c0_i32_0 : i32, i32
  }
  func.func @transform_4(%arg0: i32) -> (i32, i32) {
    %c0_i32 = arith.constant 0 : i32
    %c0_i32_0 = arith.constant 0 : i32
    %c0_i32_1 = arith.constant 0 : i32
    return %c0_i32, %c0_i32_0 : i32, i32
  }
  func.func @transform_5(%arg0: i32) -> (i32, i32) {
    %c0_i32 = arith.constant 0 : i32
    %c0_i32_0 = arith.constant 0 : i32
    %c0_i32_1 = arith.constant 0 : i32
    return %c0_i32, %c0_i32_0 : i32, i32
  }
  func.func @transform_6(%arg0: i32) -> (i32, i32) {
    %c0_i32 = arith.constant 0 : i32
    %c0_i32_0 = arith.constant 0 : i32
    %c0_i32_1 = arith.constant 0 : i32
    return %c0_i32, %c0_i32_0 : i32, i32
  }
  func.func @transform_7(%arg0: i32) -> (i32, i32, i32) {
    %c0_i32 = arith.constant 0 : i32
    %c0_i32_0 = arith.constant 0 : i32
    %c0_i32_1 = arith.constant 0 : i32
    return %arg0, %c0_i32, %c0_i32_0 : i32, i32, i32
  }
}

</mosaic_0001>

<llo_original>
// kernel: tpu_custom_call.1
$region0: #{tpu_custom_call.1}
  #allocation0 [shape = 'u32[]', space=smem, size = 0x4, offset = 0x4, fixed_abs, tag = 'smem constant byte address 0x4 - core index']
  #allocation1 [shape = 'u32[144,128]{1,0:T(1,128)}', space=vmem, size = 0x12000, scoped, tag = 'internal scratch']
  #allocation2 [shape = 'f32[64,290]{1,0:T(8,128)}', space=vmem, size = 0x18000, scoped, tag = 'scratch operand']
  #allocation3 [shape = 'f32[2,358]{1,0:T(2,128)}', space=vmem, size = 0xc00, scoped, tag = 'scratch operand']
  %s0 = inlined_call_operand.hbm [shape: f32[2,32,256], index: 0, kind: input, shape index: {}]
  %s1 = inlined_call_operand.hbm [shape: f32[2,32,256], index: 1, kind: input, shape index: {}]
  %s2 = inlined_call_operand.hbm [shape: bf16[32,576], index: 2, kind: input, shape index: {}]
  %s3 = inlined_call_operand.vmem [shape: f32[32,1], index: 3, kind: input, shape index: {}]
  %s4 = inlined_call_operand.vmem [shape: f32[2,32], index: 4, kind: input, shape index: {}]
  %s5 = inlined_call_operand.vmem [shape: f32[32,2], index: 5, kind: input, shape index: {}]
  %s6 = inlined_call_operand.vmem [shape: f32[2,49], index: 6, kind: input, shape index: {}]
  %s7 = inlined_call_operand.hbm [shape: f32[2,32,256], index: 7, kind: output, shape index: {}]
  %s8 = sld [smem:[#allocation0]]
  $region73: #{tpu_custom_call.1} parent=0
    _
  %s10 = ssub.s32 1, %s8
  %s11 = scalar_select 0, %s10, %s8
  $region1: #{tpu_custom_call.1} parent=0
    #allocation4 [shape = 'u8[65536]{0}', space=vmem, size = 0x10000, scoped, tag = 'input window, operand 0']
    #allocation5 [shape = 's32[2]{0}', space=sflag, size = 0x8, scoped, tag = 'scoped memory for tpu_custom_call.1']
    #allocation6 [shape = 's32[2]{0}', space=sflag, size = 0x8, scoped, tag = 'scoped memory for tpu_custom_call.1']
    #allocation7 [shape = 'u8[65536]{0}', space=vmem, size = 0x10000, scoped, tag = 'input window, operand 1']
    #allocation8 [shape = 's32[2]{0}', space=sflag, size = 0x8, scoped, tag = 'scoped memory for tpu_custom_call.1']
    #allocation9 [shape = 'u8[40960]{0}', space=vmem, size = 0xa000, scoped, tag = 'input window, operand 2, single buffered']
    #allocation10 [shape = 'u8[65536]{0}', space=vmem, size = 0x10000, scoped, tag = 'output window, operand 0']
    %12 = vsyncpa [#allocation5], 0
    %s13 = scalar_lea.sflag [#allocation5], 1
    %14 = vsyncpa %s13, 0
    %15 = vsyncpa [#allocation8], 0
    %s16 = scalar_lea.sflag [#allocation8], 1
    %17 = vsyncpa %s16, 0
    %18 = vsyncpa [#allocation6], 0
    %s19 = scalar_lea.sflag [#allocation6], 1
    %20 = vsyncpa %s19, 0
    loop: start=0, step=1, limit=4
    $region2: #{tpu_custom_call.1} parent=1 // loop_pre_header
      _
    $region3: #{tpu_custom_call.1} parent=1 // loop_header
      %s22 = sphi 0, %s26
      %p23 = scmp.ge.s32.totalorder %s22, 4
      %s32 = sphi 0, %s34
      %s35 = sphi 0, %s32
      %s36 = sphi 0, %s35
      %s52 = sphi 0, %s36
      %s58 = sphi 0, %s60
      %s61 = sphi 0, %s58
      %s62 = sphi 0, %s61
      %s78 = sphi 0, %s62
      %s82 = sphi 0, %s82
      %s84 = sphi 0, %s82
      %s85 = sphi 0, %s84
      %s99 = sphi 0, %s85
      %s103 = sphi 0, %s103
      %s105 = sphi 0, %s103
      %s106 = sphi 0, %s105
      %s120 = sphi 0, %s106
      %s124 = sphi 0, %s124
      %s126 = sphi 0, %s124
      %s127 = sphi 0, %s126
      %s141 = sphi 0, %s127
      %s145 = sphi 0, %s145
      %s147 = sphi 0, %s145
      %s148 = sphi 0, %s147
      %s162 = sphi 0, %s148
      %s166 = sphi 0, %s166
      %s168 = sphi 0, %s166
      %s169 = sphi 0, %s168
      %s183 = sphi 0, %s169
      %s189 = sphi 0, %s191
      %s192 = sphi 0, %s189
      %s193 = sphi 0, %s192
      %s209 = sphi 0, %s193
    $region4: #{tpu_custom_call.1} parent=1 // loop_header_branch
      %25 = sbr.rel (%p23) target = $region8
    $region5: #{tpu_custom_call.1} parent=1 // loop_body
      %s27 = ssub.s32 %s22, 1
      %s28 = ssub.s32 %s22, 2
      %s29 = sadd.s32 %s22, 1
      %s30 = ssub.s32 %s22, %s29
      %p31 = scmp.eq.s32.totalorder %s30, 0
      %s33 = sadd.s32 %s32, 1
      %s34 = scalar_select %p31, %s32, %s33
      %p37 = pneg %p31
      %p38 = scmp.eq.s32.totalorder %s22, 1
      %p39 = por %p37, %p38
      %p40 = scmp.ne.s32.totalorder %s32, %s35
      %p41 = scmp.eq.s32.totalorder %s22, 0
      %p42 = por %p40, %p41
      %p43 = scmp.ne.s32.totalorder %s32, %s35
      %p44 = scmp.eq.s32.totalorder %s27, 1
      %p45 = por %p43, %p44
      %p46 = scmp.ne.s32.totalorder %s35, %s36
      %p47 = scmp.eq.s32.totalorder %s27, 0
      %p48 = por %p46, %p47
      %p49 = scmp.ne.s32.totalorder %s35, %s36
      %p50 = scmp.eq.s32.totalorder %s28, 1
      %p51 = por %p49, %p50
      %p53 = scmp.ne.s32.totalorder %s36, %s52
      %p54 = scmp.eq.s32.totalorder %s28, 0
      %p55 = por %p53, %p54
      %s56 = ssub.s32 %s22, %s29
      %p57 = scmp.eq.s32.totalorder %s56, 0
      %s59 = sadd.s32 %s58, 1
      %s60 = scalar_select %p57, %s58, %s59
      %p63 = pneg %p57
      %p64 = scmp.eq.s32.totalorder %s22, 1
      %p65 = por %p63, %p64
      %p66 = scmp.ne.s32.totalorder %s58, %s61
      %p67 = scmp.eq.s32.totalorder %s22, 0
      %p68 = por %p66, %p67
      %p69 = scmp.ne.s32.totalorder %s58, %s61
      %p70 = scmp.eq.s32.totalorder %s27, 1
      %p71 = por %p69, %p70
      %p72 = scmp.ne.s32.totalorder %s61, %s62
      %p73 = scmp.eq.s32.totalorder %s27, 0
      %p74 = por %p72, %p73
      %p75 = scmp.ne.s32.totalorder %s61, %s62
      %p76 = scmp.eq.s32.totalorder %s28, 1
      %p77 = por %p75, %p76
      %p79 = scmp.ne.s32.totalorder %s62, %s78
      %p80 = scmp.eq.s32.totalorder %s28, 0
      %p81 = por %p79, %p80
      %s83 = sadd.s32 %s82, 1
      %p86 = scmp.eq.s32.totalorder %s22, 1
      %p87 = scmp.ne.s32.totalorder %s82, %s84
      %p88 = scmp.eq.s32.totalorder %s22, 0
      %p89 = por %p87, %p88
      %p90 = scmp.ne.s32.totalorder %s82, %s84
      %p91 = scmp.eq.s32.totalorder %s27, 1
      %p92 = por %p90, %p91
      %p93 = scmp.ne.s32.totalorder %s84, %s85
      %p94 = scmp.eq.s32.totalorder %s27, 0
      %p95 = por %p93, %p94
      %p96 = scmp.ne.s32.totalorder %s84, %s85
      %p97 = scmp.eq.s32.totalorder %s28, 1
      %p98 = por %p96, %p97
      %p100 = scmp.ne.s32.totalorder %s85, %s99
      %p101 = scmp.eq.s32.totalorder %s28, 0
      %p102 = por %p100, %p101
      %s104 = sadd.s32 %s103, 1
      %p107 = scmp.eq.s32.totalorder %s22, 1
      %p108 = scmp.ne.s32.totalorder %s103, %s105
      %p109 = scmp.eq.s32.totalorder %s22, 0
      %p110 = por %p108, %p109
      %p111 = scmp.ne.s32.totalorder %s103, %s105
      %p112 = scmp.eq.s32.totalorder %s27, 1
      %p113 = por %p111, %p112
      %p114 = scmp.ne.s32.totalorder %s105, %s106
      %p115 = scmp.eq.s32.totalorder %s27, 0
      %p116 = por %p114, %p115
      %p117 = scmp.ne.s32.totalorder %s105, %s106
      %p118 = scmp.eq.s32.totalorder %s28, 1
      %p119 = por %p117, %p118
      %p121 = scmp.ne.s32.totalorder %s106, %s120
      %p122 = scmp.eq.s32.totalorder %s28, 0
      %p123 = por %p121, %p122
      %s125 = sadd.s32 %s124, 1
      %p128 = scmp.eq.s32.totalorder %s22, 1
      %p129 = scmp.ne.s32.totalorder %s124, %s126
      %p130 = scmp.eq.s32.totalorder %s22, 0
      %p131 = por %p129, %p130
      %p132 = scmp.ne.s32.totalorder %s124, %s126
      %p133 = scmp.eq.s32.totalorder %s27, 1
      %p134 = por %p132, %p133
      %p135 = scmp.ne.s32.totalorder %s126, %s127
      %p136 = scmp.eq.s32.totalorder %s27, 0
      %p137 = por %p135, %p136
      %p138 = scmp.ne.s32.totalorder %s126, %s127
      %p139 = scmp.eq.s32.totalorder %s28, 1
      %p140 = por %p138, %p139
      %p142 = scmp.ne.s32.totalorder %s127, %s141
      %p143 = scmp.eq.s32.totalorder %s28, 0
      %p144 = por %p142, %p143
      %s146 = sadd.s32 %s145, 1
      %p149 = scmp.eq.s32.totalorder %s22, 1
      %p150 = scmp.ne.s32.totalorder %s145, %s147
      %p151 = scmp.eq.s32.totalorder %s22, 0
      %p152 = por %p150, %p151
      %p153 = scmp.ne.s32.totalorder %s145, %s147
      %p154 = scmp.eq.s32.totalorder %s27, 1
      %p155 = por %p153, %p154
      %p156 = scmp.ne.s32.totalorder %s147, %s148
      %p157 = scmp.eq.s32.totalorder %s27, 0
      %p158 = por %p156, %p157
      %p159 = scmp.ne.s32.totalorder %s147, %s148
      %p160 = scmp.eq.s32.totalorder %s28, 1
      %p161 = por %p159, %p160
      %p163 = scmp.ne.s32.totalorder %s148, %s162
      %p164 = scmp.eq.s32.totalorder %s28, 0
      %p165 = por %p163, %p164
      %s167 = sadd.s32 %s166, 1
      %p170 = scmp.eq.s32.totalorder %s22, 1
      %p171 = scmp.ne.s32.totalorder %s166, %s168
      %p172 = scmp.eq.s32.totalorder %s22, 0
      %p173 = por %p171, %p172
      %p174 = scmp.ne.s32.totalorder %s166, %s168
      %p175 = scmp.eq.s32.totalorder %s27, 1
      %p176 = por %p174, %p175
      %p177 = scmp.ne.s32.totalorder %s168, %s169
      %p178 = scmp.eq.s32.totalorder %s27, 0
      %p179 = por %p177, %p178
      %p180 = scmp.ne.s32.totalorder %s168, %s169
      %p181 = scmp.eq.s32.totalorder %s28, 1
      %p182 = por %p180, %p181
      %p184 = scmp.ne.s32.totalorder %s169, %s183
      %p185 = scmp.eq.s32.totalorder %s28, 0
      %p186 = por %p184, %p185
      %s187 = ssub.s32 %s22, %s29
      %p188 = scmp.eq.s32.totalorder %s187, 0
      %s190 = sadd.s32 %s189, 1
      %s191 = scalar_select %p188, %s189, %s190
      %p194 = pneg %p188
      %p195 = scmp.eq.s32.totalorder %s22, 1
      %p196 = por %p194, %p195
      %p197 = scmp.ne.s32.totalorder %s189, %s192
      %p198 = scmp.eq.s32.totalorder %s22, 0
      %p199 = por %p197, %p198
      %p200 = scmp.ne.s32.totalorder %s189, %s192
      %p201 = scmp.eq.s32.totalorder %s27, 1
      %p202 = por %p200, %p201
      %p203 = scmp.ne.s32.totalorder %s192, %s193
      %p204 = scmp.eq.s32.totalorder %s27, 0
      %p205 = por %p203, %p204
      %p206 = scmp.ne.s32.totalorder %s192, %s193
      %p207 = scmp.eq.s32.totalorder %s28, 1
      %p208 = por %p206, %p207
      %p210 = scmp.ne.s32.totalorder %s193, %s209
      %p211 = scmp.eq.s32.totalorder %s28, 0
      %p212 = por %p210, %p211
      %p213 = scmp.le.s32.totalorder 1, %s22
      %p214 = scmp.lt.s32.totalorder %s22, 3
      %p215 = pnand %p213, %p214
      %p216 = pneg %p215
      // Predicated region
      $region9: #{tpu_custom_call.1} parent=5 // pred_check
        _
      $region10: #{tpu_custom_call.1} parent=5 // pred_check_branch
        %218 = sbr.rel (%p215) target = $region12
      $region11: #{tpu_custom_call.1} parent=5 // pred_region
        %s219 = ssub.s32 %s22, 1
        // Predicated region
        $region13: #{tpu_custom_call.1} parent=11 // pred_check
          %p220 = pneg %p95
        $region14: #{tpu_custom_call.1} parent=11 // pred_check_branch
          %222 = sbr.rel (%p220) target = $region16
        $region15: #{tpu_custom_call.1} parent=11 // pred_region
          %s224 = ssub.s32 1280, 1280
          %225 = vsyncadd [#allocation8], %s224
          %s226 = sshll.u32 [#allocation9], 4
          %s227 = int_to_ptr.vmem [resolvable:$true] %s226
          %232 = dma.hbm_to_vmem [thread:$0]  %s2, 1280, %s227, [#allocation8], 320, 320, 20
        $region16: #{tpu_custom_call.1} parent=11 // pred_fallthru
          _
        // Predicated region
        $region17: #{tpu_custom_call.1} parent=11 // pred_check
          %p233 = pneg %p116
        $region18: #{tpu_custom_call.1} parent=11 // pred_check_branch
          %235 = sbr.rel (%p233) target = $region20
        $region19: #{tpu_custom_call.1} parent=11 // pred_region
          _
        $region20: #{tpu_custom_call.1} parent=11 // pred_fallthru
          _
        // Predicated region
        $region21: #{tpu_custom_call.1} parent=11 // pred_check
          %p236 = pneg %p137
        $region22: #{tpu_custom_call.1} parent=11 // pred_check_branch
          %238 = sbr.rel (%p236) target = $region24
        $region23: #{tpu_custom_call.1} parent=11 // pred_region
          _
        $region24: #{tpu_custom_call.1} parent=11 // pred_fallthru
          _
        // Predicated region
        $region25: #{tpu_custom_call.1} parent=11 // pred_check
          %p239 = pneg %p158
        $region26: #{tpu_custom_call.1} parent=11 // pred_check_branch
          %241 = sbr.rel (%p239) target = $region28
        $region27: #{tpu_custom_call.1} parent=11 // pred_region
          _
        $region28: #{tpu_custom_call.1} parent=11 // pred_fallthru
          _
        // Predicated region
        $region29: #{tpu_custom_call.1} parent=11 // pred_check
          %p242 = pneg %p179
        $region30: #{tpu_custom_call.1} parent=11 // pred_check_branch
          %244 = sbr.rel (%p242) target = $region32
        $region31: #{tpu_custom_call.1} parent=11 // pred_region
          _
        $region32: #{tpu_custom_call.1} parent=11 // pred_fallthru
          _
      $region12: #{tpu_custom_call.1} parent=5 // pred_fallthru
        _
      %p245 = scmp.lt.s32.totalorder %s22, 2
      // Predicated region
      $region33: #{tpu_custom_call.1} parent=5 // pred_check
        %p246 = pneg %p245
      $region34: #{tpu_custom_call.1} parent=5 // pred_check_branch
        %248 = sbr.rel (%p246) target = $region36
      $region35: #{tpu_custom_call.1} parent=5 // pred_region
        // Predicated region
        $region37: #{tpu_custom_call.1} parent=35 // pred_check
          %p249 = pneg %p42
        $region38: #{tpu_custom_call.1} parent=35 // pred_check_branch
          %251 = sbr.rel (%p249) target = $region40
        $region39: #{tpu_custom_call.1} parent=35 // pred_region
          %s252 = sand.u32 %s32, 1
          %s253 = scalar_lea.sflag [#allocation5], %s252
          %s254 = sand.u32 %s32, 1
          %s255 = smul.addr %s254, 64
          %s256 = scalar_lea.vmem [#allocation4], %s255
          %s258 = ssub.s32 1024, 1024
          %259 = vsyncadd %s253, %s258
          %s260 = smul.addr %s22, 8
          %s261 = smul.addr %s260, 128
          %s262 = scalar_lea.hbm %s0, %s261
          %s263 = sshll.u32 %s256, 4
          %s264 = int_to_ptr.vmem [resolvable:$true] %s263
          %269 = dma.hbm_to_vmem [thread:$0]  %s262, 1024, %s264, %s253, 256, 256, 16
        $region40: #{tpu_custom_call.1} parent=35 // pred_fallthru
          _
        // Predicated region
        $region41: #{tpu_custom_call.1} parent=35 // pred_check
          %p270 = pneg %p68
        $region42: #{tpu_custom_call.1} parent=35 // pred_check_branch
          %272 = sbr.rel (%p270) target = $region44
        $region43: #{tpu_custom_call.1} parent=35 // pred_region
          %s273 = sand.u32 %s22, 1
          %s274 = scalar_lea.sflag [#allocation8], %s273
          %s275 = sand.u32 %s58, 1
          %s276 = smul.addr %s275, 64
          %s277 = scalar_lea.vmem [#allocation7], %s276
          %s279 = ssub.s32 1024, 1024
          %280 = vsyncadd %s274, %s279
          %s281 = smul.addr %s22, 8
          %s282 = smul.addr %s281, 128
          %s283 = scalar_lea.hbm %s1, %s282
          %s284 = sshll.u32 %s277, 4
          %s285 = int_to_ptr.vmem [resolvable:$true] %s284
          %290 = dma.hbm_to_vmem [thread:$0]  %s283, 1024, %s285, %s274, 256, 256, 16
        $region44: #{tpu_custom_call.1} parent=35 // pred_fallthru
          _
      $region36: #{tpu_custom_call.1} parent=5 // pred_fallthru
        _
      %p291 = scmp.le.s32.totalorder 1, %s22
      %p292 = scmp.lt.s32.totalorder %s22, 3
      %p293 = pnand %p291, %p292
      %p294 = pneg %p293
      // Predicated region
      $region45: #{tpu_custom_call.1} parent=5 // pred_check
        _
      $region46: #{tpu_custom_call.1} parent=5 // pred_check_branch
        %296 = sbr.rel (%p293) target = $region48
      $region47: #{tpu_custom_call.1} parent=5 // pred_region
        %s297 = ssub.s32 %s22, 1
        %s298 = sand.u32 %s35, 1
        %s299 = scalar_lea.sflag [#allocation5], %s298
        %s300 = sand.u32 %s35, 1
        %s301 = smul.addr %s300, 64
        %s302 = scalar_lea.vmem [#allocation4], %s301
        // Predicated region
        $region49: #{tpu_custom_call.1} parent=47 // pred_check
          %p303 = pneg %p48
        $region50: #{tpu_custom_call.1} parent=47 // pred_check_branch
          %305 = sbr.rel (%p303) target = $region52
        $region51: #{tpu_custom_call.1} parent=47 // pred_region
          %306 = dma.done %s299, 1024
        $region52: #{tpu_custom_call.1} parent=47 // pred_fallthru
          _
        %s307 = sand.u32 %s27, 1
        %s308 = scalar_lea.sflag [#allocation8], %s307
        %s309 = sand.u32 %s61, 1
        %s310 = smul.addr %s309, 64
        %s311 = scalar_lea.vmem [#allocation7], %s310
        // Predicated region
        $region53: #{tpu_custom_call.1} parent=47 // pred_check
          %p312 = pneg %p74
        $region54: #{tpu_custom_call.1} parent=47 // pred_check_branch
          %314 = sbr.rel (%p312) target = $region56
        $region55: #{tpu_custom_call.1} parent=47 // pred_region
          %315 = dma.done %s308, 1024
        $region56: #{tpu_custom_call.1} parent=47 // pred_fallthru
          _
        // Predicated region
        $region57: #{tpu_custom_call.1} parent=47 // pred_check
          %p316 = pneg %p95
        $region58: #{tpu_custom_call.1} parent=47 // pred_check_branch
          %318 = sbr.rel (%p316) target = $region60
        $region59: #{tpu_custom_call.1} parent=47 // pred_region
          %319 = dma.done [#allocation8], 1280
        $region60: #{tpu_custom_call.1} parent=47 // pred_fallthru
          _
        %s320 = sand.u32 %s35, 1
        %s321 = scalar_lea.sflag [#allocation5], %s320
        %s322 = sand.u32 %s35, 1
        %s323 = smul.addr %s322, 64
        %s324 = scalar_lea.vmem [#allocation4], %s323
        %p325 = pneg %p48
        %p326 = pneg %p45
        %s327 = sand.u32 %s27, 1
        %s328 = scalar_lea.sflag [#allocation8], %s327
        %s329 = sand.u32 %s61, 1
        %s330 = smul.addr %s329, 64
        %s331 = scalar_lea.vmem [#allocation7], %s330
        %p332 = pneg %p74
        %p333 = pneg %p71
        %p334 = pneg %p95
        %p335 = pneg %p92
        %p336 = pneg %p116
        %p337 = pneg %p113
        %p338 = pneg %p137
        %p339 = pneg %p134
        %p340 = pneg %p158
        %p341 = pneg %p155
        %p342 = pneg %p179
        %p343 = pneg %p176
        %p344 = pneg %p205
        %p345 = pneg %p202
        %s346 = sand.u32 %s192, 1
        %s347 = scalar_lea.sflag [#allocation6], %s346
        %s348 = sand.u32 %s192, 1
        %s349 = smul.addr %s348, 64
        %s350 = scalar_lea.vmem [#allocation10], %s349
        %v352 = vlaneseq
        %v353 = vand.u32 %v352, 127
        %v354 = vadd.s32 %v353, 128
        %v355 = vand.u32 %v353, 15
        %v356 = vand.u32 %v354, 15
        %vm357 = vcmp.lt.s32.totalorder %v355, 15
        %vm358 = vcmp.lt.s32.totalorder %v356, 15
        %vm359 = vcmp.ge.s32.totalorder %v355, 1
        %vm360 = vcmp.ge.s32.totalorder %v356, 1
        %vm361 = vcmp.lt.s32.totalorder %v355, 14
        %vm362 = vcmp.lt.s32.totalorder %v356, 14
        %vm363 = vcmp.ge.s32.totalorder %v355, 2
        %vm364 = vcmp.ge.s32.totalorder %v356, 2
        %vm365 = vcmp.lt.s32.totalorder %v355, 13
        %vm366 = vcmp.lt.s32.totalorder %v356, 13
        %vm367 = vcmp.ge.s32.totalorder %v355, 3
        %vm368 = vcmp.ge.s32.totalorder %v356, 3
        %vm369 = vcmask 138240
        %370 = vst.msk [vmem:[#allocation2] sm:$0xff] %vm369, 0.0
        %371 = vst.msk [vmem:[#allocation2 + $0x18] sm:$0xff] %vm369, 0.0
        %372 = vst.msk [vmem:[#allocation2 + $0x30] sm:$0xff] %vm369, 0.0
        %373 = vst.msk [vmem:[#allocation2 + $0x48] sm:$0xff] %vm369, 0.0
        %374 = vst.msk [vmem:[#allocation2 + $0x60] sm:$0xff] %vm369, 0.0
        %375 = vst.msk [vmem:[#allocation2 + $0x78] sm:$0xff] %vm369, 0.0
        %376 = vst.msk [vmem:[#allocation2 + $0x90] sm:$0xff] %vm369, 0.0
        %377 = vst.msk [vmem:[#allocation2 + $0xa8] sm:$0xff] %vm369, 0.0
        %vm378 = vcmask 277640
        %379 = vst.msk [vmem:[#allocation2 + $0x10] sm:$0xff] %vm378, 0.0
        %380 = vst.msk [vmem:[#allocation2 + $0x28] sm:$0xff] %vm378, 0.0
        %381 = vst.msk [vmem:[#allocation2 + $0x40] sm:$0xff] %vm378, 0.0
        %382 = vst.msk [vmem:[#allocation2 + $0x58] sm:$0xff] %vm378, 0.0
        %383 = vst.msk [vmem:[#allocation2 + $0x70] sm:$0xff] %vm378, 0.0
        %384 = vst.msk [vmem:[#allocation2 + $0x88] sm:$0xff] %vm378, 0.0
        %385 = vst.msk [vmem:[#allocation2 + $0xa0] sm:$0xff] %vm378, 0.0
        %386 = vst.msk [vmem:[#allocation2 + $0xb8] sm:$0xff] %vm378, 0.0
        %v387 = vld [vmem:[%s302] sm:$0xff]
        %v388 = vld [vmem:[%s302 + $0x8] sm:$0xff]
        %v389 = vld [vmem:[%s302 + $0x10] sm:$0xff]
        %v390 = vld [vmem:[%s302 + $0x18] sm:$0xff]
        %v391 = vld [vmem:[%s302 + $0x20] sm:$0xff]
        %v392 = vld [vmem:[%s302 + $0x28] sm:$0xff]
        %v393 = vld [vmem:[%s302 + $0x30] sm:$0xff]
        %v394 = vld [vmem:[%s302 + $0x38] sm:$0xff]
        %403 = vrot.lane.b32.xlu0 %v387, 17
        %v404 = vpop.permute.xlu0 %403
        %405 = vrot.lane.b32.xlu0 %v388, 17
        %v406 = vpop.permute.xlu0 %405
        %407 = vrot.lane.b32.xlu0 %v389, 17
        %v408 = vpop.permute.xlu0 %407
        %409 = vrot.lane.b32.xlu0 %v390, 17
        %v410 = vpop.permute.xlu0 %409
        %411 = vrot.lane.b32.xlu0 %v391, 17
        %v412 = vpop.permute.xlu0 %411
        %413 = vrot.lane.b32.xlu0 %v392, 17
        %v414 = vpop.permute.xlu0 %413
        %415 = vrot.lane.b32.xlu0 %v393, 17
        %v416 = vpop.permute.xlu0 %415
        %417 = vrot.lane.b32.xlu0 %v394, 17
        %v418 = vpop.permute.xlu0 %417
        %v419 = vsel %vm369, %v404, %v406
        %v420 = vsel %vm369, %v408, %v410
        %v421 = vsel %vm369, %v412, %v414
        %v422 = vsel %vm369, %v416, %v418
        %vm435 = vcmask 1047688
        %436 = vst.msk [vmem:[#allocation2] sm:$0xff] %vm435, %v404
        %437 = vst [vmem:[#allocation2 + $0x8] sm:$0xff] %v419
        %438 = vst.msk [vmem:[#allocation2 + $0x10] sm:$0xff] %vm369, %v406
        %439 = vst.msk [vmem:[#allocation2 + $0x18] sm:$0xff] %vm435, %v408
        %440 = vst [vmem:[#allocation2 + $0x20] sm:$0xff] %v420
        %441 = vst.msk [vmem:[#allocation2 + $0x28] sm:$0xff] %vm369, %v410
        %442 = vst.msk [vmem:[#allocation2 + $0x30] sm:$0xff] %vm435, %v412
        %443 = vst [vmem:[#allocation2 + $0x38] sm:$0xff] %v421
        %444 = vst.msk [vmem:[#allocation2 + $0x40] sm:$0xff] %vm369, %v414
        %445 = vst.msk [vmem:[#allocation2 + $0x48] sm:$0xff] %vm435, %v416
        %446 = vst [vmem:[#allocation2 + $0x50] sm:$0xff] %v422
        %447 = vst.msk [vmem:[#allocation2 + $0x58] sm:$0xff] %vm369, %v418
        %v448 = vld [vmem:[%s311] sm:$0xff]
        %v449 = vld [vmem:[%s311 + $0x8] sm:$0xff]
        %v450 = vld [vmem:[%s311 + $0x10] sm:$0xff]
        %v451 = vld [vmem:[%s311 + $0x18] sm:$0xff]
        %v452 = vld [vmem:[%s311 + $0x20] sm:$0xff]
        %v453 = vld [vmem:[%s311 + $0x28] sm:$0xff]
        %v454 = vld [vmem:[%s311 + $0x30] sm:$0xff]
        %v455 = vld [vmem:[%s311 + $0x38] sm:$0xff]
        %464 = vrot.lane.b32.xlu0 %v448, 17
        %v465 = vpop.permute.xlu0 %464
        %466 = vrot.lane.b32.xlu0 %v449, 17
        %v467 = vpop.permute.xlu0 %466
        %468 = vrot.lane.b32.xlu0 %v450, 17
        %v469 = vpop.permute.xlu0 %468
        %470 = vrot.lane.b32.xlu0 %v451, 17
        %v471 = vpop.permute.xlu0 %470
        %472 = vrot.lane.b32.xlu0 %v452, 17
        %v473 = vpop.permute.xlu0 %472
        %474 = vrot.lane.b32.xlu0 %v453, 17
        %v475 = vpop.permute.xlu0 %474
        %476 = vrot.lane.b32.xlu0 %v454, 17
        %v477 = vpop.permute.xlu0 %476
        %478 = vrot.lane.b32.xlu0 %v455, 17
        %v479 = vpop.permute.xlu0 %478
        %v480 = vsel %vm369, %v465, %v467
        %v481 = vsel %vm369, %v469, %v471
        %v482 = vsel %vm369, %v473, %v475
        %v483 = vsel %vm369, %v477, %v479
        %496 = vst.msk [vmem:[#allocation2 + $0x60] sm:$0xff] %vm435, %v465
        %497 = vst [vmem:[#allocation2 + $0x68] sm:$0xff] %v480
        %498 = vst.msk [vmem:[#allocation2 + $0x70] sm:$0xff] %vm369, %v467
        %499 = vst.msk [vmem:[#allocation2 + $0x78] sm:$0xff] %vm435, %v469
        %500 = vst [vmem:[#allocation2 + $0x80] sm:$0xff] %v481
        %501 = vst.msk [vmem:[#allocation2 + $0x88] sm:$0xff] %vm369, %v471
        %502 = vst.msk [vmem:[#allocation2 + $0x90] sm:$0xff] %vm435, %v473
        %503 = vst [vmem:[#allocation2 + $0x98] sm:$0xff] %v482
        %504 = vst.msk [vmem:[#allocation2 + $0xa0] sm:$0xff] %vm369, %v475
        %505 = vst.msk [vmem:[#allocation2 + $0xa8] sm:$0xff] %vm435, %v477
        %506 = vst [vmem:[#allocation2 + $0xb0] sm:$0xff] %v483
        %507 = vst.msk [vmem:[#allocation2 + $0xb8] sm:$0xff] %vm369, %v479
        %v508 = vld [vmem:[#allocation2] sm:$0xff]
        %v509 = vld [vmem:[#allocation2 + $0x8] sm:$0xff]
        %v510 = vld [vmem:[#allocation2 + $0x18] sm:$0xff]
        %v511 = vld [vmem:[#allocation2 + $0x20] sm:$0xff]
        %v512 = vld [vmem:[#allocation2 + $0x30] sm:$0xff]
        %v513 = vld [vmem:[#allocation2 + $0x38] sm:$0xff]
        %v514 = vld [vmem:[#allocation2 + $0x48] sm:$0xff]
        %v515 = vld [vmem:[#allocation2 + $0x50] sm:$0xff]
        %v516 = vld [vmem:[#allocation2 + $0x60] sm:$0xff]
        %v517 = vld [vmem:[#allocation2 + $0x68] sm:$0xff]
        %v518 = vld [vmem:[#allocation2 + $0x78] sm:$0xff]
        %v519 = vld [vmem:[#allocation2 + $0x80] sm:$0xff]
        %v520 = vld [vmem:[#allocation2 + $0x90] sm:$0xff]
        %v521 = vld [vmem:[#allocation2 + $0x98] sm:$0xff]
        %v522 = vld [vmem:[#allocation2 + $0xa8] sm:$0xff]
        %v523 = vld [vmem:[#allocation2 + $0xb0] sm:$0xff]
        %v524 = vsel %vm359, 1, 0
        %v525 = vsel %vm360, 1, 0
        %vm526 = vcmp.eq.s32.totalorder %v524, 1
        %vm527 = vcmp.eq.s32.totalorder %v525, 1
        %v528 = vsel %vm526, %v508, 0.0
        %v529 = vsel %vm527, %v509, 0.0
        %v530 = vsel %vm526, %v510, 0.0
        %v531 = vsel %vm527, %v511, 0.0
        %v532 = vsel %vm526, %v512, 0.0
        %v533 = vsel %vm527, %v513, 0.0
        %v534 = vsel %vm526, %v514, 0.0
        %v535 = vsel %vm527, %v515, 0.0
        %v536 = vsel %vm526, %v516, 0.0
        %v537 = vsel %vm527, %v517, 0.0
        %v538 = vsel %vm526, %v518, 0.0
        %v539 = vsel %vm527, %v519, 0.0
        %v540 = vsel %vm526, %v520, 0.0
        %v541 = vsel %vm527, %v521, 0.0
        %v542 = vsel %vm526, %v522, 0.0
        %v543 = vsel %vm527, %v523, 0.0
        %v544 = vpack.c.bf16 %v530, %v528
        %v545 = vpack.c.bf16 %v531, %v529
        %v546 = vpack.c.bf16 %v534, %v532
        %v547 = vpack.c.bf16 %v535, %v533
        %v548 = vpack.c.bf16 %v538, %v536
        %v549 = vpack.c.bf16 %v539, %v537
        %v550 = vpack.c.bf16 %v542, %v540
        %v551 = vpack.c.bf16 %v543, %v541
        %v552 = vld [vmem:[#allocation2 + $0x10] sm:$0xff]
        %v553 = vld [vmem:[#allocation2 + $0x28] sm:$0xff]
        %v554 = vld [vmem:[#allocation2 + $0x40] sm:$0xff]
        %v555 = vld [vmem:[#allocation2 + $0x58] sm:$0xff]
        %v556 = vld [vmem:[#allocation2 + $0x70] sm:$0xff]
        %v557 = vld [vmem:[#allocation2 + $0x88] sm:$0xff]
        %v558 = vld [vmem:[#allocation2 + $0xa0] sm:$0xff]
        %v559 = vld [vmem:[#allocation2 + $0xb8] sm:$0xff]
        %v560 = vpack.c.bf16 %v510, %v508
        %v561 = vpack.c.bf16 %v511, %v509
        %v562 = vpack.c.bf16 %v553, %v552
        %v563 = vpack.c.bf16 %v514, %v512
        %v564 = vpack.c.bf16 %v515, %v513
        %v565 = vpack.c.bf16 %v555, %v554
        %v566 = vpack.c.bf16 %v518, %v516
        %v567 = vpack.c.bf16 %v519, %v517
        %v568 = vpack.c.bf16 %v557, %v556
        %v569 = vpack.c.bf16 %v522, %v520
        %v570 = vpack.c.bf16 %v523, %v521
        %v571 = vpack.c.bf16 %v559, %v558
        %v572 = vsel %vm357, 1, 0
        %v573 = vsel %vm358, 1, 0
        %vm574 = vcmp.eq.s32.totalorder %v572, 1
        %vm575 = vcmp.eq.s32.totalorder %v573, 1
        %600 = vrot.lane.b32.xlu0 %v508, 126
        %v601 = vpop.permute.xlu0 %600
        %602 = vrot.lane.b32.xlu0 %v509, 126
        %v603 = vpop.permute.xlu0 %602
        %604 = vrot.lane.b32.xlu0 %v552, 126
        %v605 = vpop.permute.xlu0 %604
        %606 = vrot.lane.b32.xlu0 %v510, 126
        %v607 = vpop.permute.xlu0 %606
        %608 = vrot.lane.b32.xlu0 %v511, 126
        %v609 = vpop.permute.xlu0 %608
        %610 = vrot.lane.b32.xlu0 %v553, 126
        %v611 = vpop.permute.xlu0 %610
        %612 = vrot.lane.b32.xlu0 %v512, 126
        %v613 = vpop.permute.xlu0 %612
        %614 = vrot.lane.b32.xlu0 %v513, 126
        %v615 = vpop.permute.xlu0 %614
        %616 = vrot.lane.b32.xlu0 %v554, 126
        %v617 = vpop.permute.xlu0 %616
        %618 = vrot.lane.b32.xlu0 %v514, 126
        %v619 = vpop.permute.xlu0 %618
        %620 = vrot.lane.b32.xlu0 %v515, 126
        %v621 = vpop.permute.xlu0 %620
        %622 = vrot.lane.b32.xlu0 %v555, 126
        %v623 = vpop.permute.xlu0 %622
        %624 = vrot.lane.b32.xlu0 %v516, 126
        %v625 = vpop.permute.xlu0 %624
        %626 = vrot.lane.b32.xlu0 %v517, 126
        %v627 = vpop.permute.xlu0 %626
        %628 = vrot.lane.b32.xlu0 %v556, 126
        %v629 = vpop.permute.xlu0 %628
        %630 = vrot.lane.b32.xlu0 %v518, 126
        %v631 = vpop.permute.xlu0 %630
        %632 = vrot.lane.b32.xlu0 %v519, 126
        %v633 = vpop.permute.xlu0 %632
        %634 = vrot.lane.b32.xlu0 %v557, 126
        %v635 = vpop.permute.xlu0 %634
        %636 = vrot.lane.b32.xlu0 %v520, 126
        %v637 = vpop.permute.xlu0 %636
        %638 = vrot.lane.b32.xlu0 %v521, 126
        %v639 = vpop.permute.xlu0 %638
        %640 = vrot.lane.b32.xlu0 %v558, 126
        %v641 = vpop.permute.xlu0 %640
        %642 = vrot.lane.b32.xlu0 %v522, 126
        %v643 = vpop.permute.xlu0 %642
        %644 = vrot.lane.b32.xlu0 %v523, 126
        %v645 = vpop.permute.xlu0 %644
        %646 = vrot.lane.b32.xlu0 %v559, 126
        %v647 = vpop.permute.xlu0 %646
        %vm648 = vcmask 1031168
        %v649 = vsel %vm648, %v601, %v603
        %v650 = vsel %vm648, %v603, %v605
        %v651 = vsel %vm648, %v607, %v609
        %v652 = vsel %vm648, %v609, %v611
        %v653 = vsel %vm648, %v613, %v615
        %v654 = vsel %vm648, %v615, %v617
        %v655 = vsel %vm648, %v619, %v621
        %v656 = vsel %vm648, %v621, %v623
        %v657 = vsel %vm648, %v625, %v627
        %v658 = vsel %vm648, %v627, %v629
        %v659 = vsel %vm648, %v631, %v633
        %v660 = vsel %vm648, %v633, %v635
        %v661 = vsel %vm648, %v637, %v639
        %v662 = vsel %vm648, %v639, %v641
        %v663 = vsel %vm648, %v643, %v645
        %v664 = vsel %vm648, %v645, %v647
        %v681 = vsel %vm574, %v649, 0.0
        %v682 = vsel %vm575, %v650, 0.0
        %v683 = vsel %vm574, %v651, 0.0
        %v684 = vsel %vm575, %v652, 0.0
        %v685 = vsel %vm574, %v653, 0.0
        %v686 = vsel %vm575, %v654, 0.0
        %v687 = vsel %vm574, %v655, 0.0
        %v688 = vsel %vm575, %v656, 0.0
        %v689 = vsel %vm574, %v657, 0.0
        %v690 = vsel %vm575, %v658, 0.0
        %v691 = vsel %vm574, %v659, 0.0
        %v692 = vsel %vm575, %v660, 0.0
        %v693 = vsel %vm574, %v661, 0.0
        %v694 = vsel %vm575, %v662, 0.0
        %v695 = vsel %vm574, %v663, 0.0
        %v696 = vsel %vm575, %v664, 0.0
        %v697 = vpack.c.bf16 %v683, %v681
        %v698 = vpack.c.bf16 %v684, %v682
        %v699 = vpack.c.bf16 %v687, %v685
        %v700 = vpack.c.bf16 %v688, %v686
        %v701 = vpack.c.bf16 %v691, %v689
        %v702 = vpack.c.bf16 %v692, %v690
        %v703 = vpack.c.bf16 %v695, %v693
        %v704 = vpack.c.bf16 %v696, %v694
        %705 = vrot.lane.b32.xlu0 %v508, 112
        %v706 = vpop.permute.xlu0 %705
        %707 = vrot.lane.b32.xlu0 %v509, 112
        %v708 = vpop.permute.xlu0 %707
        %709 = vrot.lane.b32.xlu0 %v552, 112
        %v710 = vpop.permute.xlu0 %709
        %711 = vrot.lane.b32.xlu0 %v510, 112
        %v712 = vpop.permute.xlu0 %711
        %713 = vrot.lane.b32.xlu0 %v511, 112
        %v714 = vpop.permute.xlu0 %713
        %715 = vrot.lane.b32.xlu0 %v553, 112
        %v716 = vpop.permute.xlu0 %715
        %717 = vrot.lane.b32.xlu0 %v512, 112
        %v718 = vpop.permute.xlu0 %717
        %719 = vrot.lane.b32.xlu0 %v513, 112
        %v720 = vpop.permute.xlu0 %719
        %721 = vrot.lane.b32.xlu0 %v554, 112
        %v722 = vpop.permute.xlu0 %721
        %723 = vrot.lane.b32.xlu0 %v514, 112
        %v724 = vpop.permute.xlu0 %723
        %725 = vrot.lane.b32.xlu0 %v515, 112
        %v726 = vpop.permute.xlu0 %725
        %727 = vrot.lane.b32.xlu0 %v555, 112
        %v728 = vpop.permute.xlu0 %727
        %729 = vrot.lane.b32.xlu0 %v516, 112
        %v730 = vpop.permute.xlu0 %729
        %731 = vrot.lane.b32.xlu0 %v517, 112
        %v732 = vpop.permute.xlu0 %731
        %733 = vrot.lane.b32.xlu0 %v556, 112
        %v734 = vpop.permute.xlu0 %733
        %735 = vrot.lane.b32.xlu0 %v518, 112
        %v736 = vpop.permute.xlu0 %735
        %737 = vrot.lane.b32.xlu0 %v519, 112
        %v738 = vpop.permute.xlu0 %737
        %739 = vrot.lane.b32.xlu0 %v557, 112
        %v740 = vpop.permute.xlu0 %739
        %741 = vrot.lane.b32.xlu0 %v520, 112
        %v742 = vpop.permute.xlu0 %741
        %743 = vrot.lane.b32.xlu0 %v521, 112
        %v744 = vpop.permute.xlu0 %743
        %745 = vrot.lane.b32.xlu0 %v558, 112
        %v746 = vpop.permute.xlu0 %745
        %747 = vrot.lane.b32.xlu0 %v522, 112
        %v748 = vpop.permute.xlu0 %747
        %749 = vrot.lane.b32.xlu0 %v523, 112
        %v750 = vpop.permute.xlu0 %749
        %751 = vrot.lane.b32.xlu0 %v559, 112
        %v752 = vpop.permute.xlu0 %751
        %vm753 = vcmask 916480
        %v754 = vsel %vm753, %v706, %v708
        %v755 = vsel %vm753, %v708, %v710
        %v756 = vsel %vm753, %v712, %v714
        %v757 = vsel %vm753, %v714, %v716
        %v758 = vsel %vm753, %v718, %v720
        %v759 = vsel %vm753, %v720, %v722
        %v760 = vsel %vm753, %v724, %v726
        %v761 = vsel %vm753, %v726, %v728
        %v762 = vsel %vm753, %v730, %v732
        %v763 = vsel %vm753, %v732, %v734
        %v764 = vsel %vm753, %v736, %v738
        %v765 = vsel %vm753, %v738, %v740
        %v766 = vsel %vm753, %v742, %v744
        %v767 = vsel %vm753, %v744, %v746
        %v768 = vsel %vm753, %v748, %v750
        %v769 = vsel %vm753, %v750, %v752
        %v786 = vsel %vm526, %v754, 0.0
        %v787 = vsel %vm527, %v755, 0.0
        %v788 = vsel %vm526, %v756, 0.0
        %v789 = vsel %vm527, %v757, 0.0
        %v790 = vsel %vm526, %v758, 0.0
        %v791 = vsel %vm527, %v759, 0.0
        %v792 = vsel %vm526, %v760, 0.0
        %v793 = vsel %vm527, %v761, 0.0
        %v794 = vsel %vm526, %v762, 0.0
        %v795 = vsel %vm527, %v763, 0.0
        %v796 = vsel %vm526, %v764, 0.0
        %v797 = vsel %vm527, %v765, 0.0
        %v798 = vsel %vm526, %v766, 0.0
        %v799 = vsel %vm527, %v767, 0.0
        %v800 = vsel %vm526, %v768, 0.0
        %v801 = vsel %vm527, %v769, 0.0
        %v802 = vpack.c.bf16 %v788, %v786
        %v803 = vpack.c.bf16 %v789, %v787
        %v804 = vpack.c.bf16 %v792, %v790
        %v805 = vpack.c.bf16 %v793, %v791
        %v806 = vpack.c.bf16 %v796, %v794
        %v807 = vpack.c.bf16 %v797, %v795
        %v808 = vpack.c.bf16 %v800, %v798
        %v809 = vpack.c.bf16 %v801, %v799
        %810 = vrot.lane.b32.xlu0 %v508, 110
        %v811 = vpop.permute.xlu0 %810
        %812 = vrot.lane.b32.xlu0 %v509, 110
        %v813 = vpop.permute.xlu0 %812
        %814 = vrot.lane.b32.xlu0 %v552, 110
        %v815 = vpop.permute.xlu0 %814
        %816 = vrot.lane.b32.xlu0 %v510, 110
        %v817 = vpop.permute.xlu0 %816
        %818 = vrot.lane.b32.xlu0 %v511, 110
        %v819 = vpop.permute.xlu0 %818
        %820 = vrot.lane.b32.xlu0 %v553, 110
        %v821 = vpop.permute.xlu0 %820
        %822 = vrot.lane.b32.xlu0 %v512, 110
        %v823 = vpop.permute.xlu0 %822
        %824 = vrot.lane.b32.xlu0 %v513, 110
        %v825 = vpop.permute.xlu0 %824
        %826 = vrot.lane.b32.xlu0 %v554, 110
        %v827 = vpop.permute.xlu0 %826
        %828 = vrot.lane.b32.xlu0 %v514, 110
        %v829 = vpop.permute.xlu0 %828
        %830 = vrot.lane.b32.xlu0 %v515, 110
        %v831 = vpop.permute.xlu0 %830
        %832 = vrot.lane.b32.xlu0 %v555, 110
        %v833 = vpop.permute.xlu0 %832
        %834 = vrot.lane.b32.xlu0 %v516, 110
        %v835 = vpop.permute.xlu0 %834
        %836 = vrot.lane.b32.xlu0 %v517, 110
        %v837 = vpop.permute.xlu0 %836
        %838 = vrot.lane.b32.xlu0 %v556, 110
        %v839 = vpop.permute.xlu0 %838
        %840 = vrot.lane.b32.xlu0 %v518, 110
        %v841 = vpop.permute.xlu0 %840
        %842 = vrot.lane.b32.xlu0 %v519, 110
        %v843 = vpop.permute.xlu0 %842
        %844 = vrot.lane.b32.xlu0 %v557, 110
        %v845 = vpop.permute.xlu0 %844
        %846 = vrot.lane.b32.xlu0 %v520, 110
        %v847 = vpop.permute.xlu0 %846
        %848 = vrot.lane.b32.xlu0 %v521, 110
        %v849 = vpop.permute.xlu0 %848
        %850 = vrot.lane.b32.xlu0 %v558, 110
        %v851 = vpop.permute.xlu0 %850
        %852 = vrot.lane.b32.xlu0 %v522, 110
        %v853 = vpop.permute.xlu0 %852
        %854 = vrot.lane.b32.xlu0 %v523, 110
        %v855 = vpop.permute.xlu0 %854
        %856 = vrot.lane.b32.xlu0 %v559, 110
        %v857 = vpop.permute.xlu0 %856
        %vm858 = vcmask 900096
        %v859 = vsel %vm858, %v811, %v813
        %v860 = vsel %vm858, %v813, %v815
        %v861 = vsel %vm858, %v817, %v819
        %v862 = vsel %vm858, %v819, %v821
        %v863 = vsel %vm858, %v823, %v825
        %v864 = vsel %vm858, %v825, %v827
        %v865 = vsel %vm858, %v829, %v831
        %v866 = vsel %vm858, %v831, %v833
        %v867 = vsel %vm858, %v835, %v837
        %v868 = vsel %vm858, %v837, %v839
        %v869 = vsel %vm858, %v841, %v843
        %v870 = vsel %vm858, %v843, %v845
        %v871 = vsel %vm858, %v847, %v849
        %v872 = vsel %vm858, %v849, %v851
        %v873 = vsel %vm858, %v853, %v855
        %v874 = vsel %vm858, %v855, %v857
        %v891 = vsel %vm574, %v859, 0.0
        %v892 = vsel %vm575, %v860, 0.0
        %v893 = vsel %vm574, %v861, 0.0
        %v894 = vsel %vm575, %v862, 0.0
        %v895 = vsel %vm574, %v863, 0.0
        %v896 = vsel %vm575, %v864, 0.0
        %v897 = vsel %vm574, %v865, 0.0
        %v898 = vsel %vm575, %v866, 0.0
        %v899 = vsel %vm574, %v867, 0.0
        %v900 = vsel %vm575, %v868, 0.0
        %v901 = vsel %vm574, %v869, 0.0
        %v902 = vsel %vm575, %v870, 0.0
        %v903 = vsel %vm574, %v871, 0.0
        %v904 = vsel %vm575, %v872, 0.0
        %v905 = vsel %vm574, %v873, 0.0
        %v906 = vsel %vm575, %v874, 0.0
        %v907 = vpack.c.bf16 %v893, %v891
        %v908 = vpack.c.bf16 %v894, %v892
        %v909 = vpack.c.bf16 %v897, %v895
        %v910 = vpack.c.bf16 %v898, %v896
        %v911 = vpack.c.bf16 %v901, %v899
        %v912 = vpack.c.bf16 %v902, %v900
        %v913 = vpack.c.bf16 %v905, %v903
        %v914 = vpack.c.bf16 %v906, %v904
        %915 = vrot.lane.b32.xlu0 %v508, 96
        %v916 = vpop.permute.xlu0 %915
        %917 = vrot.lane.b32.xlu0 %v509, 96
        %v918 = vpop.permute.xlu0 %917
        %919 = vrot.lane.b32.xlu0 %v552, 96
        %v920 = vpop.permute.xlu0 %919
        %921 = vrot.lane.b32.xlu0 %v510, 96
        %v922 = vpop.permute.xlu0 %921
        %923 = vrot.lane.b32.xlu0 %v511, 96
        %v924 = vpop.permute.xlu0 %923
        %925 = vrot.lane.b32.xlu0 %v553, 96
        %v926 = vpop.permute.xlu0 %925
        %927 = vrot.lane.b32.xlu0 %v512, 96
        %v928 = vpop.permute.xlu0 %927
        %929 = vrot.lane.b32.xlu0 %v513, 96
        %v930 = vpop.permute.xlu0 %929
        %931 = vrot.lane.b32.xlu0 %v554, 96
        %v932 = vpop.permute.xlu0 %931
        %933 = vrot.lane.b32.xlu0 %v514, 96
        %v934 = vpop.permute.xlu0 %933
        %935 = vrot.lane.b32.xlu0 %v515, 96
        %v936 = vpop.permute.xlu0 %935
        %937 = vrot.lane.b32.xlu0 %v555, 96
        %v938 = vpop.permute.xlu0 %937
        %939 = vrot.lane.b32.xlu0 %v516, 96
        %v940 = vpop.permute.xlu0 %939
        %941 = vrot.lane.b32.xlu0 %v517, 96
        %v942 = vpop.permute.xlu0 %941
        %943 = vrot.lane.b32.xlu0 %v556, 96
        %v944 = vpop.permute.xlu0 %943
        %945 = vrot.lane.b32.xlu0 %v518, 96
        %v946 = vpop.permute.xlu0 %945
        %947 = vrot.lane.b32.xlu0 %v519, 96
        %v948 = vpop.permute.xlu0 %947
        %949 = vrot.lane.b32.xlu0 %v557, 96
        %v950 = vpop.permute.xlu0 %949
        %951 = vrot.lane.b32.xlu0 %v520, 96
        %v952 = vpop.permute.xlu0 %951
        %953 = vrot.lane.b32.xlu0 %v521, 96
        %v954 = vpop.permute.xlu0 %953
        %955 = vrot.lane.b32.xlu0 %v558, 96
        %v956 = vpop.permute.xlu0 %955
        %957 = vrot.lane.b32.xlu0 %v522, 96
        %v958 = vpop.permute.xlu0 %957
        %959 = vrot.lane.b32.xlu0 %v523, 96
        %v960 = vpop.permute.xlu0 %959
        %961 = vrot.lane.b32.xlu0 %v559, 96
        %v962 = vpop.permute.xlu0 %961
        %vm963 = vcmask 785408
        %v964 = vsel %vm963, %v916, %v918
        %v965 = vsel %vm963, %v918, %v920
        %v966 = vsel %vm963, %v922, %v924
        %v967 = vsel %vm963, %v924, %v926
        %v968 = vsel %vm963, %v928, %v930
        %v969 = vsel %vm963, %v930, %v932
        %v970 = vsel %vm963, %v934, %v936
        %v971 = vsel %vm963, %v936, %v938
        %v972 = vsel %vm963, %v940, %v942
        %v973 = vsel %vm963, %v942, %v944
        %v974 = vsel %vm963, %v946, %v948
        %v975 = vsel %vm963, %v948, %v950
        %v976 = vsel %vm963, %v952, %v954
        %v977 = vsel %vm963, %v954, %v956
        %v978 = vsel %vm963, %v958, %v960
        %v979 = vsel %vm963, %v960, %v962
        %v996 = vsel %vm526, %v964, 0.0
        %v997 = vsel %vm527, %v965, 0.0
        %v998 = vsel %vm526, %v966, 0.0
        %v999 = vsel %vm527, %v967, 0.0
        %v1000 = vsel %vm526, %v968, 0.0
        %v1001 = vsel %vm527, %v969, 0.0
        %v1002 = vsel %vm526, %v970, 0.0
        %v1003 = vsel %vm527, %v971, 0.0
        %v1004 = vsel %vm526, %v972, 0.0
        %v1005 = vsel %vm527, %v973, 0.0
        %v1006 = vsel %vm526, %v974, 0.0
        %v1007 = vsel %vm527, %v975, 0.0
        %v1008 = vsel %vm526, %v976, 0.0
        %v1009 = vsel %vm527, %v977, 0.0
        %v1010 = vsel %vm526, %v978, 0.0
        %v1011 = vsel %vm527, %v979, 0.0
        %v1012 = vpack.c.bf16 %v998, %v996
        %v1013 = vpack.c.bf16 %v999, %v997
        %v1014 = vpack.c.bf16 %v1002, %v1000
        %v1015 = vpack.c.bf16 %v1003, %v1001
        %v1016 = vpack.c.bf16 %v1006, %v1004
        %v1017 = vpack.c.bf16 %v1007, %v1005
        %v1018 = vpack.c.bf16 %v1010, %v1008
        %v1019 = vpack.c.bf16 %v1011, %v1009
        %1020 = vrot.lane.b32.xlu0 %v508, 94
        %v1021 = vpop.permute.xlu0 %1020
        %1022 = vrot.lane.b32.xlu0 %v509, 94
        %v1023 = vpop.permute.xlu0 %1022
        %1024 = vrot.lane.b32.xlu0 %v552, 94
        %v1025 = vpop.permute.xlu0 %1024
        %1026 = vrot.lane.b32.xlu0 %v510, 94
        %v1027 = vpop.permute.xlu0 %1026
        %1028 = vrot.lane.b32.xlu0 %v511, 94
        %v1029 = vpop.permute.xlu0 %1028
        %1030 = vrot.lane.b32.xlu0 %v553, 94
        %v1031 = vpop.permute.xlu0 %1030
        %1032 = vrot.lane.b32.xlu0 %v512, 94
        %v1033 = vpop.permute.xlu0 %1032
        %1034 = vrot.lane.b32.xlu0 %v513, 94
        %v1035 = vpop.permute.xlu0 %1034
        %1036 = vrot.lane.b32.xlu0 %v554, 94
        %v1037 = vpop.permute.xlu0 %1036
        %1038 = vrot.lane.b32.xlu0 %v514, 94
        %v1039 = vpop.permute.xlu0 %1038
        %1040 = vrot.lane.b32.xlu0 %v515, 94
        %v1041 = vpop.permute.xlu0 %1040
        %1042 = vrot.lane.b32.xlu0 %v555, 94
        %v1043 = vpop.permute.xlu0 %1042
        %1044 = vrot.lane.b32.xlu0 %v516, 94
        %v1045 = vpop.permute.xlu0 %1044
        %1046 = vrot.lane.b32.xlu0 %v517, 94
        %v1047 = vpop.permute.xlu0 %1046
        %1048 = vrot.lane.b32.xlu0 %v556, 94
        %v1049 = vpop.permute.xlu0 %1048
        %1050 = vrot.lane.b32.xlu0 %v518, 94
        %v1051 = vpop.permute.xlu0 %1050
        %1052 = vrot.lane.b32.xlu0 %v519, 94
        %v1053 = vpop.permute.xlu0 %1052
        %1054 = vrot.lane.b32.xlu0 %v557, 94
        %v1055 = vpop.permute.xlu0 %1054
        %1056 = vrot.lane.b32.xlu0 %v520, 94
        %v1057 = vpop.permute.xlu0 %1056
        %1058 = vrot.lane.b32.xlu0 %v521, 94
        %v1059 = vpop.permute.xlu0 %1058
        %1060 = vrot.lane.b32.xlu0 %v558, 94
        %v1061 = vpop.permute.xlu0 %1060
        %1062 = vrot.lane.b32.xlu0 %v522, 94
        %v1063 = vpop.permute.xlu0 %1062
        %1064 = vrot.lane.b32.xlu0 %v523, 94
        %v1065 = vpop.permute.xlu0 %1064
        %1066 = vrot.lane.b32.xlu0 %v559, 94
        %v1067 = vpop.permute.xlu0 %1066
        %vm1068 = vcmask 769024
        %v1069 = vsel %vm1068, %v1021, %v1023
        %v1070 = vsel %vm1068, %v1023, %v1025
        %v1071 = vsel %vm1068, %v1027, %v1029
        %v1072 = vsel %vm1068, %v1029, %v1031
        %v1073 = vsel %vm1068, %v1033, %v1035
        %v1074 = vsel %vm1068, %v1035, %v1037
        %v1075 = vsel %vm1068, %v1039, %v1041
        %v1076 = vsel %vm1068, %v1041, %v1043
        %v1077 = vsel %vm1068, %v1045, %v1047
        %v1078 = vsel %vm1068, %v1047, %v1049
        %v1079 = vsel %vm1068, %v1051, %v1053
        %v1080 = vsel %vm1068, %v1053, %v1055
        %v1081 = vsel %vm1068, %v1057, %v1059
        %v1082 = vsel %vm1068, %v1059, %v1061
        %v1083 = vsel %vm1068, %v1063, %v1065
        %v1084 = vsel %vm1068, %v1065, %v1067
        %v1101 = vsel %vm574, %v1069, 0.0
        %v1102 = vsel %vm575, %v1070, 0.0
        %v1103 = vsel %vm574, %v1071, 0.0
        %v1104 = vsel %vm575, %v1072, 0.0
        %v1105 = vsel %vm574, %v1073, 0.0
        %v1106 = vsel %vm575, %v1074, 0.0
        %v1107 = vsel %vm574, %v1075, 0.0
        %v1108 = vsel %vm575, %v1076, 0.0
        %v1109 = vsel %vm574, %v1077, 0.0
        %v1110 = vsel %vm575, %v1078, 0.0
        %v1111 = vsel %vm574, %v1079, 0.0
        %v1112 = vsel %vm575, %v1080, 0.0
        %v1113 = vsel %vm574, %v1081, 0.0
        %v1114 = vsel %vm575, %v1082, 0.0
        %v1115 = vsel %vm574, %v1083, 0.0
        %v1116 = vsel %vm575, %v1084, 0.0
        %v1117 = vpack.c.bf16 %v1103, %v1101
        %v1118 = vpack.c.bf16 %v1104, %v1102
        %v1119 = vpack.c.bf16 %v1107, %v1105
        %v1120 = vpack.c.bf16 %v1108, %v1106
        %v1121 = vpack.c.bf16 %v1111, %v1109
        %v1122 = vpack.c.bf16 %v1112, %v1110
        %v1123 = vpack.c.bf16 %v1115, %v1113
        %v1124 = vpack.c.bf16 %v1116, %v1114
        %1137 = vrot.lane.b32.xlu0 %v560, 127
        %v1138 = vpop.permute.xlu0 %1137
        %1139 = vrot.lane.b32.xlu0 %v561, 127
        %v1140 = vpop.permute.xlu0 %1139
        %1141 = vrot.lane.b32.xlu0 %v562, 127
        %v1142 = vpop.permute.xlu0 %1141
        %1143 = vrot.lane.b32.xlu0 %v563, 127
        %v1144 = vpop.permute.xlu0 %1143
        %1145 = vrot.lane.b32.xlu0 %v564, 127
        %v1146 = vpop.permute.xlu0 %1145
        %1147 = vrot.lane.b32.xlu0 %v565, 127
        %v1148 = vpop.permute.xlu0 %1147
        %1149 = vrot.lane.b32.xlu0 %v566, 127
        %v1150 = vpop.permute.xlu0 %1149
        %1151 = vrot.lane.b32.xlu0 %v567, 127
        %v1152 = vpop.permute.xlu0 %1151
        %1153 = vrot.lane.b32.xlu0 %v568, 127
        %v1154 = vpop.permute.xlu0 %1153
        %1155 = vrot.lane.b32.xlu0 %v569, 127
        %v1156 = vpop.permute.xlu0 %1155
        %1157 = vrot.lane.b32.xlu0 %v570, 127
        %v1158 = vpop.permute.xlu0 %1157
        %1159 = vrot.lane.b32.xlu0 %v571, 127
        %v1160 = vpop.permute.xlu0 %1159
        %vm1161 = vcmask 1039360
        %v1162 = vsel %vm1161, %v1138, %v1140
        %v1163 = vsel %vm1161, %v1140, %v1142
        %v1164 = vsel %vm1161, %v1144, %v1146
        %v1165 = vsel %vm1161, %v1146, %v1148
        %v1166 = vsel %vm1161, %v1150, %v1152
        %v1167 = vsel %vm1161, %v1152, %v1154
        %v1168 = vsel %vm1161, %v1156, %v1158
        %v1169 = vsel %vm1161, %v1158, %v1160
        %1178 = vrot.lane.b32.xlu0 %v560, 111
        %v1179 = vpop.permute.xlu0 %1178
        %1180 = vrot.lane.b32.xlu0 %v561, 111
        %v1181 = vpop.permute.xlu0 %1180
        %1182 = vrot.lane.b32.xlu0 %v562, 111
        %v1183 = vpop.permute.xlu0 %1182
        %1184 = vrot.lane.b32.xlu0 %v563, 111
        %v1185 = vpop.permute.xlu0 %1184
        %1186 = vrot.lane.b32.xlu0 %v564, 111
        %v1187 = vpop.permute.xlu0 %1186
        %1188 = vrot.lane.b32.xlu0 %v565, 111
        %v1189 = vpop.permute.xlu0 %1188
        %1190 = vrot.lane.b32.xlu0 %v566, 111
        %v1191 = vpop.permute.xlu0 %1190
        %1192 = vrot.lane.b32.xlu0 %v567, 111
        %v1193 = vpop.permute.xlu0 %1192
        %1194 = vrot.lane.b32.xlu0 %v568, 111
        %v1195 = vpop.permute.xlu0 %1194
        %1196 = vrot.lane.b32.xlu0 %v569, 111
        %v1197 = vpop.permute.xlu0 %1196
        %1198 = vrot.lane.b32.xlu0 %v570, 111
        %v1199 = vpop.permute.xlu0 %1198
        %1200 = vrot.lane.b32.xlu0 %v571, 111
        %v1201 = vpop.permute.xlu0 %1200
        %vm1202 = vcmask 908288
        %v1203 = vsel %vm1202, %v1179, %v1181
        %v1204 = vsel %vm1202, %v1181, %v1183
        %v1205 = vsel %vm1202, %v1185, %v1187
        %v1206 = vsel %vm1202, %v1187, %v1189
        %v1207 = vsel %vm1202, %v1191, %v1193
        %v1208 = vsel %vm1202, %v1193, %v1195
        %v1209 = vsel %vm1202, %v1197, %v1199
        %v1210 = vsel %vm1202, %v1199, %v1201
        %1219 = vrot.lane.b32.xlu0 %v560, 95
        %v1220 = vpop.permute.xlu0 %1219
        %1221 = vrot.lane.b32.xlu0 %v561, 95
        %v1222 = vpop.permute.xlu0 %1221
        %1223 = vrot.lane.b32.xlu0 %v562, 95
        %v1224 = vpop.permute.xlu0 %1223
        %1225 = vrot.lane.b32.xlu0 %v563, 95
        %v1226 = vpop.permute.xlu0 %1225
        %1227 = vrot.lane.b32.xlu0 %v564, 95
        %v1228 = vpop.permute.xlu0 %1227
        %1229 = vrot.lane.b32.xlu0 %v565, 95
        %v1230 = vpop.permute.xlu0 %1229
        %1231 = vrot.lane.b32.xlu0 %v566, 95
        %v1232 = vpop.permute.xlu0 %1231
        %1233 = vrot.lane.b32.xlu0 %v567, 95
        %v1234 = vpop.permute.xlu0 %1233
        %1235 = vrot.lane.b32.xlu0 %v568, 95
        %v1236 = vpop.permute.xlu0 %1235
        %1237 = vrot.lane.b32.xlu0 %v569, 95
        %v1238 = vpop.permute.xlu0 %1237
        %1239 = vrot.lane.b32.xlu0 %v570, 95
        %v1240 = vpop.permute.xlu0 %1239
        %1241 = vrot.lane.b32.xlu0 %v571, 95
        %v1242 = vpop.permute.xlu0 %1241
        %vm1243 = vcmask 777216
        %v1244 = vsel %vm1243, %v1220, %v1222
        %v1245 = vsel %vm1243, %v1222, %v1224
        %v1246 = vsel %vm1243, %v1226, %v1228
        %v1247 = vsel %vm1243, %v1228, %v1230
        %v1248 = vsel %vm1243, %v1232, %v1234
        %v1249 = vsel %vm1243, %v1234, %v1236
        %v1250 = vsel %vm1243, %v1238, %v1240
        %v1251 = vsel %vm1243, %v1240, %v1242
        %v1260 = vld [vmem:[#allocation9] sm:$0xff]
        %v1261 = vld [vmem:[#allocation9 + $0x8] sm:$0xff]
        %v1262 = vld [vmem:[#allocation9 + $0x10] sm:$0xf]
        %v1263 = vld [vmem:[#allocation9 + $0x14] sm:$0xff]
        %v1264 = vld [vmem:[#allocation9 + $0x1c] sm:$0xff]
        %v1265 = vld [vmem:[#allocation9 + $0x24] sm:$0xf]
        %v1266 = vld [vmem:[#allocation9 + $0x28] sm:$0xff]
        %v1267 = vld [vmem:[#allocation9 + $0x30] sm:$0xff]
        %v1268 = vld [vmem:[#allocation9 + $0x38] sm:$0xf]
        %v1269 = vld [vmem:[#allocation9 + $0x3c] sm:$0xff]
        %v1270 = vld [vmem:[#allocation9 + $0x44] sm:$0xff]
        %v1271 = vld [vmem:[#allocation9 + $0x4c] sm:$0xf]
        %v1272 = vld [vmem:[%s3] sm:$0xff]
        %v1273 = vld [vmem:[%s3 + $0x8] sm:$0xff]
        %v1274 = vld [vmem:[%s3 + $0x10] sm:$0xff]
        %v1275 = vld [vmem:[%s3 + $0x18] sm:$0xff]
        %1277 = vset.pattern.permute.xlu0 0
        %1278 = vperm.xlu0 %1277, %v1272
        %v1279 = vpop.permute.xlu0 %1278
        %1282 = vset.pattern.permute.xlu0 0
        %1283 = vperm.xlu0 %1282, %v1273
        %v1284 = vpop.permute.xlu0 %1283
        %1287 = vset.pattern.permute.xlu0 0
        %1288 = vperm.xlu0 %1287, %v1274
        %v1289 = vpop.permute.xlu0 %1288
        %1292 = vset.pattern.permute.xlu0 0
        %1293 = vperm.xlu0 %1292, %v1275
        %v1294 = vpop.permute.xlu0 %1293
        %v1308 = vunpack.c.l.b16 %v1260
        %v1309 = vunpack.c.h.b16 %v1260
        %v1310 = vunpack.c.l.b16 %v1261
        %v1311 = vunpack.c.h.b16 %v1261
        %v1312 = vunpack.c.l.b16 %v1262
        %v1313 = vunpack.c.l.b16 %v1263
        %v1314 = vunpack.c.h.b16 %v1263
        %v1315 = vunpack.c.l.b16 %v1264
        %v1316 = vunpack.c.h.b16 %v1264
        %v1317 = vunpack.c.l.b16 %v1265
        %v1318 = vunpack.c.l.b16 %v1266
        %v1319 = vunpack.c.h.b16 %v1266
        %v1320 = vunpack.c.l.b16 %v1267
        %v1321 = vunpack.c.h.b16 %v1267
        %v1322 = vunpack.c.l.b16 %v1268
        %v1323 = vunpack.c.l.b16 %v1269
        %v1324 = vunpack.c.h.b16 %v1269
        %v1325 = vunpack.c.l.b16 %v1270
        %v1326 = vunpack.c.h.b16 %v1270
        %v1327 = vunpack.c.l.b16 %v1271
        %v1328 = vpack.c.b16 %v1313, %v1308
        %v1329 = vpack.c.b16 %v1314, %v1309
        %v1330 = vpack.c.b16 %v1315, %v1310
        %v1331 = vpack.c.b16 %v1316, %v1311
        %v1332 = vpack.c.b16 %v1317, %v1312
        %v1333 = vpack.c.b16 %v1323, %v1318
        %v1334 = vpack.c.b16 %v1324, %v1319
        %v1335 = vpack.c.b16 %v1325, %v1320
        %v1336 = vpack.c.b16 %v1326, %v1321
        %v1337 = vpack.c.b16 %v1327, %v1322
        %vm1346 = vcmask 523264
        %v1348 = vsel %vm1346, %v1332, 0
        %v1351 = vsel %vm1346, %v1337, 0
        %1353 = vmatprep.subr.bf16.mxu0 %v545
        %1354 = vmatpush1.bf16.msra.mxu0 %v544
        %1355 = vmatprep.subr.bf16.mxu0 %v547
        %1356 = vmatpush1.bf16.msra.mxu0 %v546
        %1357 = vmatprep.subr.bf16.mxu0 %v549
        %1358 = vmatpush1.bf16.msra.mxu0 %v548
        %1359 = vmatprep.subr.bf16.mxu0 %v551
        %1360 = vmatpush1.bf16.msra.mxu0 %v550
        %1361 = vmatprep.subr.bf16.mxu0 %v1163
        %1362 = vmatpush1.bf16.msra.mxu0 %v1162
        %1363 = vmatprep.subr.bf16.mxu0 %v1165
        %1364 = vmatpush1.bf16.msra.mxu0 %v1164
        %1365 = vmatprep.subr.bf16.mxu0 %v1167
        %1366 = vmatpush1.bf16.msra.mxu0 %v1166
        %1367 = vmatprep.subr.bf16.mxu0 %v1169
        %1368 = vmatpush1.bf16.msra.mxu0 %v1168
        %1369 = vmatprep.subr.bf16.mxu0 %v698
        %1370 = vmatpush1.bf16.msra.mxu0 %v697
        %1371 = vmatprep.subr.bf16.mxu0 %v700
        %1372 = vmatpush1.bf16.msra.mxu0 %v699
        %1373 = vmatprep.subr.bf16.mxu0 %v702
        %1374 = vmatpush1.bf16.msra.mxu0 %v701
        %1375 = vmatprep.subr.bf16.mxu0 %v704
        %1376 = vmatpush1.bf16.msra.mxu0 %v703
        %1377 = vmatprep.subr.bf16.mxu0 %v803
        %1378 = vmatpush1.bf16.msra.mxu0 %v802
        %1379 = vmatprep.subr.bf16.mxu0 %v805
        %1380 = vmatpush1.bf16.msra.mxu0 %v804
        %1381 = vmatprep.subr.bf16.mxu0 %v807
        %1382 = vmatpush1.bf16.msra.mxu0 %v806
        %1383 = vmatprep.subr.bf16.mxu0 %v809
        %1384 = vmatpush1.bf16.msra.mxu0 %v808
        %1385 = vmatprep.mubr.bf16.mxu0 %v1329
        %1386 = vmatmul.mubr.bf16.gmra.mrb[0].mxu0 %v1328
        %v1387 = vpop.f32.mrb[0].mxu0
        %v1388 = vadd.f32 %v1279, %v1387
        %v1389 = vpop.f32.mrb[0].mxu0
        %v1390 = vadd.f32 %v1279, %v1389
        %v1391 = vpop.f32.mrb[0].mxu0
        %v1392 = vadd.f32 %v1284, %v1391
        %v1393 = vpop.f32.mrb[0].mxu0
        %v1394 = vadd.f32 %v1284, %v1393
        %1395 = vmatprep.mubr.bf16.mxu0 %v1334
        %1396 = vmatmul.mubr.bf16.gmra.mrb[0].mxu0 %v1333
        %v1397 = vpop.f32.mrb[0].mxu0
        %v1398 = vadd.f32 %v1289, %v1397
        %v1399 = vpop.f32.mrb[0].mxu0
        %v1400 = vadd.f32 %v1289, %v1399
        %v1401 = vpop.f32.mrb[0].mxu0
        %v1402 = vadd.f32 %v1294, %v1401
        %v1403 = vpop.f32.mrb[0].mxu0
        %v1404 = vadd.f32 %v1294, %v1403
        %1405 = vdwg.mxu0
        %1406 = vmatprep.subr.bf16.mxu0 %v1204
        %1407 = vmatpush1.bf16.msra.mxu0 %v1203
        %1408 = vmatprep.subr.bf16.mxu0 %v1206
        %1409 = vmatpush1.bf16.msra.mxu0 %v1205
        %1410 = vmatprep.subr.bf16.mxu0 %v1208
        %1411 = vmatpush1.bf16.msra.mxu0 %v1207
        %1412 = vmatprep.subr.bf16.mxu0 %v1210
        %1413 = vmatpush1.bf16.msra.mxu0 %v1209
        %1414 = vmatprep.subr.bf16.mxu0 %v908
        %1415 = vmatpush1.bf16.msra.mxu0 %v907
        %1416 = vmatprep.subr.bf16.mxu0 %v910
        %1417 = vmatpush1.bf16.msra.mxu0 %v909
        %1418 = vmatprep.subr.bf16.mxu0 %v912
        %1419 = vmatpush1.bf16.msra.mxu0 %v911
        %1420 = vmatprep.subr.bf16.mxu0 %v914
        %1421 = vmatpush1.bf16.msra.mxu0 %v913
        %1422 = vmatprep.subr.bf16.mxu0 %v1013
        %1423 = vmatpush1.bf16.msra.mxu0 %v1012
        %1424 = vmatprep.subr.bf16.mxu0 %v1015
        %1425 = vmatpush1.bf16.msra.mxu0 %v1014
        %1426 = vmatprep.subr.bf16.mxu0 %v1017
        %1427 = vmatpush1.bf16.msra.mxu0 %v1016
        %1428 = vmatprep.subr.bf16.mxu0 %v1019
        %1429 = vmatpush1.bf16.msra.mxu0 %v1018
        %1430 = vmatprep.subr.bf16.mxu0 %v1245
        %1431 = vmatpush1.bf16.msra.mxu0 %v1244
        %1432 = vmatprep.subr.bf16.mxu0 %v1247
        %1433 = vmatpush1.bf16.msra.mxu0 %v1246
        %1434 = vmatprep.subr.bf16.mxu0 %v1249
        %1435 = vmatpush1.bf16.msra.mxu0 %v1248
        %1436 = vmatprep.subr.bf16.mxu0 %v1251
        %1437 = vmatpush1.bf16.msra.mxu0 %v1250
        %1438 = vmatprep.mubr.bf16.mxu0 %v1331
        %1439 = vmatmul.mubr.bf16.gmra.mrb[0].mxu0 %v1330
        %v1440 = vpop.f32.mrb[0].mxu0
        %v1441 = vadd.f32 %v1388, %v1440
        %v1442 = vpop.f32.mrb[0].mxu0
        %v1443 = vadd.f32 %v1390, %v1442
        %v1444 = vpop.f32.mrb[0].mxu0
        %v1445 = vadd.f32 %v1392, %v1444
        %v1446 = vpop.f32.mrb[0].mxu0
        %v1447 = vadd.f32 %v1394, %v1446
        %1448 = vmatprep.mubr.bf16.mxu0 %v1336
        %1449 = vmatmul.mubr.bf16.gmra.mrb[0].mxu0 %v1335
        %v1450 = vpop.f32.mrb[0].mxu0
        %v1451 = vadd.f32 %v1398, %v1450
        %v1452 = vpop.f32.mrb[0].mxu0
        %v1453 = vadd.f32 %v1400, %v1452
        %v1454 = vpop.f32.mrb[0].mxu0
        %v1455 = vadd.f32 %v1402, %v1454
        %v1456 = vpop.f32.mrb[0].mxu0
        %v1457 = vadd.f32 %v1404, %v1456
        %1458 = vdwg.mxu0
        %1459 = vmatprep.subr.bf16.mxu0 %v1118
        %1460 = vmatpush1.bf16.msra.mxu0 %v1117
        %1461 = vmatprep.subr.bf16.mxu0 %v1120
        %1462 = vmatpush1.bf16.msra.mxu0 %v1119
        %1463 = vmatprep.subr.bf16.mxu0 %v1122
        %1464 = vmatpush1.bf16.msra.mxu0 %v1121
        %1465 = vmatprep.subr.bf16.mxu0 %v1124
        %1466 = vmatpush1.bf16.msra.mxu0 %v1123
        %1467 = vmatprep.subr.bf16.mxu0 0
        %1468 = vmatpush1.bf16.msra.mxu0 0
        %1469 = vmatprep.subr.bf16.mxu0 0
        %1470 = vmatpush1.bf16.msra.mxu0 0
        %1471 = vmatprep.subr.bf16.mxu0 0
        %1472 = vmatpush1.bf16.msra.mxu0 0
        %1473 = vmatprep.subr.bf16.mxu0 0
        %1474 = vmatpush1.bf16.msra.mxu0 0
        %1475 = vmatprep.subr.bf16.mxu0 0
        %1476 = vmatpush1.bf16.msra.mxu0 0
        %1477 = vmatprep.subr.bf16.mxu0 0
        %1478 = vmatpush1.bf16.msra.mxu0 0
        %1479 = vmatprep.subr.bf16.mxu0 0
        %1480 = vmatpush1.bf16.msra.mxu0 0
        %1481 = vmatprep.subr.bf16.mxu0 0
        %1482 = vmatpush1.bf16.msra.mxu0 0
        %1483 = vmatprep.subr.bf16.mxu0 0
        %1484 = vmatpush1.bf16.msra.mxu0 0
        %1485 = vmatprep.subr.bf16.mxu0 0
        %1486 = vmatpush1.bf16.msra.mxu0 0
        %1487 = vmatprep.subr.bf16.mxu0 0
        %1488 = vmatpush1.bf16.msra.mxu0 0
        %1489 = vmatprep.subr.bf16.mxu0 0
        %1490 = vmatpush1.bf16.msra.mxu0 0
        %1491 = vmatprep.mubr.bf16.mxu0 0
        %1492 = vmatmul.mubr.bf16.gmra.mrb[0].mxu0 %v1348
        %v1493 = vpop.f32.mrb[0].mxu0
        %v1494 = vadd.f32 %v1441, %v1493
        %v1495 = vpop.f32.mrb[0].mxu0
        %v1496 = vadd.f32 %v1443, %v1495
        %v1497 = vpop.f32.mrb[0].mxu0
        %v1498 = vadd.f32 %v1445, %v1497
        %v1499 = vpop.f32.mrb[0].mxu0
        %v1500 = vadd.f32 %v1447, %v1499
        %1501 = vmatprep.mubr.bf16.mxu0 0
        %1502 = vmatmul.mubr.bf16.gmra.mrb[0].mxu0 %v1351
        %v1503 = vpop.f32.mrb[0].mxu0
        %v1504 = vadd.f32 %v1451, %v1503
        %v1505 = vpop.f32.mrb[0].mxu0
        %v1506 = vadd.f32 %v1453, %v1505
        %v1507 = vpop.f32.mrb[0].mxu0
        %v1508 = vadd.f32 %v1455, %v1507
        %v1509 = vpop.f32.mrb[0].mxu0
        %v1510 = vadd.f32 %v1457, %v1509
        %1511 = vdwg.mxu0
        %v1512 = vmax.f32 %v1494, %v1496
        %1513 = vmax.xlane.f32.xlu0 %v1512
        %v1514 = vpop.xlane.xlu0 %1513
        %v1515 = vmax.f32 %v1498, %v1500
        %1516 = vmax.xlane.f32.xlu0 %v1515
        %v1517 = vpop.xlane.xlu0 %1516
        %v1518 = vmax.f32 %v1504, %v1506
        %1519 = vmax.xlane.f32.xlu0 %v1518
        %v1520 = vpop.xlane.xlu0 %1519
        %v1521 = vmax.f32 %v1508, %v1510
        %1522 = vmax.xlane.f32.xlu0 %v1521
        %v1523 = vpop.xlane.xlu0 %1522
        %v1524 = vadd.f32 %v1494, %v1496
        %1525 = vadd.xlane.f32.xlu0 %v1524
        %v1526 = vpop.xlane.xlu0 %1525
        %v1527 = vadd.f32 %v1498, %v1500
        %1528 = vadd.xlane.f32.xlu0 %v1527
        %v1529 = vpop.xlane.xlu0 %1528
        %v1530 = vadd.f32 %v1504, %v1506
        %1531 = vadd.xlane.f32.xlu0 %v1530
        %v1532 = vpop.xlane.xlu0 %1531
        %v1533 = vadd.f32 %v1508, %v1510
        %1534 = vadd.xlane.f32.xlu0 %v1533
        %v1535 = vpop.xlane.xlu0 %1534
        %v1536 = vmul.f32 %v1526, 0.00390625
        %v1537 = vmul.f32 %v1529, 0.00390625
        %v1538 = vmul.f32 %v1532, 0.00390625
        %v1539 = vmul.f32 %v1535, 0.00390625
        %vm1540 = vcmask 7168
        %v1541 = vsel %vm1540, %v1514, %v1536
        %v1542 = vsel %vm1540, %v1517, %v1537
        %v1543 = vsel %vm1540, %v1520, %v1538
        %v1544 = vsel %vm1540, %v1523, %v1539
        %v1545 = vld [vmem:[%s4] sm:$0x3]
        %vm1546 = vcmask 261120
        %v1548 = vsel %vm1546, %v1545, 0
        %1550 = vmatprep.subr.mxu0 0.0
        %1551 = vmatpush1.msra.mxu0 %v1541
        %1552 = vmatprep.subr.mxu0 0.0
        %1553 = vmatpush1.msra.mxu0 %v1542
        %1554 = vmatprep.subr.mxu0 0.0
        %1555 = vmatpush1.msra.mxu0 %v1543
        %1556 = vmatprep.subr.mxu0 0.0
        %1557 = vmatpush1.msra.mxu0 %v1544
        %1558 = vmatprep.subr.mxu0 0.0
        %1559 = vmatpush1.msra.mxu0 0.0
        %1560 = vmatprep.subr.mxu0 0.0
        %1561 = vmatpush1.msra.mxu0 0.0
        %1562 = vmatprep.subr.mxu0 0.0
        %1563 = vmatpush1.msra.mxu0 0.0
        %1564 = vmatprep.subr.mxu0 0.0
        %1565 = vmatpush1.msra.mxu0 0.0
        %1566 = vmatprep.subr.mxu0 0.0
        %1567 = vmatpush1.msra.mxu0 0.0
        %1568 = vmatprep.subr.mxu0 0.0
        %1569 = vmatpush1.msra.mxu0 0.0
        %1570 = vmatprep.subr.mxu0 0.0
        %1571 = vmatpush1.msra.mxu0 0.0
        %1572 = vmatprep.subr.mxu0 0.0
        %1573 = vmatpush1.msra.mxu0 0.0
        %1574 = vmatprep.subr.mxu0 0.0
        %1575 = vmatpush1.msra.mxu0 0.0
        %1576 = vmatprep.subr.mxu0 0.0
        %1577 = vmatpush1.msra.mxu0 0.0
        %1578 = vmatprep.subr.mxu0 0.0
        %1579 = vmatpush1.msra.mxu0 0.0
        %1580 = vmatprep.subr.mxu0 0.0
        %1581 = vmatpush1.msra.mxu0 0.0
        %1582 = vmatprep.subr.mxu0 0.0
        %1583 = vmatpush1.msra.mxu0 0.0
        %1584 = vmatprep.subr.mxu0 0.0
        %1585 = vmatpush1.msra.mxu0 0.0
        %1586 = vmatprep.subr.mxu0 0.0
        %1587 = vmatpush1.msra.mxu0 0.0
        %1588 = vmatprep.subr.mxu0 0.0
        %1589 = vmatpush1.msra.mxu0 0.0
        %1590 = vmatprep.subr.mxu0 0.0
        %1591 = vmatpush1.msra.mxu0 0.0
        %1592 = vmatprep.subr.mxu0 0.0
        %1593 = vmatpush1.msra.mxu0 0.0
        %1594 = vmatprep.subr.mxu0 0.0
        %1595 = vmatpush1.msra.mxu0 0.0
        %1596 = vmatprep.subr.mxu0 0.0
        %1597 = vmatpush1.msra.mxu0 0.0
        %1598 = vmatprep.subr.mxu0 0.0
        %1599 = vmatpush1.msra.mxu0 0.0
        %1600 = vmatprep.subr.mxu0 0.0
        %1601 = vmatpush1.msra.mxu0 0.0
        %1602 = vmatprep.subr.mxu0 0.0
        %1603 = vmatpush1.msra.mxu0 0.0
        %1604 = vmatprep.subr.mxu0 0.0
        %1605 = vmatpush1.msra.mxu0 0.0
        %1606 = vmatprep.subr.mxu0 0.0
        %1607 = vmatpush1.msra.mxu0 0.0
        %1608 = vmatprep.subr.mxu0 0.0
        %1609 = vmatpush1.msra.mxu0 0.0
        %1610 = vmatprep.subr.mxu0 0.0
        %1611 = vmatpush1.msra.mxu0 0.0
        %1612 = vmatprep.subr.mxu0 0.0
        %1613 = vmatpush1.msra.mxu0 0.0
        %1614 = vmatprep.mubr.f32.mxu0 0.0
        %1615 = vmatmul.mubr.f32.gmra.mrb[0].mxu0 %v1548
        %v1616 = vpop.f32.mrb[0].mxu0
        %v1617 = vadd.f32 0.0, %v1616
        %v1618 = vpop.f32.mrb[0].mxu0
        %1619 = vdwg.mxu0
        %v1620 = vmax.f32 %v1617, 0.0
        %1622 = vrot.lane.b32.xlu0 %v1620, 127
        %v1623 = vpop.permute.xlu0 %1622
        %v1625 = vadd.f32 %v1620, %v1623
        %v1626 = vld [vmem:[%s5] sm:$0xff]
        %v1627 = vld [vmem:[%s5 + $0x8] sm:$0xff]
        %v1628 = vld [vmem:[%s5 + $0x10] sm:$0xff]
        %v1629 = vld [vmem:[%s5 + $0x18] sm:$0xff]
        %vm1630 = vcmask 15360
        %v1632 = vsel %vm1630, %v1626, 0
        %v1635 = vsel %vm1630, %v1627, 0
        %v1638 = vsel %vm1630, %v1628, 0
        %v1641 = vsel %vm1630, %v1629, 0
        %vm1643 = vcmask 1041408
        %v1645 = vsel %vm1643, %v1625, 0
        %1647 = vmatprep.subr.mxu0 0.0
        %1648 = vmatpush1.msra.mxu0 %v1645
        %1649 = vmatprep.subr.mxu0 0.0
        %1650 = vmatpush1.msra.mxu0 0.0
        %1651 = vmatprep.subr.mxu0 0.0
        %1652 = vmatpush1.msra.mxu0 0.0
        %1653 = vmatprep.subr.mxu0 0.0
        %1654 = vmatpush1.msra.mxu0 0.0
        %1655 = vmatprep.subr.mxu0 0.0
        %1656 = vmatpush1.msra.mxu0 0.0
        %1657 = vmatprep.subr.mxu0 0.0
        %1658 = vmatpush1.msra.mxu0 0.0
        %1659 = vmatprep.subr.mxu0 0.0
        %1660 = vmatpush1.msra.mxu0 0.0
        %1661 = vmatprep.subr.mxu0 0.0
        %1662 = vmatpush1.msra.mxu0 0.0
        %1663 = vmatprep.subr.mxu0 0.0
        %1664 = vmatpush1.msra.mxu0 0.0
        %1665 = vmatprep.subr.mxu0 0.0
        %1666 = vmatpush1.msra.mxu0 0.0
        %1667 = vmatprep.subr.mxu0 0.0
        %1668 = vmatpush1.msra.mxu0 0.0
        %1669 = vmatprep.subr.mxu0 0.0
        %1670 = vmatpush1.msra.mxu0 0.0
        %1671 = vmatprep.subr.mxu0 0.0
        %1672 = vmatpush1.msra.mxu0 0.0
        %1673 = vmatprep.subr.mxu0 0.0
        %1674 = vmatpush1.msra.mxu0 0.0
        %1675 = vmatprep.subr.mxu0 0.0
        %1676 = vmatpush1.msra.mxu0 0.0
        %1677 = vmatprep.subr.mxu0 0.0
        %1678 = vmatpush1.msra.mxu0 0.0
        %1679 = vmatprep.subr.mxu0 0.0
        %1680 = vmatpush1.msra.mxu0 0.0
        %1681 = vmatprep.subr.mxu0 0.0
        %1682 = vmatpush1.msra.mxu0 0.0
        %1683 = vmatprep.subr.mxu0 0.0
        %1684 = vmatpush1.msra.mxu0 0.0
        %1685 = vmatprep.subr.mxu0 0.0
        %1686 = vmatpush1.msra.mxu0 0.0
        %1687 = vmatprep.subr.mxu0 0.0
        %1688 = vmatpush1.msra.mxu0 0.0
        %1689 = vmatprep.subr.mxu0 0.0
        %1690 = vmatpush1.msra.mxu0 0.0
        %1691 = vmatprep.subr.mxu0 0.0
        %1692 = vmatpush1.msra.mxu0 0.0
        %1693 = vmatprep.subr.mxu0 0.0
        %1694 = vmatpush1.msra.mxu0 0.0
        %1695 = vmatprep.subr.mxu0 0.0
        %1696 = vmatpush1.msra.mxu0 0.0
        %1697 = vmatprep.subr.mxu0 0.0
        %1698 = vmatpush1.msra.mxu0 0.0
        %1699 = vmatprep.subr.mxu0 0.0
        %1700 = vmatpush1.msra.mxu0 0.0
        %1701 = vmatprep.subr.mxu0 0.0
        %1702 = vmatpush1.msra.mxu0 0.0
        %1703 = vmatprep.subr.mxu0 0.0
        %1704 = vmatpush1.msra.mxu0 0.0
        %1705 = vmatprep.subr.mxu0 0.0
        %1706 = vmatpush1.msra.mxu0 0.0
        %1707 = vmatprep.subr.mxu0 0.0
        %1708 = vmatpush1.msra.mxu0 0.0
        %1709 = vmatprep.subr.mxu0 0.0
        %1710 = vmatpush1.msra.mxu0 0.0
        %1711 = vmatprep.mubr.f32.mxu0 0.0
        %1712 = vmatmul.mubr.f32.gmra.mrb[0].mxu0 %v1632
        %v1713 = vpop.f32.mrb[0].mxu0
        %v1714 = vadd.f32 0.0, %v1713
        %v1715 = vpop.f32.mrb[0].mxu0
        %1716 = vmatprep.mubr.f32.mxu0 0.0
        %1717 = vmatmul.mubr.f32.gmra.mrb[0].mxu0 %v1635
        %v1718 = vpop.f32.mrb[0].mxu0
        %v1719 = vadd.f32 0.0, %v1718
        %v1720 = vpop.f32.mrb[0].mxu0
        %1721 = vmatprep.mubr.f32.mxu0 0.0
        %1722 = vmatmul.mubr.f32.gmra.mrb[0].mxu0 %v1638
        %v1723 = vpop.f32.mrb[0].mxu0
        %v1724 = vadd.f32 0.0, %v1723
        %v1725 = vpop.f32.mrb[0].mxu0
        %1726 = vmatprep.mubr.f32.mxu0 0.0
        %1727 = vmatmul.mubr.f32.gmra.mrb[0].mxu0 %v1641
        %v1728 = vpop.f32.mrb[0].mxu0
        %v1729 = vadd.f32 0.0, %v1728
        %v1730 = vpop.f32.mrb[0].mxu0
        %1731 = vdwg.mxu0
        %v1732 = vxor.u32 %v1714, 2147483648
        %v1733 = vxor.u32 %v1719, 2147483648
        %v1734 = vxor.u32 %v1724, 2147483648
        %v1735 = vxor.u32 %v1729, 2147483648
        %v1736 = vmul.f32 %v1732, 1.442695
        %v1737 = vpow.pop %v1736
        %v1738 = vmul.f32 %v1733, 1.442695
        %v1739 = vpow.pop %v1738
        %v1740 = vmul.f32 %v1734, 1.442695
        %v1741 = vpow.pop %v1740
        %v1742 = vmul.f32 %v1735, 1.442695
        %v1743 = vpow.pop %v1742
        %v1744 = vadd.f32 %v1737, 1.0
        %v1745 = vadd.f32 %v1739, 1.0
        %v1746 = vadd.f32 %v1741, 1.0
        %v1747 = vadd.f32 %v1743, 1.0
        %v1748 = vrcp.pop %v1744
        %v1749 = vmul.f32 1.0, %v1748
        %v1750 = vrcp.pop %v1745
        %v1751 = vmul.f32 1.0, %v1750
        %v1752 = vrcp.pop %v1746
        %v1753 = vmul.f32 1.0, %v1752
        %v1754 = vrcp.pop %v1747
        %v1755 = vmul.f32 1.0, %v1754
        %v1756 = vmax.f32 %v1494, %v1504
        %v1757 = vmax.f32 %v1498, %v1508
        %v1758 = vmax.f32 %v1756, %v1757
        %v1759 = vrot.slane %v1758, 4
        %v1760 = vmax.f32 %v1758, %v1759
        %v1761 = vrot.slane %v1760, 2
        %v1762 = vmax.f32 %v1760, %v1761
        %v1763 = vrot.slane %v1762, 1
        %v1764 = vmax.f32 %v1762, %v1763
        %v1765 = vmax.f32 %v1496, %v1506
        %v1766 = vmax.f32 %v1500, %v1510
        %v1767 = vmax.f32 %v1765, %v1766
        %v1768 = vrot.slane %v1767, 4
        %v1769 = vmax.f32 %v1767, %v1768
        %v1770 = vrot.slane %v1769, 2
        %v1771 = vmax.f32 %v1769, %v1770
        %v1772 = vrot.slane %v1771, 1
        %v1773 = vmax.f32 %v1771, %v1772
        %v1774 = vadd.f32 %v1494, %v1498
        %v1775 = vadd.f32 %v1774, %v1504
        %v1776 = vadd.f32 %v1775, %v1508
        %v1777 = vrot.slane %v1776, 4
        %v1778 = vadd.f32 %v1776, %v1777
        %v1779 = vrot.slane %v1778, 2
        %v1780 = vadd.f32 %v1778, %v1779
        %v1781 = vrot.slane %v1780, 1
        %v1782 = vadd.f32 %v1780, %v1781
        %v1783 = vadd.f32 %v1496, %v1500
        %v1784 = vadd.f32 %v1783, %v1506
        %v1785 = vadd.f32 %v1784, %v1510
        %v1786 = vrot.slane %v1785, 4
        %v1787 = vadd.f32 %v1785, %v1786
        %v1788 = vrot.slane %v1787, 2
        %v1789 = vadd.f32 %v1787, %v1788
        %v1790 = vrot.slane %v1789, 1
        %v1791 = vadd.f32 %v1789, %v1790
        %v1792 = vmul.f32 %v1782, 0.03125
        %v1793 = vmul.f32 %v1791, 0.03125
        %vm1794 = vcmask 410624
        %1795 = vst.msk [vmem:[#allocation3] sm:$0x3] %vm1794, 0.0
        %vm1796 = vcmask 828824
        %1797 = vst.msk [vmem:[#allocation3 + $0x4] sm:$0x3] %vm1796, 0.0
        %v1800 = vcombine.low %v1764, %v1773
        %v1802 = vunpack.c.l.s4 1966171168
        %v1803 = vunpack.c.0.s8 %v1802
        %v1804 = vlaneseq
        %v1805 = vshrl.u32 %v1804, 7
        %v1806 = vsub.s32 %v1803, %v1805
        %v1807 = vrot.slane %v1800, %v1806
        %v1809 = vunpack.c.l.s4 1966171168
        %v1810 = vunpack.c.0.s8 %v1809
        %v1811 = vlaneseq
        %v1812 = vshrl.u32 %v1811, 7
        %v1813 = vsub.s32 %v1810, %v1812
        %v1814 = vrot.slane %v1807, %v1813
        %1815 = vrot.lane.b32.xlu0 %v1814, 51
        %v1816 = vpop.permute.xlu0 %1815
        %v1817 = vrot.slane %v1816, 7
        %vm1818 = vcmask 416768
        %v1819 = vsel %vm1818, %v1817, %v1816
        %v1821 = vlaneseq
        %vm1822 = vcmp.ge.s32.totalorder %v1821, 51
        %vm1823 = vcmp.lt.s32.totalorder %v1821, 307
        %vm1824 = vmand %vm1822, %vm1823
        %1825 = vst.msk [vmem:[#allocation3] ss:$2 sm:$0x7] %vm1824, %v1819
        %v1828 = vcombine.low %v1792, %v1793
        %v1830 = vunpack.c.l.s4 1966171168
        %v1831 = vunpack.c.0.s8 %v1830
        %v1832 = vlaneseq
        %v1833 = vshrl.u32 %v1832, 7
        %v1834 = vsub.s32 %v1831, %v1833
        %v1835 = vrot.slane %v1828, %v1834
        %v1837 = vunpack.c.l.s4 1966171168
        %v1838 = vunpack.c.0.s8 %v1837
        %v1839 = vlaneseq
        %v1840 = vshrl.u32 %v1839, 7
        %v1841 = vsub.s32 %v1838, %v1840
        %v1842 = vrot.slane %v1835, %v1841
        %1843 = vrot.lane.b32.xlu0 %v1842, 51
        %v1844 = vpop.permute.xlu0 %1843
        %v1845 = vrot.slane %v1844, 7
        %v1846 = vsel %vm1818, %v1845, %v1844
        %s1848 = scalar_lea.vmem [#allocation3], 1
        %1849 = vst.msk [vmem:[%s1848] ss:$2 sm:$0x7] %vm1824, %v1846
        %v1850 = vld [vmem:[%s6] sm:$0x3]
        %v1851 = vld [vmem:[#allocation3] sm:$0xf]
        %1853 = vset.pattern.permute.xlu0 0
        %1854 = vperm.xlu0 %1853, %v1850
        %v1855 = vpop.permute.xlu0 %1854
        %v1859 = vunpack.c.l.s4 1983009808
        %v1860 = vunpack.c.0.s8 %v1859
        %v1861 = vlaneseq
        %v1862 = vshrl.u32 %v1861, 7
        %v1863 = vsub.s32 %v1860, %v1862
        %v1864 = vrot.slane %v1851, %v1863
        %v1865 = vcombine.high %v1864, %v1864
        %v1868 = vmul.f32 %v1855, %v1864
        %v1869 = vmul.f32 %v1855, %v1865
        %v1870 = vld [vmem:[#allocation3] sm:$0x3f]
        %1871 = vset.pattern.permute.xlu0 7
        %1872 = vperm.xlu0 %1871, %v1850
        %v1873 = vpop.permute.xlu0 %1872
        %v1876 = vcombine.high %v1870, %v1870
        %v1878 = vunpack.c.l.s4 1983009808
        %v1879 = vunpack.c.0.s8 %v1878
        %v1880 = vlaneseq
        %v1881 = vshrl.u32 %v1880, 7
        %v1882 = vsub.s32 %v1879, %v1881
        %v1883 = vrot.slane %v1870, %v1882
        %v1885 = vunpack.c.l.s4 1983009808
        %v1886 = vunpack.c.0.s8 %v1885
        %v1887 = vlaneseq
        %v1888 = vshrl.u32 %v1887, 7
        %v1889 = vsub.s32 %v1886, %v1888
        %v1890 = vrot.slane %v1876, %v1889
        %v1891 = vcombine.high %v1883, %v1883
        %1892 = vrot.lane.b32.xlu0 %v1883, 112
        %v1893 = vpop.permute.xlu0 %1892
        %1894 = vrot.lane.b32.xlu0 %v1891, 112
        %v1895 = vpop.permute.xlu0 %1894
        %1896 = vrot.lane.b32.xlu0 %v1890, 112
        %v1897 = vpop.permute.xlu0 %1896
        %v1898 = vsel %vm753, %v1893, %v1895
        %v1899 = vsel %vm753, %v1895, %v1897
        %v1902 = vmul.f32 %v1873, %v1898
        %v1903 = vmul.f32 %v1873, %v1899
        %v1904 = vadd.f32 %v1868, %v1902
        %v1905 = vadd.f32 %v1869, %v1903
        %v1906 = vld [vmem:[#allocation3] sm:$0x3f]
        %1907 = vset.pattern.permute.xlu0 14
        %1908 = vperm.xlu0 %1907, %v1850
        %v1909 = vpop.permute.xlu0 %1908
        %v1912 = vcombine.high %v1906, %v1906
        %v1914 = vunpack.c.l.s4 1983009808
        %v1915 = vunpack.c.0.s8 %v1914
        %v1916 = vlaneseq
        %v1917 = vshrl.u32 %v1916, 7
        %v1918 = vsub.s32 %v1915, %v1917
        %v1919 = vrot.slane %v1906, %v1918
        %v1921 = vunpack.c.l.s4 1983009808
        %v1922 = vunpack.c.0.s8 %v1921
        %v1923 = vlaneseq
        %v1924 = vshrl.u32 %v1923, 7
        %v1925 = vsub.s32 %v1922, %v1924
        %v1926 = vrot.slane %v1912, %v1925
        %v1927 = vcombine.high %v1919, %v1919
        %1928 = vrot.lane.b32.xlu0 %v1919, 96
        %v1929 = vpop.permute.xlu0 %1928
        %1930 = vrot.lane.b32.xlu0 %v1927, 96
        %v1931 = vpop.permute.xlu0 %1930
        %1932 = vrot.lane.b32.xlu0 %v1926, 96
        %v1933 = vpop.permute.xlu0 %1932
        %v1934 = vsel %vm963, %v1929, %v1931
        %v1935 = vsel %vm963, %v1931, %v1933
        %v1938 = vmul.f32 %v1909, %v1934
        %v1939 = vmul.f32 %v1909, %v1935
        %v1940 = vadd.f32 %v1904, %v1938
        %v1941 = vadd.f32 %v1905, %v1939
        %v1942 = vld [vmem:[#allocation3] sm:$0x3f]
        %1943 = vset.pattern.permute.xlu0 21
        %1944 = vperm.xlu0 %1943, %v1850
        %v1945 = vpop.permute.xlu0 %1944
        %v1948 = vcombine.high %v1942, %v1942
        %v1950 = vunpack.c.l.s4 1983009808
        %v1951 = vunpack.c.0.s8 %v1950
        %v1952 = vlaneseq
        %v1953 = vshrl.u32 %v1952, 7
        %v1954 = vsub.s32 %v1951, %v1953
        %v1955 = vrot.slane %v1942, %v1954
        %v1957 = vunpack.c.l.s4 1983009808
        %v1958 = vunpack.c.0.s8 %v1957
        %v1959 = vlaneseq
        %v1960 = vshrl.u32 %v1959, 7
        %v1961 = vsub.s32 %v1958, %v1960
        %v1962 = vrot.slane %v1948, %v1961
        %v1963 = vcombine.high %v1955, %v1955
        %1964 = vrot.lane.b32.xlu0 %v1955, 80
        %v1965 = vpop.permute.xlu0 %1964
        %1966 = vrot.lane.b32.xlu0 %v1963, 80
        %v1967 = vpop.permute.xlu0 %1966
        %1968 = vrot.lane.b32.xlu0 %v1962, 80
        %v1969 = vpop.permute.xlu0 %1968
        %vm1970 = vcmask 654336
        %v1971 = vsel %vm1970, %v1965, %v1967
        %v1972 = vsel %vm1970, %v1967, %v1969
        %v1975 = vmul.f32 %v1945, %v1971
        %v1976 = vmul.f32 %v1945, %v1972
        %v1977 = vadd.f32 %v1940, %v1975
        %v1978 = vadd.f32 %v1941, %v1976
        %v1979 = vld [vmem:[#allocation3] sm:$0x3f]
        %1980 = vset.pattern.permute.xlu0 28
        %1981 = vperm.xlu0 %1980, %v1850
        %v1982 = vpop.permute.xlu0 %1981
        %v1985 = vcombine.high %v1979, %v1979
        %v1987 = vunpack.c.l.s4 1983009808
        %v1988 = vunpack.c.0.s8 %v1987
        %v1989 = vlaneseq
        %v1990 = vshrl.u32 %v1989, 7
        %v1991 = vsub.s32 %v1988, %v1990
        %v1992 = vrot.slane %v1979, %v1991
        %v1994 = vunpack.c.l.s4 1983009808
        %v1995 = vunpack.c.0.s8 %v1994
        %v1996 = vlaneseq
        %v1997 = vshrl.u32 %v1996, 7
        %v1998 = vsub.s32 %v1995, %v1997
        %v1999 = vrot.slane %v1985, %v1998
        %v2000 = vcombine.high %v1992, %v1992
        %2001 = vrot.lane.b32.xlu0 %v1992, 64
        %v2002 = vpop.permute.xlu0 %2001
        %2003 = vrot.lane.b32.xlu0 %v2000, 64
        %v2004 = vpop.permute.xlu0 %2003
        %2005 = vrot.lane.b32.xlu0 %v1999, 64
        %v2006 = vpop.permute.xlu0 %2005
        %v2007 = vsel %vm1346, %v2002, %v2004
        %v2008 = vsel %vm1346, %v2004, %v2006
        %v2011 = vmul.f32 %v1982, %v2007
        %v2012 = vmul.f32 %v1982, %v2008
        %v2013 = vadd.f32 %v1977, %v2011
        %v2014 = vadd.f32 %v1978, %v2012
        %v2015 = vld [vmem:[#allocation3] sm:$0x3f]
        %2016 = vset.pattern.permute.xlu0 35
        %2017 = vperm.xlu0 %2016, %v1850
        %v2018 = vpop.permute.xlu0 %2017
        %v2021 = vcombine.high %v2015, %v2015
        %v2023 = vunpack.c.l.s4 1983009808
        %v2024 = vunpack.c.0.s8 %v2023
        %v2025 = vlaneseq
        %v2026 = vshrl.u32 %v2025, 7
        %v2027 = vsub.s32 %v2024, %v2026
        %v2028 = vrot.slane %v2015, %v2027
        %v2030 = vunpack.c.l.s4 1983009808
        %v2031 = vunpack.c.0.s8 %v2030
        %v2032 = vlaneseq
        %v2033 = vshrl.u32 %v2032, 7
        %v2034 = vsub.s32 %v2031, %v2033
        %v2035 = vrot.slane %v2021, %v2034
        %v2036 = vcombine.high %v2028, %v2028
        %2037 = vrot.lane.b32.xlu0 %v2028, 48
        %v2038 = vpop.permute.xlu0 %2037
        %2039 = vrot.lane.b32.xlu0 %v2036, 48
        %v2040 = vpop.permute.xlu0 %2039
        %2041 = vrot.lane.b32.xlu0 %v2035, 48
        %v2042 = vpop.permute.xlu0 %2041
        %vm2043 = vcmask 392192
        %v2044 = vsel %vm2043, %v2038, %v2040
        %v2045 = vsel %vm2043, %v2040, %v2042
        %v2048 = vmul.f32 %v2018, %v2044
        %v2049 = vmul.f32 %v2018, %v2045
        %v2050 = vadd.f32 %v2013, %v2048
        %v2051 = vadd.f32 %v2014, %v2049
        %v2052 = vld [vmem:[#allocation3] sm:$0x3f]
        %2053 = vset.pattern.permute.xlu0 42
        %2054 = vperm.xlu0 %2053, %v1850
        %v2055 = vpop.permute.xlu0 %2054
        %v2058 = vcombine.high %v2052, %v2052
        %v2060 = vunpack.c.l.s4 1983009808
        %v2061 = vunpack.c.0.s8 %v2060
        %v2062 = vlaneseq
        %v2063 = vshrl.u32 %v2062, 7
        %v2064 = vsub.s32 %v2061, %v2063
        %v2065 = vrot.slane %v2052, %v2064
        %v2067 = vunpack.c.l.s4 1983009808
        %v2068 = vunpack.c.0.s8 %v2067
        %v2069 = vlaneseq
        %v2070 = vshrl.u32 %v2069, 7
        %v2071 = vsub.s32 %v2068, %v2070
        %v2072 = vrot.slane %v2058, %v2071
        %v2073 = vcombine.high %v2065, %v2065
        %2074 = vrot.lane.b32.xlu0 %v2065, 32
        %v2075 = vpop.permute.xlu0 %2074
        %2076 = vrot.lane.b32.xlu0 %v2073, 32
        %v2077 = vpop.permute.xlu0 %2076
        %2078 = vrot.lane.b32.xlu0 %v2072, 32
        %v2079 = vpop.permute.xlu0 %2078
        %v2080 = vsel %vm1546, %v2075, %v2077
        %v2081 = vsel %vm1546, %v2077, %v2079
        %v2084 = vmul.f32 %v2055, %v2080
        %v2085 = vmul.f32 %v2055, %v2081
        %v2086 = vadd.f32 %v2050, %v2084
        %v2087 = vadd.f32 %v2051, %v2085
        %v2088 = vsel %vm367, 1, 0
        %v2089 = vsel %vm368, 1, 0
        %vm2090 = vcmp.eq.s32.totalorder %v2088, 1
        %vm2091 = vcmp.eq.s32.totalorder %v2089, 1
        %v2092 = vsel %vm2090, %v2086, 0.0
        %v2093 = vsel %vm2091, %v2087, 0.0
        %v2094 = vld [vmem:[#allocation3] sm:$0x3f]
        %2095 = vset.pattern.permute.xlu0 1
        %2096 = vperm.xlu0 %2095, %v1850
        %v2097 = vpop.permute.xlu0 %2096
        %v2100 = vcombine.high %v2094, %v2094
        %v2102 = vunpack.c.l.s4 1983009808
        %v2103 = vunpack.c.0.s8 %v2102
        %v2104 = vlaneseq
        %v2105 = vshrl.u32 %v2104, 7
        %v2106 = vsub.s32 %v2103, %v2105
        %v2107 = vrot.slane %v2094, %v2106
        %v2109 = vunpack.c.l.s4 1983009808
        %v2110 = vunpack.c.0.s8 %v2109
        %v2111 = vlaneseq
        %v2112 = vshrl.u32 %v2111, 7
        %v2113 = vsub.s32 %v2110, %v2112
        %v2114 = vrot.slane %v2100, %v2113
        %v2115 = vcombine.high %v2107, %v2107
        %2116 = vrot.lane.b32.xlu0 %v2107, 127
        %v2117 = vpop.permute.xlu0 %2116
        %2118 = vrot.lane.b32.xlu0 %v2115, 127
        %v2119 = vpop.permute.xlu0 %2118
        %2120 = vrot.lane.b32.xlu0 %v2114, 127
        %v2121 = vpop.permute.xlu0 %2120
        %vm2122 = vcmask 1039360
        %v2123 = vsel %vm2122, %v2117, %v2119
        %v2124 = vsel %vm2122, %v2119, %v2121
        %v2127 = vmul.f32 %v2097, %v2123
        %v2128 = vmul.f32 %v2097, %v2124
        %v2129 = vld [vmem:[#allocation3] sm:$0x3f]
        %2130 = vset.pattern.permute.xlu0 8
        %2131 = vperm.xlu0 %2130, %v1850
        %v2132 = vpop.permute.xlu0 %2131
        %v2135 = vcombine.high %v2129, %v2129
        %v2137 = vunpack.c.l.s4 1983009808
        %v2138 = vunpack.c.0.s8 %v2137
        %v2139 = vlaneseq
        %v2140 = vshrl.u32 %v2139, 7
        %v2141 = vsub.s32 %v2138, %v2140
        %v2142 = vrot.slane %v2129, %v2141
        %v2144 = vunpack.c.l.s4 1983009808
        %v2145 = vunpack.c.0.s8 %v2144
        %v2146 = vlaneseq
        %v2147 = vshrl.u32 %v2146, 7
        %v2148 = vsub.s32 %v2145, %v2147
        %v2149 = vrot.slane %v2135, %v2148
        %v2150 = vcombine.high %v2142, %v2142
        %2151 = vrot.lane.b32.xlu0 %v2142, 111
        %v2152 = vpop.permute.xlu0 %2151
        %2153 = vrot.lane.b32.xlu0 %v2150, 111
        %v2154 = vpop.permute.xlu0 %2153
        %2155 = vrot.lane.b32.xlu0 %v2149, 111
        %v2156 = vpop.permute.xlu0 %2155
        %vm2157 = vcmask 908288
        %v2158 = vsel %vm2157, %v2152, %v2154
        %v2159 = vsel %vm2157, %v2154, %v2156
        %v2162 = vmul.f32 %v2132, %v2158
        %v2163 = vmul.f32 %v2132, %v2159
        %v2164 = vadd.f32 %v2127, %v2162
        %v2165 = vadd.f32 %v2128, %v2163
        %v2166 = vld [vmem:[#allocation3] sm:$0x3f]
        %2167 = vset.pattern.permute.xlu0 15
        %2168 = vperm.xlu0 %2167, %v1850
        %v2169 = vpop.permute.xlu0 %2168
        %v2172 = vcombine.high %v2166, %v2166
        %v2174 = vunpack.c.l.s4 1983009808
        %v2175 = vunpack.c.0.s8 %v2174
        %v2176 = vlaneseq
        %v2177 = vshrl.u32 %v2176, 7
        %v2178 = vsub.s32 %v2175, %v2177
        %v2179 = vrot.slane %v2166, %v2178
        %v2181 = vunpack.c.l.s4 1983009808
        %v2182 = vunpack.c.0.s8 %v2181
        %v2183 = vlaneseq
        %v2184 = vshrl.u32 %v2183, 7
        %v2185 = vsub.s32 %v2182, %v2184
        %v2186 = vrot.slane %v2172, %v2185
        %v2187 = vcombine.high %v2179, %v2179
        %2188 = vrot.lane.b32.xlu0 %v2179, 95
        %v2189 = vpop.permute.xlu0 %2188
        %2190 = vrot.lane.b32.xlu0 %v2187, 95
        %v2191 = vpop.permute.xlu0 %2190
        %2192 = vrot.lane.b32.xlu0 %v2186, 95
        %v2193 = vpop.permute.xlu0 %2192
        %vm2194 = vcmask 777216
        %v2195 = vsel %vm2194, %v2189, %v2191
        %v2196 = vsel %vm2194, %v2191, %v2193
        %v2199 = vmul.f32 %v2169, %v2195
        %v2200 = vmul.f32 %v2169, %v2196
        %v2201 = vadd.f32 %v2164, %v2199
        %v2202 = vadd.f32 %v2165, %v2200
        %v2203 = vld [vmem:[#allocation3] sm:$0x3f]
        %2204 = vset.pattern.permute.xlu0 22
        %2205 = vperm.xlu0 %2204, %v1850
        %v2206 = vpop.permute.xlu0 %2205
        %v2209 = vcombine.high %v2203, %v2203
        %v2211 = vunpack.c.l.s4 1983009808
        %v2212 = vunpack.c.0.s8 %v2211
        %v2213 = vlaneseq
        %v2214 = vshrl.u32 %v2213, 7
        %v2215 = vsub.s32 %v2212, %v2214
        %v2216 = vrot.slane %v2203, %v2215
        %v2218 = vunpack.c.l.s4 1983009808
        %v2219 = vunpack.c.0.s8 %v2218
        %v2220 = vlaneseq
        %v2221 = vshrl.u32 %v2220, 7
        %v2222 = vsub.s32 %v2219, %v2221
        %v2223 = vrot.slane %v2209, %v2222
        %v2224 = vcombine.high %v2216, %v2216
        %2225 = vrot.lane.b32.xlu0 %v2216, 79
        %v2226 = vpop.permute.xlu0 %2225
        %2227 = vrot.lane.b32.xlu0 %v2224, 79
        %v2228 = vpop.permute.xlu0 %2227
        %2229 = vrot.lane.b32.xlu0 %v2223, 79
        %v2230 = vpop.permute.xlu0 %2229
        %vm2231 = vcmask 646144
        %v2232 = vsel %vm2231, %v2226, %v2228
        %v2233 = vsel %vm2231, %v2228, %v2230
        %v2236 = vmul.f32 %v2206, %v2232
        %v2237 = vmul.f32 %v2206, %v2233
        %v2238 = vadd.f32 %v2201, %v2236
        %v2239 = vadd.f32 %v2202, %v2237
        %v2240 = vld [vmem:[#allocation3] sm:$0x3f]
        %2241 = vset.pattern.permute.xlu0 29
        %2242 = vperm.xlu0 %2241, %v1850
        %v2243 = vpop.permute.xlu0 %2242
        %v2246 = vcombine.high %v2240, %v2240
        %v2248 = vunpack.c.l.s4 1983009808
        %v2249 = vunpack.c.0.s8 %v2248
        %v2250 = vlaneseq
        %v2251 = vshrl.u32 %v2250, 7
        %v2252 = vsub.s32 %v2249, %v2251
        %v2253 = vrot.slane %v2240, %v2252
        %v2255 = vunpack.c.l.s4 1983009808
        %v2256 = vunpack.c.0.s8 %v2255
        %v2257 = vlaneseq
        %v2258 = vshrl.u32 %v2257, 7
        %v2259 = vsub.s32 %v2256, %v2258
        %v2260 = vrot.slane %v2246, %v2259
        %v2261 = vcombine.high %v2253, %v2253
        %2262 = vrot.lane.b32.xlu0 %v2253, 63
        %v2263 = vpop.permute.xlu0 %2262
        %2264 = vrot.lane.b32.xlu0 %v2261, 63
        %v2265 = vpop.permute.xlu0 %2264
        %2266 = vrot.lane.b32.xlu0 %v2260, 63
        %v2267 = vpop.permute.xlu0 %2266
        %vm2268 = vcmask 515072
        %v2269 = vsel %vm2268, %v2263, %v2265
        %v2270 = vsel %vm2268, %v2265, %v2267
        %v2273 = vmul.f32 %v2243, %v2269
        %v2274 = vmul.f32 %v2243, %v2270
        %v2275 = vadd.f32 %v2238, %v2273
        %v2276 = vadd.f32 %v2239, %v2274
        %v2277 = vld [vmem:[#allocation3] sm:$0x3f]
        %2278 = vset.pattern.permute.xlu0 36
        %2279 = vperm.xlu0 %2278, %v1850
        %v2280 = vpop.permute.xlu0 %2279
        %v2283 = vcombine.high %v2277, %v2277
        %v2285 = vunpack.c.l.s4 1983009808
        %v2286 = vunpack.c.0.s8 %v2285
        %v2287 = vlaneseq
        %v2288 = vshrl.u32 %v2287, 7
        %v2289 = vsub.s32 %v2286, %v2288
        %v2290 = vrot.slane %v2277, %v2289
        %v2292 = vunpack.c.l.s4 1983009808
        %v2293 = vunpack.c.0.s8 %v2292
        %v2294 = vlaneseq
        %v2295 = vshrl.u32 %v2294, 7
        %v2296 = vsub.s32 %v2293, %v2295
        %v2297 = vrot.slane %v2283, %v2296
        %v2298 = vcombine.high %v2290, %v2290
        %2299 = vrot.lane.b32.xlu0 %v2290, 47
        %v2300 = vpop.permute.xlu0 %2299
        %2301 = vrot.lane.b32.xlu0 %v2298, 47
        %v2302 = vpop.permute.xlu0 %2301
        %2303 = vrot.lane.b32.xlu0 %v2297, 47
        %v2304 = vpop.permute.xlu0 %2303
        %vm2305 = vcmask 384000
        %v2306 = vsel %vm2305, %v2300, %v2302
        %v2307 = vsel %vm2305, %v2302, %v2304
        %v2310 = vmul.f32 %v2280, %v2306
        %v2311 = vmul.f32 %v2280, %v2307
        %v2312 = vadd.f32 %v2275, %v2310
        %v2313 = vadd.f32 %v2276, %v2311
        %v2314 = vld [vmem:[#allocation3] sm:$0x3f]
        %2315 = vset.pattern.permute.xlu0 43
        %2316 = vperm.xlu0 %2315, %v1850
        %v2317 = vpop.permute.xlu0 %2316
        %v2320 = vcombine.high %v2314, %v2314
        %v2322 = vunpack.c.l.s4 1983009808
        %v2323 = vunpack.c.0.s8 %v2322
        %v2324 = vlaneseq
        %v2325 = vshrl.u32 %v2324, 7
        %v2326 = vsub.s32 %v2323, %v2325
        %v2327 = vrot.slane %v2314, %v2326
        %v2329 = vunpack.c.l.s4 1983009808
        %v2330 = vunpack.c.0.s8 %v2329
        %v2331 = vlaneseq
        %v2332 = vshrl.u32 %v2331, 7
        %v2333 = vsub.s32 %v2330, %v2332
        %v2334 = vrot.slane %v2320, %v2333
        %v2335 = vcombine.high %v2327, %v2327
        %2336 = vrot.lane.b32.xlu0 %v2327, 31
        %v2337 = vpop.permute.xlu0 %2336
        %2338 = vrot.lane.b32.xlu0 %v2335, 31
        %v2339 = vpop.permute.xlu0 %2338
        %2340 = vrot.lane.b32.xlu0 %v2334, 31
        %v2341 = vpop.permute.xlu0 %2340
        %vm2342 = vcmask 252928
        %v2343 = vsel %vm2342, %v2337, %v2339
        %v2344 = vsel %vm2342, %v2339, %v2341
        %v2347 = vmul.f32 %v2317, %v2343
        %v2348 = vmul.f32 %v2317, %v2344
        %v2349 = vadd.f32 %v2312, %v2347
        %v2350 = vadd.f32 %v2313, %v2348
        %v2351 = vsel %vm363, 1, 0
        %v2352 = vsel %vm364, 1, 0
        %vm2353 = vcmp.eq.s32.totalorder %v2351, 1
        %vm2354 = vcmp.eq.s32.totalorder %v2352, 1
        %v2355 = vsel %vm2353, %v2349, 0.0
        %v2356 = vsel %vm2354, %v2350, 0.0
        %v2357 = vld [vmem:[#allocation3] sm:$0x3f]
        %2358 = vset.pattern.permute.xlu0 2
        %2359 = vperm.xlu0 %2358, %v1850
        %v2360 = vpop.permute.xlu0 %2359
        %v2363 = vcombine.high %v2357, %v2357
        %v2365 = vunpack.c.l.s4 1983009808
        %v2366 = vunpack.c.0.s8 %v2365
        %v2367 = vlaneseq
        %v2368 = vshrl.u32 %v2367, 7
        %v2369 = vsub.s32 %v2366, %v2368
        %v2370 = vrot.slane %v2357, %v2369
        %v2372 = vunpack.c.l.s4 1983009808
        %v2373 = vunpack.c.0.s8 %v2372
        %v2374 = vlaneseq
        %v2375 = vshrl.u32 %v2374, 7
        %v2376 = vsub.s32 %v2373, %v2375
        %v2377 = vrot.slane %v2363, %v2376
        %v2378 = vcombine.high %v2370, %v2370
        %2379 = vrot.lane.b32.xlu0 %v2370, 126
        %v2380 = vpop.permute.xlu0 %2379
        %2381 = vrot.lane.b32.xlu0 %v2378, 126
        %v2382 = vpop.permute.xlu0 %2381
        %2383 = vrot.lane.b32.xlu0 %v2377, 126
        %v2384 = vpop.permute.xlu0 %2383
        %v2385 = vsel %vm648, %v2380, %v2382
        %v2386 = vsel %vm648, %v2382, %v2384
        %v2389 = vmul.f32 %v2360, %v2385
        %v2390 = vmul.f32 %v2360, %v2386
        %v2391 = vld [vmem:[#allocation3] sm:$0x3f]
        %2392 = vset.pattern.permute.xlu0 9
        %2393 = vperm.xlu0 %2392, %v1850
        %v2394 = vpop.permute.xlu0 %2393
        %v2397 = vcombine.high %v2391, %v2391
        %v2399 = vunpack.c.l.s4 1983009808
        %v2400 = vunpack.c.0.s8 %v2399
        %v2401 = vlaneseq
        %v2402 = vshrl.u32 %v2401, 7
        %v2403 = vsub.s32 %v2400, %v2402
        %v2404 = vrot.slane %v2391, %v2403
        %v2406 = vunpack.c.l.s4 1983009808
        %v2407 = vunpack.c.0.s8 %v2406
        %v2408 = vlaneseq
        %v2409 = vshrl.u32 %v2408, 7
        %v2410 = vsub.s32 %v2407, %v2409
        %v2411 = vrot.slane %v2397, %v2410
        %v2412 = vcombine.high %v2404, %v2404
        %2413 = vrot.lane.b32.xlu0 %v2404, 110
        %v2414 = vpop.permute.xlu0 %2413
        %2415 = vrot.lane.b32.xlu0 %v2412, 110
        %v2416 = vpop.permute.xlu0 %2415
        %2417 = vrot.lane.b32.xlu0 %v2411, 110
        %v2418 = vpop.permute.xlu0 %2417
        %v2419 = vsel %vm858, %v2414, %v2416
        %v2420 = vsel %vm858, %v2416, %v2418
        %v2423 = vmul.f32 %v2394, %v2419
        %v2424 = vmul.f32 %v2394, %v2420
        %v2425 = vadd.f32 %v2389, %v2423
        %v2426 = vadd.f32 %v2390, %v2424
        %v2427 = vld [vmem:[#allocation3] sm:$0x3f]
        %2428 = vset.pattern.permute.xlu0 16
        %2429 = vperm.xlu0 %2428, %v1850
        %v2430 = vpop.permute.xlu0 %2429
        %v2433 = vcombine.high %v2427, %v2427
        %v2435 = vunpack.c.l.s4 1983009808
        %v2436 = vunpack.c.0.s8 %v2435
        %v2437 = vlaneseq
        %v2438 = vshrl.u32 %v2437, 7
        %v2439 = vsub.s32 %v2436, %v2438
        %v2440 = vrot.slane %v2427, %v2439
        %v2442 = vunpack.c.l.s4 1983009808
        %v2443 = vunpack.c.0.s8 %v2442
        %v2444 = vlaneseq
        %v2445 = vshrl.u32 %v2444, 7
        %v2446 = vsub.s32 %v2443, %v2445
        %v2447 = vrot.slane %v2433, %v2446
        %v2448 = vcombine.high %v2440, %v2440
        %2449 = vrot.lane.b32.xlu0 %v2440, 94
        %v2450 = vpop.permute.xlu0 %2449
        %2451 = vrot.lane.b32.xlu0 %v2448, 94
        %v2452 = vpop.permute.xlu0 %2451
        %2453 = vrot.lane.b32.xlu0 %v2447, 94
        %v2454 = vpop.permute.xlu0 %2453
        %v2455 = vsel %vm1068, %v2450, %v2452
        %v2456 = vsel %vm1068, %v2452, %v2454
        %v2459 = vmul.f32 %v2430, %v2455
        %v2460 = vmul.f32 %v2430, %v2456
        %v2461 = vadd.f32 %v2425, %v2459
        %v2462 = vadd.f32 %v2426, %v2460
        %v2463 = vld [vmem:[#allocation3] sm:$0x3f]
        %2464 = vset.pattern.permute.xlu0 23
        %2465 = vperm.xlu0 %2464, %v1850
        %v2466 = vpop.permute.xlu0 %2465
        %v2469 = vcombine.high %v2463, %v2463
        %v2471 = vunpack.c.l.s4 1983009808
        %v2472 = vunpack.c.0.s8 %v2471
        %v2473 = vlaneseq
        %v2474 = vshrl.u32 %v2473, 7
        %v2475 = vsub.s32 %v2472, %v2474
        %v2476 = vrot.slane %v2463, %v2475
        %v2478 = vunpack.c.l.s4 1983009808
        %v2479 = vunpack.c.0.s8 %v2478
        %v2480 = vlaneseq
        %v2481 = vshrl.u32 %v2480, 7
        %v2482 = vsub.s32 %v2479, %v2481
        %v2483 = vrot.slane %v2469, %v2482
        %v2484 = vcombine.high %v2476, %v2476
        %2485 = vrot.lane.b32.xlu0 %v2476, 78
        %v2486 = vpop.permute.xlu0 %2485
        %2487 = vrot.lane.b32.xlu0 %v2484, 78
        %v2488 = vpop.permute.xlu0 %2487
        %2489 = vrot.lane.b32.xlu0 %v2483, 78
        %v2490 = vpop.permute.xlu0 %2489
        %vm2491 = vcmask 637952
        %v2492 = vsel %vm2491, %v2486, %v2488
        %v2493 = vsel %vm2491, %v2488, %v2490
        %v2496 = vmul.f32 %v2466, %v2492
        %v2497 = vmul.f32 %v2466, %v2493
        %v2498 = vadd.f32 %v2461, %v2496
        %v2499 = vadd.f32 %v2462, %v2497
        %v2500 = vld [vmem:[#allocation3] sm:$0x3f]
        %2501 = vset.pattern.permute.xlu0 30
        %2502 = vperm.xlu0 %2501, %v1850
        %v2503 = vpop.permute.xlu0 %2502
        %v2506 = vcombine.high %v2500, %v2500
        %v2508 = vunpack.c.l.s4 1983009808
        %v2509 = vunpack.c.0.s8 %v2508
        %v2510 = vlaneseq
        %v2511 = vshrl.u32 %v2510, 7
        %v2512 = vsub.s32 %v2509, %v2511
        %v2513 = vrot.slane %v2500, %v2512
        %v2515 = vunpack.c.l.s4 1983009808
        %v2516 = vunpack.c.0.s8 %v2515
        %v2517 = vlaneseq
        %v2518 = vshrl.u32 %v2517, 7
        %v2519 = vsub.s32 %v2516, %v2518
        %v2520 = vrot.slane %v2506, %v2519
        %v2521 = vcombine.high %v2513, %v2513
        %2522 = vrot.lane.b32.xlu0 %v2513, 62
        %v2523 = vpop.permute.xlu0 %2522
        %2524 = vrot.lane.b32.xlu0 %v2521, 62
        %v2525 = vpop.permute.xlu0 %2524
        %2526 = vrot.lane.b32.xlu0 %v2520, 62
        %v2527 = vpop.permute.xlu0 %2526
        %vm2528 = vcmask 506880
        %v2529 = vsel %vm2528, %v2523, %v2525
        %v2530 = vsel %vm2528, %v2525, %v2527
        %v2533 = vmul.f32 %v2503, %v2529
        %v2534 = vmul.f32 %v2503, %v2530
        %v2535 = vadd.f32 %v2498, %v2533
        %v2536 = vadd.f32 %v2499, %v2534
        %v2537 = vld [vmem:[#allocation3] sm:$0x3f]
        %2538 = vset.pattern.permute.xlu0 37
        %2539 = vperm.xlu0 %2538, %v1850
        %v2540 = vpop.permute.xlu0 %2539
        %v2543 = vcombine.high %v2537, %v2537
        %v2545 = vunpack.c.l.s4 1983009808
        %v2546 = vunpack.c.0.s8 %v2545
        %v2547 = vlaneseq
        %v2548 = vshrl.u32 %v2547, 7
        %v2549 = vsub.s32 %v2546, %v2548
        %v2550 = vrot.slane %v2537, %v2549
        %v2552 = vunpack.c.l.s4 1983009808
        %v2553 = vunpack.c.0.s8 %v2552
        %v2554 = vlaneseq
        %v2555 = vshrl.u32 %v2554, 7
        %v2556 = vsub.s32 %v2553, %v2555
        %v2557 = vrot.slane %v2543, %v2556
        %v2558 = vcombine.high %v2550, %v2550
        %2559 = vrot.lane.b32.xlu0 %v2550, 46
        %v2560 = vpop.permute.xlu0 %2559
        %2561 = vrot.lane.b32.xlu0 %v2558, 46
        %v2562 = vpop.permute.xlu0 %2561
        %2563 = vrot.lane.b32.xlu0 %v2557, 46
        %v2564 = vpop.permute.xlu0 %2563
        %vm2565 = vcmask 375808
        %v2566 = vsel %vm2565, %v2560, %v2562
        %v2567 = vsel %vm2565, %v2562, %v2564
        %v2570 = vmul.f32 %v2540, %v2566
        %v2571 = vmul.f32 %v2540, %v2567
        %v2572 = vadd.f32 %v2535, %v2570
        %v2573 = vadd.f32 %v2536, %v2571
        %v2574 = vld [vmem:[#allocation3] sm:$0x3f]
        %2575 = vset.pattern.permute.xlu0 44
        %2576 = vperm.xlu0 %2575, %v1850
        %v2577 = vpop.permute.xlu0 %2576
        %v2580 = vcombine.high %v2574, %v2574
        %v2582 = vunpack.c.l.s4 1983009808
        %v2583 = vunpack.c.0.s8 %v2582
        %v2584 = vlaneseq
        %v2585 = vshrl.u32 %v2584, 7
        %v2586 = vsub.s32 %v2583, %v2585
        %v2587 = vrot.slane %v2574, %v2586
        %v2589 = vunpack.c.l.s4 1983009808
        %v2590 = vunpack.c.0.s8 %v2589
        %v2591 = vlaneseq
        %v2592 = vshrl.u32 %v2591, 7
        %v2593 = vsub.s32 %v2590, %v2592
        %v2594 = vrot.slane %v2580, %v2593
        %v2595 = vcombine.high %v2587, %v2587
        %2596 = vrot.lane.b32.xlu0 %v2587, 30
        %v2597 = vpop.permute.xlu0 %2596
        %2598 = vrot.lane.b32.xlu0 %v2595, 30
        %v2599 = vpop.permute.xlu0 %2598
        %2600 = vrot.lane.b32.xlu0 %v2594, 30
        %v2601 = vpop.permute.xlu0 %2600
        %vm2602 = vcmask 244736
        %v2603 = vsel %vm2602, %v2597, %v2599
        %v2604 = vsel %vm2602, %v2599, %v2601
        %v2607 = vmul.f32 %v2577, %v2603
        %v2608 = vmul.f32 %v2577, %v2604
        %v2609 = vadd.f32 %v2572, %v2607
        %v2610 = vadd.f32 %v2573, %v2608
        %v2611 = vsel %vm526, %v2609, 0.0
        %v2612 = vsel %vm527, %v2610, 0.0
        %v2613 = vld [vmem:[#allocation3] sm:$0x3f]
        %2614 = vset.pattern.permute.xlu0 3
        %2615 = vperm.xlu0 %2614, %v1850
        %v2616 = vpop.permute.xlu0 %2615
        %v2619 = vcombine.high %v2613, %v2613
        %v2621 = vunpack.c.l.s4 1983009808
        %v2622 = vunpack.c.0.s8 %v2621
        %v2623 = vlaneseq
        %v2624 = vshrl.u32 %v2623, 7
        %v2625 = vsub.s32 %v2622, %v2624
        %v2626 = vrot.slane %v2613, %v2625
        %v2628 = vunpack.c.l.s4 1983009808
        %v2629 = vunpack.c.0.s8 %v2628
        %v2630 = vlaneseq
        %v2631 = vshrl.u32 %v2630, 7
        %v2632 = vsub.s32 %v2629, %v2631
        %v2633 = vrot.slane %v2619, %v2632
        %v2634 = vcombine.high %v2626, %v2626
        %2635 = vrot.lane.b32.xlu0 %v2626, 125
        %v2636 = vpop.permute.xlu0 %2635
        %2637 = vrot.lane.b32.xlu0 %v2634, 125
        %v2638 = vpop.permute.xlu0 %2637
        %2639 = vrot.lane.b32.xlu0 %v2633, 125
        %v2640 = vpop.permute.xlu0 %2639
        %vm2641 = vcmask 1022976
        %v2642 = vsel %vm2641, %v2636, %v2638
        %v2643 = vsel %vm2641, %v2638, %v2640
        %v2646 = vmul.f32 %v2616, %v2642
        %v2647 = vmul.f32 %v2616, %v2643
        %v2648 = vld [vmem:[#allocation3] sm:$0x3f]
        %2649 = vset.pattern.permute.xlu0 10
        %2650 = vperm.xlu0 %2649, %v1850
        %v2651 = vpop.permute.xlu0 %2650
        %v2654 = vcombine.high %v2648, %v2648
        %v2656 = vunpack.c.l.s4 1983009808
        %v2657 = vunpack.c.0.s8 %v2656
        %v2658 = vlaneseq
        %v2659 = vshrl.u32 %v2658, 7
        %v2660 = vsub.s32 %v2657, %v2659
        %v2661 = vrot.slane %v2648, %v2660
        %v2663 = vunpack.c.l.s4 1983009808
        %v2664 = vunpack.c.0.s8 %v2663
        %v2665 = vlaneseq
        %v2666 = vshrl.u32 %v2665, 7
        %v2667 = vsub.s32 %v2664, %v2666
        %v2668 = vrot.slane %v2654, %v2667
        %v2669 = vcombine.high %v2661, %v2661
        %2670 = vrot.lane.b32.xlu0 %v2661, 109
        %v2671 = vpop.permute.xlu0 %2670
        %2672 = vrot.lane.b32.xlu0 %v2669, 109
        %v2673 = vpop.permute.xlu0 %2672
        %2674 = vrot.lane.b32.xlu0 %v2668, 109
        %v2675 = vpop.permute.xlu0 %2674
        %vm2676 = vcmask 891904
        %v2677 = vsel %vm2676, %v2671, %v2673
        %v2678 = vsel %vm2676, %v2673, %v2675
        %v2681 = vmul.f32 %v2651, %v2677
        %v2682 = vmul.f32 %v2651, %v2678
        %v2683 = vadd.f32 %v2646, %v2681
        %v2684 = vadd.f32 %v2647, %v2682
        %v2685 = vld [vmem:[#allocation3] sm:$0x3f]
        %2686 = vset.pattern.permute.xlu0 17
        %2687 = vperm.xlu0 %2686, %v1850
        %v2688 = vpop.permute.xlu0 %2687
        %v2691 = vcombine.high %v2685, %v2685
        %v2693 = vunpack.c.l.s4 1983009808
        %v2694 = vunpack.c.0.s8 %v2693
        %v2695 = vlaneseq
        %v2696 = vshrl.u32 %v2695, 7
        %v2697 = vsub.s32 %v2694, %v2696
        %v2698 = vrot.slane %v2685, %v2697
        %v2700 = vunpack.c.l.s4 1983009808
        %v2701 = vunpack.c.0.s8 %v2700
        %v2702 = vlaneseq
        %v2703 = vshrl.u32 %v2702, 7
        %v2704 = vsub.s32 %v2701, %v2703
        %v2705 = vrot.slane %v2691, %v2704
        %v2706 = vcombine.high %v2698, %v2698
        %2707 = vrot.lane.b32.xlu0 %v2698, 93
        %v2708 = vpop.permute.xlu0 %2707
        %2709 = vrot.lane.b32.xlu0 %v2706, 93
        %v2710 = vpop.permute.xlu0 %2709
        %2711 = vrot.lane.b32.xlu0 %v2705, 93
        %v2712 = vpop.permute.xlu0 %2711
        %vm2713 = vcmask 760832
        %v2714 = vsel %vm2713, %v2708, %v2710
        %v2715 = vsel %vm2713, %v2710, %v2712
        %v2718 = vmul.f32 %v2688, %v2714
        %v2719 = vmul.f32 %v2688, %v2715
        %v2720 = vadd.f32 %v2683, %v2718
        %v2721 = vadd.f32 %v2684, %v2719
        %v2722 = vld [vmem:[#allocation3] sm:$0x3f]
        %2723 = vset.pattern.permute.xlu0 24
        %2724 = vperm.xlu0 %2723, %v1850
        %v2725 = vpop.permute.xlu0 %2724
        %v2728 = vcombine.high %v2722, %v2722
        %v2730 = vunpack.c.l.s4 1983009808
        %v2731 = vunpack.c.0.s8 %v2730
        %v2732 = vlaneseq
        %v2733 = vshrl.u32 %v2732, 7
        %v2734 = vsub.s32 %v2731, %v2733
        %v2735 = vrot.slane %v2722, %v2734
        %v2737 = vunpack.c.l.s4 1983009808
        %v2738 = vunpack.c.0.s8 %v2737
        %v2739 = vlaneseq
        %v2740 = vshrl.u32 %v2739, 7
        %v2741 = vsub.s32 %v2738, %v2740
        %v2742 = vrot.slane %v2728, %v2741
        %v2743 = vcombine.high %v2735, %v2735
        %2744 = vrot.lane.b32.xlu0 %v2735, 77
        %v2745 = vpop.permute.xlu0 %2744
        %2746 = vrot.lane.b32.xlu0 %v2743, 77
        %v2747 = vpop.permute.xlu0 %2746
        %2748 = vrot.lane.b32.xlu0 %v2742, 77
        %v2749 = vpop.permute.xlu0 %2748
        %vm2750 = vcmask 629760
        %v2751 = vsel %vm2750, %v2745, %v2747
        %v2752 = vsel %vm2750, %v2747, %v2749
        %v2755 = vmul.f32 %v2725, %v2751
        %v2756 = vmul.f32 %v2725, %v2752
        %v2757 = vadd.f32 %v2720, %v2755
        %v2758 = vadd.f32 %v2721, %v2756
        %v2759 = vld [vmem:[#allocation3] sm:$0x3f]
        %2760 = vset.pattern.permute.xlu0 31
        %2761 = vperm.xlu0 %2760, %v1850
        %v2762 = vpop.permute.xlu0 %2761
        %v2765 = vcombine.high %v2759, %v2759
        %v2767 = vunpack.c.l.s4 1983009808
        %v2768 = vunpack.c.0.s8 %v2767
        %v2769 = vlaneseq
        %v2770 = vshrl.u32 %v2769, 7
        %v2771 = vsub.s32 %v2768, %v2770
        %v2772 = vrot.slane %v2759, %v2771
        %v2774 = vunpack.c.l.s4 1983009808
        %v2775 = vunpack.c.0.s8 %v2774
        %v2776 = vlaneseq
        %v2777 = vshrl.u32 %v2776, 7
        %v2778 = vsub.s32 %v2775, %v2777
        %v2779 = vrot.slane %v2765, %v2778
        %v2780 = vcombine.high %v2772, %v2772
        %2781 = vrot.lane.b32.xlu0 %v2772, 61
        %v2782 = vpop.permute.xlu0 %2781
        %2783 = vrot.lane.b32.xlu0 %v2780, 61
        %v2784 = vpop.permute.xlu0 %2783
        %2785 = vrot.lane.b32.xlu0 %v2779, 61
        %v2786 = vpop.permute.xlu0 %2785
        %vm2787 = vcmask 498688
        %v2788 = vsel %vm2787, %v2782, %v2784
        %v2789 = vsel %vm2787, %v2784, %v2786
        %v2792 = vmul.f32 %v2762, %v2788
        %v2793 = vmul.f32 %v2762, %v2789
        %v2794 = vadd.f32 %v2757, %v2792
        %v2795 = vadd.f32 %v2758, %v2793
        %v2796 = vld [vmem:[#allocation3] sm:$0x3f]
        %2797 = vset.pattern.permute.xlu0 38
        %2798 = vperm.xlu0 %2797, %v1850
        %v2799 = vpop.permute.xlu0 %2798
        %v2802 = vcombine.high %v2796, %v2796
        %v2804 = vunpack.c.l.s4 1983009808
        %v2805 = vunpack.c.0.s8 %v2804
        %v2806 = vlaneseq
        %v2807 = vshrl.u32 %v2806, 7
        %v2808 = vsub.s32 %v2805, %v2807
        %v2809 = vrot.slane %v2796, %v2808
        %v2811 = vunpack.c.l.s4 1983009808
        %v2812 = vunpack.c.0.s8 %v2811
        %v2813 = vlaneseq
        %v2814 = vshrl.u32 %v2813, 7
        %v2815 = vsub.s32 %v2812, %v2814
        %v2816 = vrot.slane %v2802, %v2815
        %v2817 = vcombine.high %v2809, %v2809
        %2818 = vrot.lane.b32.xlu0 %v2809, 45
        %v2819 = vpop.permute.xlu0 %2818
        %2820 = vrot.lane.b32.xlu0 %v2817, 45
        %v2821 = vpop.permute.xlu0 %2820
        %2822 = vrot.lane.b32.xlu0 %v2816, 45
        %v2823 = vpop.permute.xlu0 %2822
        %vm2824 = vcmask 367616
        %v2825 = vsel %vm2824, %v2819, %v2821
        %v2826 = vsel %vm2824, %v2821, %v2823
        %v2829 = vmul.f32 %v2799, %v2825
        %v2830 = vmul.f32 %v2799, %v2826
        %v2831 = vadd.f32 %v2794, %v2829
        %v2832 = vadd.f32 %v2795, %v2830
        %v2833 = vld [vmem:[#allocation3] sm:$0x3f]
        %2834 = vset.pattern.permute.xlu0 45
        %2835 = vperm.xlu0 %2834, %v1850
        %v2836 = vpop.permute.xlu0 %2835
        %v2839 = vcombine.high %v2833, %v2833
        %v2841 = vunpack.c.l.s4 1983009808
        %v2842 = vunpack.c.0.s8 %v2841
        %v2843 = vlaneseq
        %v2844 = vshrl.u32 %v2843, 7
        %v2845 = vsub.s32 %v2842, %v2844
        %v2846 = vrot.slane %v2833, %v2845
        %v2848 = vunpack.c.l.s4 1983009808
        %v2849 = vunpack.c.0.s8 %v2848
        %v2850 = vlaneseq
        %v2851 = vshrl.u32 %v2850, 7
        %v2852 = vsub.s32 %v2849, %v2851
        %v2853 = vrot.slane %v2839, %v2852
        %v2854 = vcombine.high %v2846, %v2846
        %2855 = vrot.lane.b32.xlu0 %v2846, 29
        %v2856 = vpop.permute.xlu0 %2855
        %2857 = vrot.lane.b32.xlu0 %v2854, 29
        %v2858 = vpop.permute.xlu0 %2857
        %2859 = vrot.lane.b32.xlu0 %v2853, 29
        %v2860 = vpop.permute.xlu0 %2859
        %vm2861 = vcmask 236544
        %v2862 = vsel %vm2861, %v2856, %v2858
        %v2863 = vsel %vm2861, %v2858, %v2860
        %v2866 = vmul.f32 %v2836, %v2862
        %v2867 = vmul.f32 %v2836, %v2863
        %v2868 = vadd.f32 %v2831, %v2866
        %v2869 = vadd.f32 %v2832, %v2867
        %v2870 = vld [vmem:[#allocation3] sm:$0x3f]
        %2871 = vset.pattern.permute.xlu0 4
        %2872 = vperm.xlu0 %2871, %v1850
        %v2873 = vpop.permute.xlu0 %2872
        %v2876 = vcombine.high %v2870, %v2870
        %v2878 = vunpack.c.l.s4 1983009808
        %v2879 = vunpack.c.0.s8 %v2878
        %v2880 = vlaneseq
        %v2881 = vshrl.u32 %v2880, 7
        %v2882 = vsub.s32 %v2879, %v2881
        %v2883 = vrot.slane %v2870, %v2882
        %v2885 = vunpack.c.l.s4 1983009808
        %v2886 = vunpack.c.0.s8 %v2885
        %v2887 = vlaneseq
        %v2888 = vshrl.u32 %v2887, 7
        %v2889 = vsub.s32 %v2886, %v2888
        %v2890 = vrot.slane %v2876, %v2889
        %v2891 = vcombine.high %v2883, %v2883
        %2892 = vrot.lane.b32.xlu0 %v2883, 124
        %v2893 = vpop.permute.xlu0 %2892
        %2894 = vrot.lane.b32.xlu0 %v2891, 124
        %v2895 = vpop.permute.xlu0 %2894
        %2896 = vrot.lane.b32.xlu0 %v2890, 124
        %v2897 = vpop.permute.xlu0 %2896
        %vm2898 = vcmask 1014784
        %v2899 = vsel %vm2898, %v2893, %v2895
        %v2900 = vsel %vm2898, %v2895, %v2897
        %v2903 = vmul.f32 %v2873, %v2899
        %v2904 = vmul.f32 %v2873, %v2900
        %v2905 = vld [vmem:[#allocation3] sm:$0x3f]
        %2906 = vset.pattern.permute.xlu0 11
        %2907 = vperm.xlu0 %2906, %v1850
        %v2908 = vpop.permute.xlu0 %2907
        %v2911 = vcombine.high %v2905, %v2905
        %v2913 = vunpack.c.l.s4 1983009808
        %v2914 = vunpack.c.0.s8 %v2913
        %v2915 = vlaneseq
        %v2916 = vshrl.u32 %v2915, 7
        %v2917 = vsub.s32 %v2914, %v2916
        %v2918 = vrot.slane %v2905, %v2917
        %v2920 = vunpack.c.l.s4 1983009808
        %v2921 = vunpack.c.0.s8 %v2920
        %v2922 = vlaneseq
        %v2923 = vshrl.u32 %v2922, 7
        %v2924 = vsub.s32 %v2921, %v2923
        %v2925 = vrot.slane %v2911, %v2924
        %v2926 = vcombine.high %v2918, %v2918
        %2927 = vrot.lane.b32.xlu0 %v2918, 108
        %v2928 = vpop.permute.xlu0 %2927
        %2929 = vrot.lane.b32.xlu0 %v2926, 108
        %v2930 = vpop.permute.xlu0 %2929
        %2931 = vrot.lane.b32.xlu0 %v2925, 108
        %v2932 = vpop.permute.xlu0 %2931
        %vm2933 = vcmask 883712
        %v2934 = vsel %vm2933, %v2928, %v2930
        %v2935 = vsel %vm2933, %v2930, %v2932
        %v2938 = vmul.f32 %v2908, %v2934
        %v2939 = vmul.f32 %v2908, %v2935
        %v2940 = vadd.f32 %v2903, %v2938
        %v2941 = vadd.f32 %v2904, %v2939
        %v2942 = vld [vmem:[#allocation3] sm:$0x3f]
        %2943 = vset.pattern.permute.xlu0 18
        %2944 = vperm.xlu0 %2943, %v1850
        %v2945 = vpop.permute.xlu0 %2944
        %v2948 = vcombine.high %v2942, %v2942
        %v2950 = vunpack.c.l.s4 1983009808
        %v2951 = vunpack.c.0.s8 %v2950
        %v2952 = vlaneseq
        %v2953 = vshrl.u32 %v2952, 7
        %v2954 = vsub.s32 %v2951, %v2953
        %v2955 = vrot.slane %v2942, %v2954
        %v2957 = vunpack.c.l.s4 1983009808
        %v2958 = vunpack.c.0.s8 %v2957
        %v2959 = vlaneseq
        %v2960 = vshrl.u32 %v2959, 7
        %v2961 = vsub.s32 %v2958, %v2960
        %v2962 = vrot.slane %v2948, %v2961
        %v2963 = vcombine.high %v2955, %v2955
        %2964 = vrot.lane.b32.xlu0 %v2955, 92
        %v2965 = vpop.permute.xlu0 %2964
        %2966 = vrot.lane.b32.xlu0 %v2963, 92
        %v2967 = vpop.permute.xlu0 %2966
        %2968 = vrot.lane.b32.xlu0 %v2962, 92
        %v2969 = vpop.permute.xlu0 %2968
        %vm2970 = vcmask 752640
        %v2971 = vsel %vm2970, %v2965, %v2967
        %v2972 = vsel %vm2970, %v2967, %v2969
        %v2975 = vmul.f32 %v2945, %v2971
        %v2976 = vmul.f32 %v2945, %v2972
        %v2977 = vadd.f32 %v2940, %v2975
        %v2978 = vadd.f32 %v2941, %v2976
        %v2979 = vld [vmem:[#allocation3] sm:$0x3f]
        %2980 = vset.pattern.permute.xlu0 25
        %2981 = vperm.xlu0 %2980, %v1850
        %v2982 = vpop.permute.xlu0 %2981
        %v2985 = vcombine.high %v2979, %v2979
        %v2987 = vunpack.c.l.s4 1983009808
        %v2988 = vunpack.c.0.s8 %v2987
        %v2989 = vlaneseq
        %v2990 = vshrl.u32 %v2989, 7
        %v2991 = vsub.s32 %v2988, %v2990
        %v2992 = vrot.slane %v2979, %v2991
        %v2994 = vunpack.c.l.s4 1983009808
        %v2995 = vunpack.c.0.s8 %v2994
        %v2996 = vlaneseq
        %v2997 = vshrl.u32 %v2996, 7
        %v2998 = vsub.s32 %v2995, %v2997
        %v2999 = vrot.slane %v2985, %v2998
        %v3000 = vcombine.high %v2992, %v2992
        %3001 = vrot.lane.b32.xlu0 %v2992, 76
        %v3002 = vpop.permute.xlu0 %3001
        %3003 = vrot.lane.b32.xlu0 %v3000, 76
        %v3004 = vpop.permute.xlu0 %3003
        %3005 = vrot.lane.b32.xlu0 %v2999, 76
        %v3006 = vpop.permute.xlu0 %3005
        %vm3007 = vcmask 621568
        %v3008 = vsel %vm3007, %v3002, %v3004
        %v3009 = vsel %vm3007, %v3004, %v3006
        %v3012 = vmul.f32 %v2982, %v3008
        %v3013 = vmul.f32 %v2982, %v3009
        %v3014 = vadd.f32 %v2977, %v3012
        %v3015 = vadd.f32 %v2978, %v3013
        %v3016 = vld [vmem:[#allocation3] sm:$0x3f]
        %3017 = vset.pattern.permute.xlu0 32
        %3018 = vperm.xlu0 %3017, %v1850
        %v3019 = vpop.permute.xlu0 %3018
        %v3022 = vcombine.high %v3016, %v3016
        %v3024 = vunpack.c.l.s4 1983009808
        %v3025 = vunpack.c.0.s8 %v3024
        %v3026 = vlaneseq
        %v3027 = vshrl.u32 %v3026, 7
        %v3028 = vsub.s32 %v3025, %v3027
        %v3029 = vrot.slane %v3016, %v3028
        %v3031 = vunpack.c.l.s4 1983009808
        %v3032 = vunpack.c.0.s8 %v3031
        %v3033 = vlaneseq
        %v3034 = vshrl.u32 %v3033, 7
        %v3035 = vsub.s32 %v3032, %v3034
        %v3036 = vrot.slane %v3022, %v3035
        %v3037 = vcombine.high %v3029, %v3029
        %3038 = vrot.lane.b32.xlu0 %v3029, 60
        %v3039 = vpop.permute.xlu0 %3038
        %3040 = vrot.lane.b32.xlu0 %v3037, 60
        %v3041 = vpop.permute.xlu0 %3040
        %3042 = vrot.lane.b32.xlu0 %v3036, 60
        %v3043 = vpop.permute.xlu0 %3042
        %vm3044 = vcmask 490496
        %v3045 = vsel %vm3044, %v3039, %v3041
        %v3046 = vsel %vm3044, %v3041, %v3043
        %v3049 = vmul.f32 %v3019, %v3045
        %v3050 = vmul.f32 %v3019, %v3046
        %v3051 = vadd.f32 %v3014, %v3049
        %v3052 = vadd.f32 %v3015, %v3050
        %v3053 = vld [vmem:[#allocation3] sm:$0x3f]
        %3054 = vset.pattern.permute.xlu0 39
        %3055 = vperm.xlu0 %3054, %v1850
        %v3056 = vpop.permute.xlu0 %3055
        %v3059 = vcombine.high %v3053, %v3053
        %v3061 = vunpack.c.l.s4 1983009808
        %v3062 = vunpack.c.0.s8 %v3061
        %v3063 = vlaneseq
        %v3064 = vshrl.u32 %v3063, 7
        %v3065 = vsub.s32 %v3062, %v3064
        %v3066 = vrot.slane %v3053, %v3065
        %v3068 = vunpack.c.l.s4 1983009808
        %v3069 = vunpack.c.0.s8 %v3068
        %v3070 = vlaneseq
        %v3071 = vshrl.u32 %v3070, 7
        %v3072 = vsub.s32 %v3069, %v3071
        %v3073 = vrot.slane %v3059, %v3072
        %v3074 = vcombine.high %v3066, %v3066
        %3075 = vrot.lane.b32.xlu0 %v3066, 44
        %v3076 = vpop.permute.xlu0 %3075
        %3077 = vrot.lane.b32.xlu0 %v3074, 44
        %v3078 = vpop.permute.xlu0 %3077
        %3079 = vrot.lane.b32.xlu0 %v3073, 44
        %v3080 = vpop.permute.xlu0 %3079
        %vm3081 = vcmask 359424
        %v3082 = vsel %vm3081, %v3076, %v3078
        %v3083 = vsel %vm3081, %v3078, %v3080
        %v3086 = vmul.f32 %v3056, %v3082
        %v3087 = vmul.f32 %v3056, %v3083
        %v3088 = vadd.f32 %v3051, %v3086
        %v3089 = vadd.f32 %v3052, %v3087
        %v3090 = vld [vmem:[#allocation3] sm:$0x3f]
        %3091 = vset.pattern.permute.xlu0 46
        %3092 = vperm.xlu0 %3091, %v1850
        %v3093 = vpop.permute.xlu0 %3092
        %v3096 = vcombine.high %v3090, %v3090
        %v3098 = vunpack.c.l.s4 1983009808
        %v3099 = vunpack.c.0.s8 %v3098
        %v3100 = vlaneseq
        %v3101 = vshrl.u32 %v3100, 7
        %v3102 = vsub.s32 %v3099, %v3101
        %v3103 = vrot.slane %v3090, %v3102
        %v3105 = vunpack.c.l.s4 1983009808
        %v3106 = vunpack.c.0.s8 %v3105
        %v3107 = vlaneseq
        %v3108 = vshrl.u32 %v3107, 7
        %v3109 = vsub.s32 %v3106, %v3108
        %v3110 = vrot.slane %v3096, %v3109
        %v3111 = vcombine.high %v3103, %v3103
        %3112 = vrot.lane.b32.xlu0 %v3103, 28
        %v3113 = vpop.permute.xlu0 %3112
        %3114 = vrot.lane.b32.xlu0 %v3111, 28
        %v3115 = vpop.permute.xlu0 %3114
        %3116 = vrot.lane.b32.xlu0 %v3110, 28
        %v3117 = vpop.permute.xlu0 %3116
        %vm3118 = vcmask 228352
        %v3119 = vsel %vm3118, %v3113, %v3115
        %v3120 = vsel %vm3118, %v3115, %v3117
        %v3123 = vmul.f32 %v3093, %v3119
        %v3124 = vmul.f32 %v3093, %v3120
        %v3125 = vadd.f32 %v3088, %v3123
        %v3126 = vadd.f32 %v3089, %v3124
        %v3127 = vsel %vm574, %v3125, 0.0
        %v3128 = vsel %vm575, %v3126, 0.0
        %v3129 = vld [vmem:[#allocation3] sm:$0x3f]
        %3130 = vset.pattern.permute.xlu0 5
        %3131 = vperm.xlu0 %3130, %v1850
        %v3132 = vpop.permute.xlu0 %3131
        %v3135 = vcombine.high %v3129, %v3129
        %v3137 = vunpack.c.l.s4 1983009808
        %v3138 = vunpack.c.0.s8 %v3137
        %v3139 = vlaneseq
        %v3140 = vshrl.u32 %v3139, 7
        %v3141 = vsub.s32 %v3138, %v3140
        %v3142 = vrot.slane %v3129, %v3141
        %v3144 = vunpack.c.l.s4 1983009808
        %v3145 = vunpack.c.0.s8 %v3144
        %v3146 = vlaneseq
        %v3147 = vshrl.u32 %v3146, 7
        %v3148 = vsub.s32 %v3145, %v3147
        %v3149 = vrot.slane %v3135, %v3148
        %v3150 = vcombine.high %v3142, %v3142
        %3151 = vrot.lane.b32.xlu0 %v3142, 123
        %v3152 = vpop.permute.xlu0 %3151
        %3153 = vrot.lane.b32.xlu0 %v3150, 123
        %v3154 = vpop.permute.xlu0 %3153
        %3155 = vrot.lane.b32.xlu0 %v3149, 123
        %v3156 = vpop.permute.xlu0 %3155
        %vm3157 = vcmask 1006592
        %v3158 = vsel %vm3157, %v3152, %v3154
        %v3159 = vsel %vm3157, %v3154, %v3156
        %v3162 = vmul.f32 %v3132, %v3158
        %v3163 = vmul.f32 %v3132, %v3159
        %v3164 = vld [vmem:[#allocation3] sm:$0x3f]
        %3165 = vset.pattern.permute.xlu0 12
        %3166 = vperm.xlu0 %3165, %v1850
        %v3167 = vpop.permute.xlu0 %3166
        %v3170 = vcombine.high %v3164, %v3164
        %v3172 = vunpack.c.l.s4 1983009808
        %v3173 = vunpack.c.0.s8 %v3172
        %v3174 = vlaneseq
        %v3175 = vshrl.u32 %v3174, 7
        %v3176 = vsub.s32 %v3173, %v3175
        %v3177 = vrot.slane %v3164, %v3176
        %v3179 = vunpack.c.l.s4 1983009808
        %v3180 = vunpack.c.0.s8 %v3179
        %v3181 = vlaneseq
        %v3182 = vshrl.u32 %v3181, 7
        %v3183 = vsub.s32 %v3180, %v3182
        %v3184 = vrot.slane %v3170, %v3183
        %v3185 = vcombine.high %v3177, %v3177
        %3186 = vrot.lane.b32.xlu0 %v3177, 107
        %v3187 = vpop.permute.xlu0 %3186
        %3188 = vrot.lane.b32.xlu0 %v3185, 107
        %v3189 = vpop.permute.xlu0 %3188
        %3190 = vrot.lane.b32.xlu0 %v3184, 107
        %v3191 = vpop.permute.xlu0 %3190
        %vm3192 = vcmask 875520
        %v3193 = vsel %vm3192, %v3187, %v3189
        %v3194 = vsel %vm3192, %v3189, %v3191
        %v3197 = vmul.f32 %v3167, %v3193
        %v3198 = vmul.f32 %v3167, %v3194
        %v3199 = vadd.f32 %v3162, %v3197
        %v3200 = vadd.f32 %v3163, %v3198
        %v3201 = vld [vmem:[#allocation3] sm:$0x3f]
        %3202 = vset.pattern.permute.xlu0 19
        %3203 = vperm.xlu0 %3202, %v1850
        %v3204 = vpop.permute.xlu0 %3203
        %v3207 = vcombine.high %v3201, %v3201
        %v3209 = vunpack.c.l.s4 1983009808
        %v3210 = vunpack.c.0.s8 %v3209
        %v3211 = vlaneseq
        %v3212 = vshrl.u32 %v3211, 7
        %v3213 = vsub.s32 %v3210, %v3212
        %v3214 = vrot.slane %v3201, %v3213
        %v3216 = vunpack.c.l.s4 1983009808
        %v3217 = vunpack.c.0.s8 %v3216
        %v3218 = vlaneseq
        %v3219 = vshrl.u32 %v3218, 7
        %v3220 = vsub.s32 %v3217, %v3219
        %v3221 = vrot.slane %v3207, %v3220
        %v3222 = vcombine.high %v3214, %v3214
        %3223 = vrot.lane.b32.xlu0 %v3214, 91
        %v3224 = vpop.permute.xlu0 %3223
        %3225 = vrot.lane.b32.xlu0 %v3222, 91
        %v3226 = vpop.permute.xlu0 %3225
        %3227 = vrot.lane.b32.xlu0 %v3221, 91
        %v3228 = vpop.permute.xlu0 %3227
        %vm3229 = vcmask 744448
        %v3230 = vsel %vm3229, %v3224, %v3226
        %v3231 = vsel %vm3229, %v3226, %v3228
        %v3234 = vmul.f32 %v3204, %v3230
        %v3235 = vmul.f32 %v3204, %v3231
        %v3236 = vadd.f32 %v3199, %v3234
        %v3237 = vadd.f32 %v3200, %v3235
        %v3238 = vld [vmem:[#allocation3] sm:$0x3f]
        %3239 = vset.pattern.permute.xlu0 26
        %3240 = vperm.xlu0 %3239, %v1850
        %v3241 = vpop.permute.xlu0 %3240
        %v3244 = vcombine.high %v3238, %v3238
        %v3246 = vunpack.c.l.s4 1983009808
        %v3247 = vunpack.c.0.s8 %v3246
        %v3248 = vlaneseq
        %v3249 = vshrl.u32 %v3248, 7
        %v3250 = vsub.s32 %v3247, %v3249
        %v3251 = vrot.slane %v3238, %v3250
        %v3253 = vunpack.c.l.s4 1983009808
        %v3254 = vunpack.c.0.s8 %v3253
        %v3255 = vlaneseq
        %v3256 = vshrl.u32 %v3255, 7
        %v3257 = vsub.s32 %v3254, %v3256
        %v3258 = vrot.slane %v3244, %v3257
        %v3259 = vcombine.high %v3251, %v3251
        %3260 = vrot.lane.b32.xlu0 %v3251, 75
        %v3261 = vpop.permute.xlu0 %3260
        %3262 = vrot.lane.b32.xlu0 %v3259, 75
        %v3263 = vpop.permute.xlu0 %3262
        %3264 = vrot.lane.b32.xlu0 %v3258, 75
        %v3265 = vpop.permute.xlu0 %3264
        %vm3266 = vcmask 613376
        %v3267 = vsel %vm3266, %v3261, %v3263
        %v3268 = vsel %vm3266, %v3263, %v3265
        %v3271 = vmul.f32 %v3241, %v3267
        %v3272 = vmul.f32 %v3241, %v3268
        %v3273 = vadd.f32 %v3236, %v3271
        %v3274 = vadd.f32 %v3237, %v3272
        %v3275 = vld [vmem:[#allocation3] sm:$0x3f]
        %3276 = vset.pattern.permute.xlu0 33
        %3277 = vperm.xlu0 %3276, %v1850
        %v3278 = vpop.permute.xlu0 %3277
        %v3281 = vcombine.high %v3275, %v3275
        %v3283 = vunpack.c.l.s4 1983009808
        %v3284 = vunpack.c.0.s8 %v3283
        %v3285 = vlaneseq
        %v3286 = vshrl.u32 %v3285, 7
        %v3287 = vsub.s32 %v3284, %v3286
        %v3288 = vrot.slane %v3275, %v3287
        %v3290 = vunpack.c.l.s4 1983009808
        %v3291 = vunpack.c.0.s8 %v3290
        %v3292 = vlaneseq
        %v3293 = vshrl.u32 %v3292, 7
        %v3294 = vsub.s32 %v3291, %v3293
        %v3295 = vrot.slane %v3281, %v3294
        %v3296 = vcombine.high %v3288, %v3288
        %3297 = vrot.lane.b32.xlu0 %v3288, 59
        %v3298 = vpop.permute.xlu0 %3297
        %3299 = vrot.lane.b32.xlu0 %v3296, 59
        %v3300 = vpop.permute.xlu0 %3299
        %3301 = vrot.lane.b32.xlu0 %v3295, 59
        %v3302 = vpop.permute.xlu0 %3301
        %vm3303 = vcmask 482304
        %v3304 = vsel %vm3303, %v3298, %v3300
        %v3305 = vsel %vm3303, %v3300, %v3302
        %v3308 = vmul.f32 %v3278, %v3304
        %v3309 = vmul.f32 %v3278, %v3305
        %v3310 = vadd.f32 %v3273, %v3308
        %v3311 = vadd.f32 %v3274, %v3309
        %v3312 = vld [vmem:[#allocation3] sm:$0x3f]
        %3313 = vset.pattern.permute.xlu0 40
        %3314 = vperm.xlu0 %3313, %v1850
        %v3315 = vpop.permute.xlu0 %3314
        %v3318 = vcombine.high %v3312, %v3312
        %v3320 = vunpack.c.l.s4 1983009808
        %v3321 = vunpack.c.0.s8 %v3320
        %v3322 = vlaneseq
        %v3323 = vshrl.u32 %v3322, 7
        %v3324 = vsub.s32 %v3321, %v3323
        %v3325 = vrot.slane %v3312, %v3324
        %v3327 = vunpack.c.l.s4 1983009808
        %v3328 = vunpack.c.0.s8 %v3327
        %v3329 = vlaneseq
        %v3330 = vshrl.u32 %v3329, 7
        %v3331 = vsub.s32 %v3328, %v3330
        %v3332 = vrot.slane %v3318, %v3331
        %v3333 = vcombine.high %v3325, %v3325
        %3334 = vrot.lane.b32.xlu0 %v3325, 43
        %v3335 = vpop.permute.xlu0 %3334
        %3336 = vrot.lane.b32.xlu0 %v3333, 43
        %v3337 = vpop.permute.xlu0 %3336
        %3338 = vrot.lane.b32.xlu0 %v3332, 43
        %v3339 = vpop.permute.xlu0 %3338
        %vm3340 = vcmask 351232
        %v3341 = vsel %vm3340, %v3335, %v3337
        %v3342 = vsel %vm3340, %v3337, %v3339
        %v3345 = vmul.f32 %v3315, %v3341
        %v3346 = vmul.f32 %v3315, %v3342
        %v3347 = vadd.f32 %v3310, %v3345
        %v3348 = vadd.f32 %v3311, %v3346
        %v3349 = vld [vmem:[#allocation3] sm:$0x3f]
        %3350 = vset.pattern.permute.xlu0 47
        %3351 = vperm.xlu0 %3350, %v1850
        %v3352 = vpop.permute.xlu0 %3351
        %v3355 = vcombine.high %v3349, %v3349
        %v3357 = vunpack.c.l.s4 1983009808
        %v3358 = vunpack.c.0.s8 %v3357
        %v3359 = vlaneseq
        %v3360 = vshrl.u32 %v3359, 7
        %v3361 = vsub.s32 %v3358, %v3360
        %v3362 = vrot.slane %v3349, %v3361
        %v3364 = vunpack.c.l.s4 1983009808
        %v3365 = vunpack.c.0.s8 %v3364
        %v3366 = vlaneseq
        %v3367 = vshrl.u32 %v3366, 7
        %v3368 = vsub.s32 %v3365, %v3367
        %v3369 = vrot.slane %v3355, %v3368
        %v3370 = vcombine.high %v3362, %v3362
        %3371 = vrot.lane.b32.xlu0 %v3362, 27
        %v3372 = vpop.permute.xlu0 %3371
        %3373 = vrot.lane.b32.xlu0 %v3370, 27
        %v3374 = vpop.permute.xlu0 %3373
        %3375 = vrot.lane.b32.xlu0 %v3369, 27
        %v3376 = vpop.permute.xlu0 %3375
        %vm3377 = vcmask 220160
        %v3378 = vsel %vm3377, %v3372, %v3374
        %v3379 = vsel %vm3377, %v3374, %v3376
        %v3382 = vmul.f32 %v3352, %v3378
        %v3383 = vmul.f32 %v3352, %v3379
        %v3384 = vadd.f32 %v3347, %v3382
        %v3385 = vadd.f32 %v3348, %v3383
        %v3386 = vsel %vm361, 1, 0
        %v3387 = vsel %vm362, 1, 0
        %vm3388 = vcmp.eq.s32.totalorder %v3386, 1
        %vm3389 = vcmp.eq.s32.totalorder %v3387, 1
        %v3390 = vsel %vm3388, %v3384, 0.0
        %v3391 = vsel %vm3389, %v3385, 0.0
        %v3392 = vld [vmem:[#allocation3] sm:$0x3f]
        %3393 = vset.pattern.permute.xlu0 6
        %3394 = vperm.xlu0 %3393, %v1850
        %v3395 = vpop.permute.xlu0 %3394
        %v3398 = vcombine.high %v3392, %v3392
        %v3400 = vunpack.c.l.s4 1983009808
        %v3401 = vunpack.c.0.s8 %v3400
        %v3402 = vlaneseq
        %v3403 = vshrl.u32 %v3402, 7
        %v3404 = vsub.s32 %v3401, %v3403
        %v3405 = vrot.slane %v3392, %v3404
        %v3407 = vunpack.c.l.s4 1983009808
        %v3408 = vunpack.c.0.s8 %v3407
        %v3409 = vlaneseq
        %v3410 = vshrl.u32 %v3409, 7
        %v3411 = vsub.s32 %v3408, %v3410
        %v3412 = vrot.slane %v3398, %v3411
        %v3413 = vcombine.high %v3405, %v3405
        %3414 = vrot.lane.b32.xlu0 %v3405, 122
        %v3415 = vpop.permute.xlu0 %3414
        %3416 = vrot.lane.b32.xlu0 %v3413, 122
        %v3417 = vpop.permute.xlu0 %3416
        %3418 = vrot.lane.b32.xlu0 %v3412, 122
        %v3419 = vpop.permute.xlu0 %3418
        %vm3420 = vcmask 998400
        %v3421 = vsel %vm3420, %v3415, %v3417
        %v3422 = vsel %vm3420, %v3417, %v3419
        %v3425 = vmul.f32 %v3395, %v3421
        %v3426 = vmul.f32 %v3395, %v3422
        %v3427 = vld [vmem:[#allocation3] sm:$0x3f]
        %3428 = vset.pattern.permute.xlu0 13
        %3429 = vperm.xlu0 %3428, %v1850
        %v3430 = vpop.permute.xlu0 %3429
        %v3433 = vcombine.high %v3427, %v3427
        %v3435 = vunpack.c.l.s4 1983009808
        %v3436 = vunpack.c.0.s8 %v3435
        %v3437 = vlaneseq
        %v3438 = vshrl.u32 %v3437, 7
        %v3439 = vsub.s32 %v3436, %v3438
        %v3440 = vrot.slane %v3427, %v3439
        %v3442 = vunpack.c.l.s4 1983009808
        %v3443 = vunpack.c.0.s8 %v3442
        %v3444 = vlaneseq
        %v3445 = vshrl.u32 %v3444, 7
        %v3446 = vsub.s32 %v3443, %v3445
        %v3447 = vrot.slane %v3433, %v3446
        %v3448 = vcombine.high %v3440, %v3440
        %3449 = vrot.lane.b32.xlu0 %v3440, 106
        %v3450 = vpop.permute.xlu0 %3449
        %3451 = vrot.lane.b32.xlu0 %v3448, 106
        %v3452 = vpop.permute.xlu0 %3451
        %3453 = vrot.lane.b32.xlu0 %v3447, 106
        %v3454 = vpop.permute.xlu0 %3453
        %vm3455 = vcmask 867328
        %v3456 = vsel %vm3455, %v3450, %v3452
        %v3457 = vsel %vm3455, %v3452, %v3454
        %v3460 = vmul.f32 %v3430, %v3456
        %v3461 = vmul.f32 %v3430, %v3457
        %v3462 = vadd.f32 %v3425, %v3460
        %v3463 = vadd.f32 %v3426, %v3461
        %v3464 = vld [vmem:[#allocation3] sm:$0x3f]
        %3465 = vset.pattern.permute.xlu0 20
        %3466 = vperm.xlu0 %3465, %v1850
        %v3467 = vpop.permute.xlu0 %3466
        %v3470 = vcombine.high %v3464, %v3464
        %v3472 = vunpack.c.l.s4 1983009808
        %v3473 = vunpack.c.0.s8 %v3472
        %v3474 = vlaneseq
        %v3475 = vshrl.u32 %v3474, 7
        %v3476 = vsub.s32 %v3473, %v3475
        %v3477 = vrot.slane %v3464, %v3476
        %v3479 = vunpack.c.l.s4 1983009808
        %v3480 = vunpack.c.0.s8 %v3479
        %v3481 = vlaneseq
        %v3482 = vshrl.u32 %v3481, 7
        %v3483 = vsub.s32 %v3480, %v3482
        %v3484 = vrot.slane %v3470, %v3483
        %v3485 = vcombine.high %v3477, %v3477
        %3486 = vrot.lane.b32.xlu0 %v3477, 90
        %v3487 = vpop.permute.xlu0 %3486
        %3488 = vrot.lane.b32.xlu0 %v3485, 90
        %v3489 = vpop.permute.xlu0 %3488
        %3490 = vrot.lane.b32.xlu0 %v3484, 90
        %v3491 = vpop.permute.xlu0 %3490
        %vm3492 = vcmask 736256
        %v3493 = vsel %vm3492, %v3487, %v3489
        %v3494 = vsel %vm3492, %v3489, %v3491
        %v3497 = vmul.f32 %v3467, %v3493
        %v3498 = vmul.f32 %v3467, %v3494
        %v3499 = vadd.f32 %v3462, %v3497
        %v3500 = vadd.f32 %v3463, %v3498
        %v3501 = vld [vmem:[#allocation3] sm:$0x3f]
        %3502 = vset.pattern.permute.xlu0 27
        %3503 = vperm.xlu0 %3502, %v1850
        %v3504 = vpop.permute.xlu0 %3503
        %v3507 = vcombine.high %v3501, %v3501
        %v3509 = vunpack.c.l.s4 1983009808
        %v3510 = vunpack.c.0.s8 %v3509
        %v3511 = vlaneseq
        %v3512 = vshrl.u32 %v3511, 7
        %v3513 = vsub.s32 %v3510, %v3512
        %v3514 = vrot.slane %v3501, %v3513
        %v3516 = vunpack.c.l.s4 1983009808
        %v3517 = vunpack.c.0.s8 %v3516
        %v3518 = vlaneseq
        %v3519 = vshrl.u32 %v3518, 7
        %v3520 = vsub.s32 %v3517, %v3519
        %v3521 = vrot.slane %v3507, %v3520
        %v3522 = vcombine.high %v3514, %v3514
        %3523 = vrot.lane.b32.xlu0 %v3514, 74
        %v3524 = vpop.permute.xlu0 %3523
        %3525 = vrot.lane.b32.xlu0 %v3522, 74
        %v3526 = vpop.permute.xlu0 %3525
        %3527 = vrot.lane.b32.xlu0 %v3521, 74
        %v3528 = vpop.permute.xlu0 %3527
        %vm3529 = vcmask 605184
        %v3530 = vsel %vm3529, %v3524, %v3526
        %v3531 = vsel %vm3529, %v3526, %v3528
        %v3534 = vmul.f32 %v3504, %v3530
        %v3535 = vmul.f32 %v3504, %v3531
        %v3536 = vadd.f32 %v3499, %v3534
        %v3537 = vadd.f32 %v3500, %v3535
        %v3538 = vld [vmem:[#allocation3] sm:$0x3f]
        %3539 = vset.pattern.permute.xlu0 34
        %3540 = vperm.xlu0 %3539, %v1850
        %v3541 = vpop.permute.xlu0 %3540
        %v3544 = vcombine.high %v3538, %v3538
        %v3546 = vunpack.c.l.s4 1983009808
        %v3547 = vunpack.c.0.s8 %v3546
        %v3548 = vlaneseq
        %v3549 = vshrl.u32 %v3548, 7
        %v3550 = vsub.s32 %v3547, %v3549
        %v3551 = vrot.slane %v3538, %v3550
        %v3553 = vunpack.c.l.s4 1983009808
        %v3554 = vunpack.c.0.s8 %v3553
        %v3555 = vlaneseq
        %v3556 = vshrl.u32 %v3555, 7
        %v3557 = vsub.s32 %v3554, %v3556
        %v3558 = vrot.slane %v3544, %v3557
        %v3559 = vcombine.high %v3551, %v3551
        %3560 = vrot.lane.b32.xlu0 %v3551, 58
        %v3561 = vpop.permute.xlu0 %3560
        %3562 = vrot.lane.b32.xlu0 %v3559, 58
        %v3563 = vpop.permute.xlu0 %3562
        %3564 = vrot.lane.b32.xlu0 %v3558, 58
        %v3565 = vpop.permute.xlu0 %3564
        %vm3566 = vcmask 474112
        %v3567 = vsel %vm3566, %v3561, %v3563
        %v3568 = vsel %vm3566, %v3563, %v3565
        %v3571 = vmul.f32 %v3541, %v3567
        %v3572 = vmul.f32 %v3541, %v3568
        %v3573 = vadd.f32 %v3536, %v3571
        %v3574 = vadd.f32 %v3537, %v3572
        %v3575 = vld [vmem:[#allocation3] sm:$0x3f]
        %3576 = vset.pattern.permute.xlu0 41
        %3577 = vperm.xlu0 %3576, %v1850
        %v3578 = vpop.permute.xlu0 %3577
        %v3581 = vcombine.high %v3575, %v3575
        %v3583 = vunpack.c.l.s4 1983009808
        %v3584 = vunpack.c.0.s8 %v3583
        %v3585 = vlaneseq
        %v3586 = vshrl.u32 %v3585, 7
        %v3587 = vsub.s32 %v3584, %v3586
        %v3588 = vrot.slane %v3575, %v3587
        %v3590 = vunpack.c.l.s4 1983009808
        %v3591 = vunpack.c.0.s8 %v3590
        %v3592 = vlaneseq
        %v3593 = vshrl.u32 %v3592, 7
        %v3594 = vsub.s32 %v3591, %v3593
        %v3595 = vrot.slane %v3581, %v3594
        %v3596 = vcombine.high %v3588, %v3588
        %3597 = vrot.lane.b32.xlu0 %v3588, 42
        %v3598 = vpop.permute.xlu0 %3597
        %3599 = vrot.lane.b32.xlu0 %v3596, 42
        %v3600 = vpop.permute.xlu0 %3599
        %3601 = vrot.lane.b32.xlu0 %v3595, 42
        %v3602 = vpop.permute.xlu0 %3601
        %vm3603 = vcmask 343040
        %v3604 = vsel %vm3603, %v3598, %v3600
        %v3605 = vsel %vm3603, %v3600, %v3602
        %v3608 = vmul.f32 %v3578, %v3604
        %v3609 = vmul.f32 %v3578, %v3605
        %v3610 = vadd.f32 %v3573, %v3608
        %v3611 = vadd.f32 %v3574, %v3609
        %v3612 = vld [vmem:[#allocation3] sm:$0x3f]
        %3613 = vset.pattern.permute.xlu0 48
        %3614 = vperm.xlu0 %3613, %v1850
        %v3615 = vpop.permute.xlu0 %3614
        %v3618 = vcombine.high %v3612, %v3612
        %v3620 = vunpack.c.l.s4 1983009808
        %v3621 = vunpack.c.0.s8 %v3620
        %v3622 = vlaneseq
        %v3623 = vshrl.u32 %v3622, 7
        %v3624 = vsub.s32 %v3621, %v3623
        %v3625 = vrot.slane %v3612, %v3624
        %v3627 = vunpack.c.l.s4 1983009808
        %v3628 = vunpack.c.0.s8 %v3627
        %v3629 = vlaneseq
        %v3630 = vshrl.u32 %v3629, 7
        %v3631 = vsub.s32 %v3628, %v3630
        %v3632 = vrot.slane %v3618, %v3631
        %v3633 = vcombine.high %v3625, %v3625
        %3634 = vrot.lane.b32.xlu0 %v3625, 26
        %v3635 = vpop.permute.xlu0 %3634
        %3636 = vrot.lane.b32.xlu0 %v3633, 26
        %v3637 = vpop.permute.xlu0 %3636
        %3638 = vrot.lane.b32.xlu0 %v3632, 26
        %v3639 = vpop.permute.xlu0 %3638
        %vm3640 = vcmask 211968
        %v3641 = vsel %vm3640, %v3635, %v3637
        %v3642 = vsel %vm3640, %v3637, %v3639
        %v3645 = vmul.f32 %v3615, %v3641
        %v3646 = vmul.f32 %v3615, %v3642
        %v3647 = vadd.f32 %v3610, %v3645
        %v3648 = vadd.f32 %v3611, %v3646
        %v3649 = vsel %vm365, 1, 0
        %v3650 = vsel %vm366, 1, 0
        %vm3651 = vcmp.eq.s32.totalorder %v3649, 1
        %vm3652 = vcmp.eq.s32.totalorder %v3650, 1
        %v3653 = vsel %vm3651, %v3647, 0.0
        %v3654 = vsel %vm3652, %v3648, 0.0
        %v3655 = vadd.f32 %v2092, %v2355
        %v3656 = vadd.f32 %v2093, %v2356
        %v3657 = vadd.f32 %v2611, %v2868
        %v3658 = vadd.f32 %v2612, %v2869
        %v3659 = vadd.f32 %v3127, %v3390
        %v3660 = vadd.f32 %v3128, %v3391
        %v3661 = vadd.f32 %v3655, %v3657
        %v3662 = vadd.f32 %v3656, %v3658
        %v3663 = vadd.f32 %v3659, %v3653
        %v3664 = vadd.f32 %v3660, %v3654
        %v3665 = vadd.f32 %v3661, %v3663
        %v3666 = vadd.f32 %v3662, %v3664
        %v3669 = vrot.slane %v3665, 1
        %v3670 = vrot.slane %v3666, 1
        %v3673 = vadd.f32 %v3665, %v3669
        %v3674 = vadd.f32 %v3666, %v3670
        %v3675 = vxor.u32 %v3673, 2147483648
        %v3676 = vxor.u32 %v3674, 2147483648
        %v3677 = vmul.f32 %v3675, 1.442695
        %v3678 = vpow.pop %v3677
        %v3679 = vmul.f32 %v3676, 1.442695
        %v3680 = vpow.pop %v3679
        %v3681 = vadd.f32 %v3678, 1.0
        %v3682 = vadd.f32 %v3680, 1.0
        %v3683 = vrcp.pop %v3681
        %v3684 = vmul.f32 1.0, %v3683
        %v3685 = vrcp.pop %v3682
        %v3686 = vmul.f32 1.0, %v3685
        %v3687 = vld [vmem:[%s302] sm:$0xff]
        %v3688 = vld [vmem:[%s302 + $0x8] sm:$0xff]
        %v3689 = vld [vmem:[%s302 + $0x10] sm:$0xff]
        %v3690 = vld [vmem:[%s302 + $0x18] sm:$0xff]
        %v3691 = vld [vmem:[%s302 + $0x20] sm:$0xff]
        %v3692 = vld [vmem:[%s302 + $0x28] sm:$0xff]
        %v3693 = vld [vmem:[%s302 + $0x30] sm:$0xff]
        %v3694 = vld [vmem:[%s302 + $0x38] sm:$0xff]
        %3696 = vset.pattern.permute.xlu0 0
        %3697 = vperm.xlu0 %3696, %v1749
        %v3698 = vpop.permute.xlu0 %3697
        %3701 = vset.pattern.permute.xlu0 0
        %3702 = vperm.xlu0 %3701, %v1751
        %v3703 = vpop.permute.xlu0 %3702
        %3706 = vset.pattern.permute.xlu0 0
        %3707 = vperm.xlu0 %3706, %v1753
        %v3708 = vpop.permute.xlu0 %3707
        %3711 = vset.pattern.permute.xlu0 0
        %3712 = vperm.xlu0 %3711, %v1755
        %v3713 = vpop.permute.xlu0 %3712
        %v3715 = vmul.f32 %v3687, %v3698
        %v3716 = vmul.f32 %v3688, %v3698
        %v3717 = vmul.f32 %v3689, %v3703
        %v3718 = vmul.f32 %v3690, %v3703
        %v3719 = vmul.f32 %v3691, %v3708
        %v3720 = vmul.f32 %v3692, %v3708
        %v3721 = vmul.f32 %v3693, %v3713
        %v3722 = vmul.f32 %v3694, %v3713
        %v3723 = vlaneseq
        %v3724 = vshrl.u32 %v3723, 7
        %v3725 = vsub.s32 0, %v3724
        %v3726 = vrot.slane %v3684, %v3725
        %v3727 = vlaneseq
        %v3728 = vshrl.u32 %v3727, 7
        %v3729 = vsub.s32 0, %v3728
        %v3730 = vrot.slane %v3686, %v3729
        %v3731 = vmul.f32 %v3715, %v3726
        %v3732 = vmul.f32 %v3716, %v3730
        %v3733 = vmul.f32 %v3717, %v3726
        %v3734 = vmul.f32 %v3718, %v3730
        %v3735 = vmul.f32 %v3719, %v3726
        %v3736 = vmul.f32 %v3720, %v3730
        %v3737 = vmul.f32 %v3721, %v3726
        %v3738 = vmul.f32 %v3722, %v3730
        %3739 = vst [vmem:[%s350] sm:$0xff] %v3731
        %3740 = vst [vmem:[%s350 + $0x8] sm:$0xff] %v3732
        %3741 = vst [vmem:[%s350 + $0x10] sm:$0xff] %v3733
        %3742 = vst [vmem:[%s350 + $0x18] sm:$0xff] %v3734
        %3743 = vst [vmem:[%s350 + $0x20] sm:$0xff] %v3735
        %3744 = vst [vmem:[%s350 + $0x28] sm:$0xff] %v3736
        %3745 = vst [vmem:[%s350 + $0x30] sm:$0xff] %v3737
        %3746 = vst [vmem:[%s350 + $0x38] sm:$0xff] %v3738
        %s3747 = sand.u32 %s192, 1
        %s3748 = scalar_lea.sflag [#allocation6], %s3747
        %s3749 = sand.u32 %s192, 1
        %s3750 = smul.addr %s3749, 64
        %s3751 = scalar_lea.vmem [#allocation10], %s3750
        // Predicated region
        $region61: #{tpu_custom_call.1} parent=47 // pred_check
          %p3752 = pneg %p202
        $region62: #{tpu_custom_call.1} parent=47 // pred_check_branch
          %3754 = sbr.rel (%p3752) target = $region64
        $region63: #{tpu_custom_call.1} parent=47 // pred_region
          %s3756 = ssub.s32 1024, 1024
          %3757 = vsyncadd %s3748, %s3756
          %s3758 = smul.addr %s27, 8
          %s3759 = smul.addr %s3758, 128
          %s3760 = scalar_lea.hbm %s7, %s3759
          %s3761 = sshll.u32 %s3751, 4
          %s3762 = int_to_ptr.vmem [resolvable:$true] %s3761
          %3767 = dma.vmem_to_hbm [thread:$0]  %s3762, 1024, %s3760, %s3748, 256, 256, 16
        $region64: #{tpu_custom_call.1} parent=47 // pred_fallthru
          _
      $region48: #{tpu_custom_call.1} parent=5 // pred_fallthru
        _
      %p3768 = scmp.le.s32.totalorder 2, %s22
      // Predicated region
      $region65: #{tpu_custom_call.1} parent=5 // pred_check
        %p3769 = pneg %p3768
      $region66: #{tpu_custom_call.1} parent=5 // pred_check_branch
        %3771 = sbr.rel (%p3769) target = $region68
      $region67: #{tpu_custom_call.1} parent=5 // pred_region
        %s3772 = ssub.s32 %s22, 2
        // Predicated region
        $region69: #{tpu_custom_call.1} parent=67 // pred_check
          %p3773 = pneg %p208
        $region70: #{tpu_custom_call.1} parent=67 // pred_check_branch
          %3775 = sbr.rel (%p3773) target = $region72
        $region71: #{tpu_custom_call.1} parent=67 // pred_region
          %s3776 = sand.u32 %s193, 1
          %s3777 = scalar_lea.sflag [#allocation6], %s3776
          %s3778 = sand.u32 %s193, 1
          %s3779 = smul.addr %s3778, 64
          %s3780 = scalar_lea.vmem [#allocation10], %s3779
          %3781 = dma.done %s3777, 1024
        $region72: #{tpu_custom_call.1} parent=67 // pred_fallthru
          _
      $region68: #{tpu_custom_call.1} parent=5 // pred_fallthru
        _
    $region6: #{tpu_custom_call.1} parent=1 // loop_footer
      %s26 = sadd.s32 1, %s22
    $region7: #{tpu_custom_call.1} parent=1 // loop_footer_branch
      %21 = sbr.rel target = $region3
    $region8: #{tpu_custom_call.1} parent=1 // loop_exit
      _
    %3782 = vsyncpa [#allocation5], 1
    %s3783 = scalar_lea.sflag [#allocation5], 1
    %3784 = vsyncpa %s3783, 1
    %3785 = vsyncpa [#allocation8], 1
    %s3786 = scalar_lea.sflag [#allocation8], 1
    %3787 = vsyncpa %s3786, 1
    %3788 = vsyncpa [#allocation6], 1
    %s3789 = scalar_lea.sflag [#allocation6], 1
    %3790 = vsyncpa %s3789, 1

</llo_original>
